<compile_context>
chip_gen: v6e
topology: v6e:2x2x1
jax: 0.10.0
libtpu: 0.0.40
codegen_flags: <defaults>
</compile_context>

<pallas_src>
import jax
import jax.numpy as jnp
from jax.experimental import pallas as pl
from jax.experimental.pallas import tpu as pltpu

EMBEDDING_DIM = 512


def _round_up(x, m):
    return ((x + m - 1) // m) * m


def gnet_kernel(x1_ref, x2_ref, wa_ref, wb_ref, b_ref, o_ref):
    x1 = x1_ref[...]                       # [tb, D] f32
    x2 = x2_ref[...]                       # [tb, D] f32

    # Elementwise in f32 (v5e VPU has no bf16), cast just before the MXU.
    s = (x1 + x2).astype(jnp.bfloat16)     # feeds the shared-Wa term
    p = (x1 * x2).astype(jnp.bfloat16)     # feeds the Wb term

    acc = jnp.dot(s, wa_ref[...], preferred_element_type=jnp.float32)
    acc = acc + jnp.dot(p, wb_ref[...], preferred_element_type=jnp.float32)

    # Combined bias (2*ba + bb), added once in f32.
    o_ref[...] = (acc + b_ref[...]).astype(o_ref.dtype)


def prepare_gnet_params(wa, ba, wb, bb):
    """One-time parameter prep (hoisted out of the per-call path):
    transpose PyTorch [out,in] weights to [in,out], cast to bf16, and fold the
    two bias adds into a single combined [1, D] f32 row."""
    wa_t = jnp.asarray(wa).T.astype(jnp.bfloat16)            # [D, D]
    wb_t = jnp.asarray(wb).T.astype(jnp.bfloat16)            # [D, D]
    bias = (2.0 * jnp.asarray(ba, jnp.float32)
            + jnp.asarray(bb, jnp.float32)).reshape(1, -1)   # [1, D] f32
    return wa_t, wb_t, bias


def _choose_batch_tile(B):
    """Pick the batch tile.

    Goals (in order): no wrapper-side padding (a partial trailing block is
    fine because the kernel is row-local), an even grid >= 2 so both v7x
    TensorCores get work, and tiles as large as possible (~512 rows) to
    amortize the ~0.35us per-grid-step overhead.
    """
    if B <= 16:
        # Tiny batch: one full-extent block (block_shape == array dims is
        # always legal). Pipelining / megacore are irrelevant here.
        return B
    cap = 512 if B < 4096 else 1024       # v7x-VMEM-safe; ~6-13 MiB in flight
    n = 2
    while _round_up(pl.cdiv(B, n), 8) > cap:
        n += 2                            # keep the grid even
    return _round_up(pl.cdiv(B, n), 8)    # 8-aligned sublane tile


@jax.jit
def gnet_forward(x1, x2, wa_t, wb_t, bias):
    """x1, x2: [B, D] float32. wa_t, wb_t: [D, D] bf16 ([in, out]).
    bias: [1, D] f32 (= 2*ba + bb). Returns [B, D] f32."""
    B, D = x1.shape
    assert D == EMBEDDING_DIM

    tile = _choose_batch_tile(B)
    grid = (pl.cdiv(B, tile),)            # partial trailing block allowed

    cost = pl.CostEstimate(
        flops=4 * B * D * D,                                    # two matmuls
        transcendentals=0,
        bytes_accessed=(2 * 4 + 4) * B * D + 2 * 2 * D * D + 4 * D,
    )

    return pl.pallas_call(
        gnet_kernel,
        out_shape=jax.ShapeDtypeStruct((B, D), x1.dtype),
        grid=grid,
        in_specs=[
            pl.BlockSpec((tile, D), lambda i: (i, 0)),   # x1 tile
            pl.BlockSpec((tile, D), lambda i: (i, 0)),   # x2 tile
            pl.BlockSpec((D, D), lambda i: (0, 0)),      # Wa^T (resident, bf16)
            pl.BlockSpec((D, D), lambda i: (0, 0)),      # Wb^T (resident, bf16)
            pl.BlockSpec((1, D), lambda i: (0, 0)),      # combined bias (f32)
        ],
        out_specs=pl.BlockSpec((tile, D), lambda i: (i, 0)),
        compiler_params=pltpu.CompilerParams(
            dimension_semantics=("parallel",)),
        cost_estimate=cost,
    )(x1, x2, wa_t, wb_t, bias)


def _init_linear(key, out_dim, in_dim):
    # Deterministic init mimicking PyTorch's default U(-1/sqrt(in), 1/sqrt(in)).
    kw, kb = jax.random.split(key)
    bound = 1.0 / (in_dim ** 0.5)
    w = jax.random.uniform(kw, (out_dim, in_dim), jnp.float32, -bound, bound)
    b = jax.random.uniform(kb, (out_dim,), jnp.float32, -bound, bound)
    return w, b


if __name__ == "__main__":
    key = jax.random.PRNGKey(0)
    k1, k2, ka, kb = jax.random.split(key, 4)

    D = EMBEDDING_DIM
    B = 390  # chosen tile = 200 -> grid = 2 (both v7x TCs) with a PARTIAL
             # trailing block (rows 200..389), exercising the no-pad path.

    x1 = jax.random.normal(k1, (B, D), jnp.float32)
    x2 = jax.random.normal(k2, (B, D), jnp.float32)

    wa, ba = _init_linear(ka, D, D)   # linear1a (PyTorch layout [out, in])
    wb, bb = _init_linear(kb, D, D)   # linear1b

    wa_t, wb_t, bias = prepare_gnet_params(wa, ba, wb, bb)

    out = gnet_forward(x1, x2, wa_t, wb_t, bias)
    out = jax.block_until_ready(out)

    # Reference in plain f32 JAX (module semantics). bf16 MXU inputs with f32
    # accumulation loosen the tolerance vs. pure-f32 math.
    ref = (x1 @ wa.T + ba) + (x2 @ wa.T + ba) + ((x1 * x2) @ wb.T + bb)
    assert out.shape == (B, D)
    assert jnp.allclose(out, ref, atol=3e-2, rtol=2e-2), (
        float(jnp.max(jnp.abs(out - ref))))

    print("KERNEL_OK")
</pallas_src>

<mosaic_0001>
module attributes {stable_mosaic.version = 11 : i64} {
  func.func @gnet_kernel(%arg0: i32, %arg1: memref<200x512xf32, #tpu.memory_space<vmem>>, %arg2: memref<200x512xf32, #tpu.memory_space<vmem>>, %arg3: memref<512x512xbf16, #tpu.memory_space<vmem>>, %arg4: memref<512x512xbf16, #tpu.memory_space<vmem>>, %arg5: memref<1x512xf32, #tpu.memory_space<vmem>>, %arg6: memref<200x512xf32, #tpu.memory_space<vmem>>) attributes {dimension_semantics = [#tpu.dimension_semantics<parallel>], iteration_bounds = array<i64: 2>, scalar_prefetch = 0 : i64, scratch_operands = 0 : i64, tpu.core_type = #tpu.core_type<tc>, window_params = [{transform_indices = @transform_0, window_bounds = array<i64: 200, 512>}, {transform_indices = @transform_1, window_bounds = array<i64: 200, 512>}, {pipeline_mode = #tpu.pipeline_mode<synchronous>, transform_indices = @transform_2, window_bounds = array<i64: 512, 512>}, {pipeline_mode = #tpu.pipeline_mode<synchronous>, transform_indices = @transform_3, window_bounds = array<i64: 512, 512>}, {pipeline_mode = #tpu.pipeline_mode<synchronous>, transform_indices = @transform_4, window_bounds = array<i64: 1, 512>}, {transform_indices = @transform_5, window_bounds = array<i64: 200, 512>}]} {
    %c0 = arith.constant 0 : index
    %c0_0 = arith.constant 0 : index
    %0 = vector.load %arg1[%c0, %c0_0] : memref<200x512xf32, #tpu.memory_space<vmem>>, vector<200x512xf32>
    %c0_1 = arith.constant 0 : index
    %c0_2 = arith.constant 0 : index
    %1 = vector.load %arg2[%c0_1, %c0_2] : memref<200x512xf32, #tpu.memory_space<vmem>>, vector<200x512xf32>
    %2 = arith.addf %0, %1 : vector<200x512xf32>
    %3 = arith.truncf %2 : vector<200x512xf32> to vector<200x512xbf16>
    %4 = arith.mulf %0, %1 : vector<200x512xf32>
    %5 = arith.truncf %4 : vector<200x512xf32> to vector<200x512xbf16>
    %c0_3 = arith.constant 0 : index
    %c0_4 = arith.constant 0 : index
    %6 = vector.load %arg3[%c0_3, %c0_4] : memref<512x512xbf16, #tpu.memory_space<vmem>>, vector<512x512xbf16>
    %cst = arith.constant dense<0.000000e+00> : vector<200x512xf32>
    %7 = tpu.matmul %3, %6, %cst {dimension_numbers = #tpu.dot_dimension_numbers<[1], [0], [0], [1], [0, 0, 1, 1], [], []>} : vector<200x512xbf16>, vector<512x512xbf16>, vector<200x512xf32> -> vector<200x512xf32>
    %c0_5 = arith.constant 0 : index
    %c0_6 = arith.constant 0 : index
    %8 = vector.load %arg4[%c0_5, %c0_6] : memref<512x512xbf16, #tpu.memory_space<vmem>>, vector<512x512xbf16>
    %cst_7 = arith.constant dense<0.000000e+00> : vector<200x512xf32>
    %9 = tpu.matmul %5, %8, %cst_7 {dimension_numbers = #tpu.dot_dimension_numbers<[1], [0], [0], [1], [0, 0, 1, 1], [], []>} : vector<200x512xbf16>, vector<512x512xbf16>, vector<200x512xf32> -> vector<200x512xf32>
    %10 = arith.addf %7, %9 : vector<200x512xf32>
    %c0_8 = arith.constant 0 : index
    %c0_9 = arith.constant 0 : index
    %11 = vector.load %arg5[%c0_8, %c0_9] : memref<1x512xf32, #tpu.memory_space<vmem>>, vector<1x512xf32>
    %12 = vector.broadcast %11 : vector<1x512xf32> to vector<200x512xf32>
    %13 = arith.addf %10, %12 : vector<200x512xf32>
    %c0_10 = arith.constant 0 : index
    %c0_11 = arith.constant 0 : index
    %14 = vector.load %arg6[%c0_10, %c0_11] : memref<200x512xf32, #tpu.memory_space<vmem>>, vector<200x512xf32>
    tpu.vector_store %arg6[%c0_10, %c0_11], %13 {strides = array<i32>} : memref<200x512xf32, #tpu.memory_space<vmem>>, vector<200x512xf32>,
    return
  }
  func.func @transform_0(%arg0: i32) -> (i32, i32) {
    %c0_i32 = arith.constant 0 : i32
    %c0_i32_0 = arith.constant 0 : i32
    return %arg0, %c0_i32 : i32, i32
  }
  func.func @transform_1(%arg0: i32) -> (i32, i32) {
    %c0_i32 = arith.constant 0 : i32
    %c0_i32_0 = arith.constant 0 : i32
    return %arg0, %c0_i32 : i32, i32
  }
  func.func @transform_2(%arg0: i32) -> (i32, i32) {
    %c0_i32 = arith.constant 0 : i32
    %c0_i32_0 = arith.constant 0 : i32
    %c0_i32_1 = arith.constant 0 : i32
    return %c0_i32, %c0_i32_0 : i32, i32
  }
  func.func @transform_3(%arg0: i32) -> (i32, i32) {
    %c0_i32 = arith.constant 0 : i32
    %c0_i32_0 = arith.constant 0 : i32
    %c0_i32_1 = arith.constant 0 : i32
    return %c0_i32, %c0_i32_0 : i32, i32
  }
  func.func @transform_4(%arg0: i32) -> (i32, i32) {
    %c0_i32 = arith.constant 0 : i32
    %c0_i32_0 = arith.constant 0 : i32
    %c0_i32_1 = arith.constant 0 : i32
    return %c0_i32, %c0_i32_0 : i32, i32
  }
  func.func @transform_5(%arg0: i32) -> (i32, i32) {
    %c0_i32 = arith.constant 0 : i32
    %c0_i32_0 = arith.constant 0 : i32
    return %arg0, %c0_i32 : i32, i32
  }
}

</mosaic_0001>

<llo_original>
// kernel: gnet_forward.1
$region0: #{gnet_forward.1}
  #allocation0 [shape = 'u32[]', space=smem, size = 0x4, offset = 0x4, fixed_abs, tag = 'smem constant byte address 0x4 - core index']
  #allocation1 [shape = 'u32[144,128]{1,0:T(1,128)}', space=vmem, size = 0x12000, scoped, tag = 'internal scratch']
  %s0 = inlined_call_operand.hbm [shape: f32[390,512], index: 0, kind: input, shape index: {}]
  %s1 = inlined_call_operand.hbm [shape: f32[390,512], index: 1, kind: input, shape index: {}]
  %s2 = inlined_call_operand.hbm [shape: bf16[512,512], index: 2, kind: input, shape index: {}]
  %s3 = inlined_call_operand.hbm [shape: bf16[512,512], index: 3, kind: input, shape index: {}]
  %s4 = inlined_call_operand.vmem [shape: f32[1,512], index: 4, kind: input, shape index: {}]
  %s5 = inlined_call_operand.hbm [shape: f32[390,512], index: 5, kind: output, shape index: {}]
  %s6 = sld [smem:[#allocation0]]
  $region69: #{gnet_forward.1} parent=0
    _
  %s8 = ssub.s32 1, %s6
  %s9 = scalar_select 0, %s8, %s6
  $region1: #{gnet_forward.1} parent=0
    #allocation2 [shape = 'u8[819200]{0}', space=vmem, size = 0xc8000, scoped, tag = 'input window, operand 0']
    #allocation3 [shape = 's32[2]{0}', space=sflag, size = 0x8, scoped, tag = 'scoped memory for gnet_forward.1']
    #allocation4 [shape = 's32[2]{0}', space=sflag, size = 0x8, scoped, tag = 'scoped memory for gnet_forward.1']
    #allocation5 [shape = 'u8[819200]{0}', space=vmem, size = 0xc8000, scoped, tag = 'input window, operand 1']
    #allocation6 [shape = 's32[2]{0}', space=sflag, size = 0x8, scoped, tag = 'scoped memory for gnet_forward.1']
    #allocation7 [shape = 'u8[524288]{0}', space=vmem, size = 0x80000, scoped, tag = 'input window, operand 2, single buffered']
    #allocation8 [shape = 'u8[524288]{0}', space=vmem, size = 0x80000, scoped, tag = 'input window, operand 3, single buffered']
    #allocation9 [shape = 's32[1]{0}', space=sflag, size = 0x4, scoped, tag = 'scoped memory for gnet_forward.1']
    #allocation10 [shape = 'u8[819200]{0}', space=vmem, size = 0xc8000, scoped, tag = 'output window, operand 0']
    %10 = vsyncpa [#allocation3], 0
    %s11 = scalar_lea.sflag [#allocation3], 1
    %12 = vsyncpa %s11, 0
    %13 = vsyncpa [#allocation6], 0
    %s14 = scalar_lea.sflag [#allocation6], 1
    %15 = vsyncpa %s14, 0
    %16 = vsyncpa [#allocation9], 0
    %17 = vsyncpa [#allocation4], 0
    %s18 = scalar_lea.sflag [#allocation4], 1
    %19 = vsyncpa %s18, 0
    loop: start=0, step=1, limit=4
    $region2: #{gnet_forward.1} parent=1 // loop_pre_header
      _
    $region3: #{gnet_forward.1} parent=1 // loop_header
      %s21 = sphi 0, %s25
      %p22 = scmp.ge.s32.totalorder %s21, 4
      %s31 = sphi 0, %s33
      %s34 = sphi 0, %s31
      %s35 = sphi 0, %s34
      %s51 = sphi 0, %s35
      %s57 = sphi 0, %s59
      %s60 = sphi 0, %s57
      %s61 = sphi 0, %s60
      %s77 = sphi 0, %s61
      %s81 = sphi 0, %s81
      %s83 = sphi 0, %s81
      %s84 = sphi 0, %s83
      %s98 = sphi 0, %s84
      %s102 = sphi 0, %s102
      %s104 = sphi 0, %s102
      %s105 = sphi 0, %s104
      %s119 = sphi 0, %s105
      %s123 = sphi 0, %s123
      %s125 = sphi 0, %s123
      %s126 = sphi 0, %s125
      %s140 = sphi 0, %s126
      %s146 = sphi 0, %s148
      %s149 = sphi 0, %s146
      %s150 = sphi 0, %s149
      %s166 = sphi 0, %s150
    $region4: #{gnet_forward.1} parent=1 // loop_header_branch
      %24 = sbr.rel (%p22) target = $region8
    $region5: #{gnet_forward.1} parent=1 // loop_body
      %s26 = ssub.s32 %s21, 1
      %s27 = ssub.s32 %s21, 2
      %s28 = sadd.s32 %s21, 1
      %s29 = ssub.s32 %s21, %s28
      %p30 = scmp.eq.s32.totalorder %s29, 0
      %s32 = sadd.s32 %s31, 1
      %s33 = scalar_select %p30, %s31, %s32
      %p36 = pneg %p30
      %p37 = scmp.eq.s32.totalorder %s21, 1
      %p38 = por %p36, %p37
      %p39 = scmp.ne.s32.totalorder %s31, %s34
      %p40 = scmp.eq.s32.totalorder %s21, 0
      %p41 = por %p39, %p40
      %p42 = scmp.ne.s32.totalorder %s31, %s34
      %p43 = scmp.eq.s32.totalorder %s26, 1
      %p44 = por %p42, %p43
      %p45 = scmp.ne.s32.totalorder %s34, %s35
      %p46 = scmp.eq.s32.totalorder %s26, 0
      %p47 = por %p45, %p46
      %p48 = scmp.ne.s32.totalorder %s34, %s35
      %p49 = scmp.eq.s32.totalorder %s27, 1
      %p50 = por %p48, %p49
      %p52 = scmp.ne.s32.totalorder %s35, %s51
      %p53 = scmp.eq.s32.totalorder %s27, 0
      %p54 = por %p52, %p53
      %s55 = ssub.s32 %s21, %s28
      %p56 = scmp.eq.s32.totalorder %s55, 0
      %s58 = sadd.s32 %s57, 1
      %s59 = scalar_select %p56, %s57, %s58
      %p62 = pneg %p56
      %p63 = scmp.eq.s32.totalorder %s21, 1
      %p64 = por %p62, %p63
      %p65 = scmp.ne.s32.totalorder %s57, %s60
      %p66 = scmp.eq.s32.totalorder %s21, 0
      %p67 = por %p65, %p66
      %p68 = scmp.ne.s32.totalorder %s57, %s60
      %p69 = scmp.eq.s32.totalorder %s26, 1
      %p70 = por %p68, %p69
      %p71 = scmp.ne.s32.totalorder %s60, %s61
      %p72 = scmp.eq.s32.totalorder %s26, 0
      %p73 = por %p71, %p72
      %p74 = scmp.ne.s32.totalorder %s60, %s61
      %p75 = scmp.eq.s32.totalorder %s27, 1
      %p76 = por %p74, %p75
      %p78 = scmp.ne.s32.totalorder %s61, %s77
      %p79 = scmp.eq.s32.totalorder %s27, 0
      %p80 = por %p78, %p79
      %s82 = sadd.s32 %s81, 1
      %p85 = scmp.eq.s32.totalorder %s21, 1
      %p86 = scmp.ne.s32.totalorder %s81, %s83
      %p87 = scmp.eq.s32.totalorder %s21, 0
      %p88 = por %p86, %p87
      %p89 = scmp.ne.s32.totalorder %s81, %s83
      %p90 = scmp.eq.s32.totalorder %s26, 1
      %p91 = por %p89, %p90
      %p92 = scmp.ne.s32.totalorder %s83, %s84
      %p93 = scmp.eq.s32.totalorder %s26, 0
      %p94 = por %p92, %p93
      %p95 = scmp.ne.s32.totalorder %s83, %s84
      %p96 = scmp.eq.s32.totalorder %s27, 1
      %p97 = por %p95, %p96
      %p99 = scmp.ne.s32.totalorder %s84, %s98
      %p100 = scmp.eq.s32.totalorder %s27, 0
      %p101 = por %p99, %p100
      %s103 = sadd.s32 %s102, 1
      %p106 = scmp.eq.s32.totalorder %s21, 1
      %p107 = scmp.ne.s32.totalorder %s102, %s104
      %p108 = scmp.eq.s32.totalorder %s21, 0
      %p109 = por %p107, %p108
      %p110 = scmp.ne.s32.totalorder %s102, %s104
      %p111 = scmp.eq.s32.totalorder %s26, 1
      %p112 = por %p110, %p111
      %p113 = scmp.ne.s32.totalorder %s104, %s105
      %p114 = scmp.eq.s32.totalorder %s26, 0
      %p115 = por %p113, %p114
      %p116 = scmp.ne.s32.totalorder %s104, %s105
      %p117 = scmp.eq.s32.totalorder %s27, 1
      %p118 = por %p116, %p117
      %p120 = scmp.ne.s32.totalorder %s105, %s119
      %p121 = scmp.eq.s32.totalorder %s27, 0
      %p122 = por %p120, %p121
      %s124 = sadd.s32 %s123, 1
      %p127 = scmp.eq.s32.totalorder %s21, 1
      %p128 = scmp.ne.s32.totalorder %s123, %s125
      %p129 = scmp.eq.s32.totalorder %s21, 0
      %p130 = por %p128, %p129
      %p131 = scmp.ne.s32.totalorder %s123, %s125
      %p132 = scmp.eq.s32.totalorder %s26, 1
      %p133 = por %p131, %p132
      %p134 = scmp.ne.s32.totalorder %s125, %s126
      %p135 = scmp.eq.s32.totalorder %s26, 0
      %p136 = por %p134, %p135
      %p137 = scmp.ne.s32.totalorder %s125, %s126
      %p138 = scmp.eq.s32.totalorder %s27, 1
      %p139 = por %p137, %p138
      %p141 = scmp.ne.s32.totalorder %s126, %s140
      %p142 = scmp.eq.s32.totalorder %s27, 0
      %p143 = por %p141, %p142
      %s144 = ssub.s32 %s21, %s28
      %p145 = scmp.eq.s32.totalorder %s144, 0
      %s147 = sadd.s32 %s146, 1
      %s148 = scalar_select %p145, %s146, %s147
      %p151 = pneg %p145
      %p152 = scmp.eq.s32.totalorder %s21, 1
      %p153 = por %p151, %p152
      %p154 = scmp.ne.s32.totalorder %s146, %s149
      %p155 = scmp.eq.s32.totalorder %s21, 0
      %p156 = por %p154, %p155
      %p157 = scmp.ne.s32.totalorder %s146, %s149
      %p158 = scmp.eq.s32.totalorder %s26, 1
      %p159 = por %p157, %p158
      %p160 = scmp.ne.s32.totalorder %s149, %s150
      %p161 = scmp.eq.s32.totalorder %s26, 0
      %p162 = por %p160, %p161
      %p163 = scmp.ne.s32.totalorder %s149, %s150
      %p164 = scmp.eq.s32.totalorder %s27, 1
      %p165 = por %p163, %p164
      %p167 = scmp.ne.s32.totalorder %s150, %s166
      %p168 = scmp.eq.s32.totalorder %s27, 0
      %p169 = por %p167, %p168
      %p170 = scmp.le.s32.totalorder 1, %s21
      %p171 = scmp.lt.s32.totalorder %s21, 3
      %p172 = pnand %p170, %p171
      %p173 = pneg %p172
      // Predicated region
      $region9: #{gnet_forward.1} parent=5 // pred_check
        _
      $region10: #{gnet_forward.1} parent=5 // pred_check_branch
        %175 = sbr.rel (%p172) target = $region12
      $region11: #{gnet_forward.1} parent=5 // pred_region
        %s176 = ssub.s32 %s21, 1
        // Predicated region
        $region13: #{gnet_forward.1} parent=11 // pred_check
          %p177 = pneg %p94
        $region14: #{gnet_forward.1} parent=11 // pred_check_branch
          %179 = sbr.rel (%p177) target = $region16
        $region15: #{gnet_forward.1} parent=11 // pred_region
          %s181 = ssub.s32 16384, 16384
          %182 = vsyncadd [#allocation6], %s181
          %s183 = sshll.u32 [#allocation7], 4
          %s184 = int_to_ptr.vmem [resolvable:$true] %s183
          %189 = dma.hbm_to_vmem [thread:$0]  %s2, 16384, %s184, [#allocation6], 256, 256, 16
        $region16: #{gnet_forward.1} parent=11 // pred_fallthru
          _
        // Predicated region
        $region17: #{gnet_forward.1} parent=11 // pred_check
          %p190 = pneg %p115
        $region18: #{gnet_forward.1} parent=11 // pred_check_branch
          %192 = sbr.rel (%p190) target = $region20
        $region19: #{gnet_forward.1} parent=11 // pred_region
          %s194 = ssub.s32 16384, 16384
          %195 = vsyncadd [#allocation9], %s194
          %s196 = sshll.u32 [#allocation8], 4
          %s197 = int_to_ptr.vmem [resolvable:$true] %s196
          %202 = dma.hbm_to_vmem [thread:$0]  %s3, 16384, %s197, [#allocation9], 256, 256, 16
        $region20: #{gnet_forward.1} parent=11 // pred_fallthru
          _
        // Predicated region
        $region21: #{gnet_forward.1} parent=11 // pred_check
          %p203 = pneg %p136
        $region22: #{gnet_forward.1} parent=11 // pred_check_branch
          %205 = sbr.rel (%p203) target = $region24
        $region23: #{gnet_forward.1} parent=11 // pred_region
          _
        $region24: #{gnet_forward.1} parent=11 // pred_fallthru
          _
      $region12: #{gnet_forward.1} parent=5 // pred_fallthru
        _
      %p206 = scmp.lt.s32.totalorder %s21, 2
      // Predicated region
      $region25: #{gnet_forward.1} parent=5 // pred_check
        %p207 = pneg %p206
      $region26: #{gnet_forward.1} parent=5 // pred_check_branch
        %209 = sbr.rel (%p207) target = $region28
      $region27: #{gnet_forward.1} parent=5 // pred_region
        // Predicated region
        $region29: #{gnet_forward.1} parent=27 // pred_check
          %p210 = pneg %p41
        $region30: #{gnet_forward.1} parent=27 // pred_check_branch
          %212 = sbr.rel (%p210) target = $region32
        $region31: #{gnet_forward.1} parent=27 // pred_region
          %s213 = sand.u32 %s31, 1
          %s214 = scalar_lea.sflag [#allocation3], %s213
          %s215 = sand.u32 %s31, 1
          %s216 = smul.addr %s215, 800
          %s217 = scalar_lea.vmem [#allocation2], %s216
          %s218 = smul.u32 25, %s21
          %s219 = ssub.s32 49, %s218
          %p220 = scmp.lt.s32.totalorder %s219, 25
          %s221 = scalar_select %p220, %s219, 25
          %s222 = smul.u32 128, %s221
          %s223 = smul.u32 %s222, 4
          %s225 = ssub.s32 12800, %s223
          %226 = vsyncadd %s214, %s225
          %p227 = scmp.ne.s32.totalorder 0, %s223
          %s228 = smul.addr %s218, 4
          %s229 = smul.addr %s228, 128
          %s230 = scalar_lea.hbm %s0, %s229
          %s231 = smul.u32 32, %s221
          %s232 = sshll.u32 %s217, 4
          %s233 = int_to_ptr.vmem [resolvable:$true] %s232
          %s234 = sshll.u32 %s231, 4
          %238 = dma.hbm_to_vmem [thread:$0]  (%p227), %s230, %s234, %s233, %s214, 512, 512, 32
        $region32: #{gnet_forward.1} parent=27 // pred_fallthru
          _
        // Predicated region
        $region33: #{gnet_forward.1} parent=27 // pred_check
          %p239 = pneg %p67
        $region34: #{gnet_forward.1} parent=27 // pred_check_branch
          %241 = sbr.rel (%p239) target = $region36
        $region35: #{gnet_forward.1} parent=27 // pred_region
          %s242 = sand.u32 %s21, 1
          %s243 = scalar_lea.sflag [#allocation6], %s242
          %s244 = sand.u32 %s57, 1
          %s245 = smul.addr %s244, 800
          %s246 = scalar_lea.vmem [#allocation5], %s245
          %s247 = smul.u32 25, %s21
          %s248 = ssub.s32 49, %s247
          %p249 = scmp.lt.s32.totalorder %s248, 25
          %s250 = scalar_select %p249, %s248, 25
          %s251 = smul.u32 128, %s250
          %s252 = smul.u32 %s251, 4
          %s254 = ssub.s32 12800, %s252
          %255 = vsyncadd %s243, %s254
          %p256 = scmp.ne.s32.totalorder 0, %s252
          %s257 = smul.addr %s247, 4
          %s258 = smul.addr %s257, 128
          %s259 = scalar_lea.hbm %s1, %s258
          %s260 = smul.u32 32, %s250
          %s261 = sshll.u32 %s246, 4
          %s262 = int_to_ptr.vmem [resolvable:$true] %s261
          %s263 = sshll.u32 %s260, 4
          %267 = dma.hbm_to_vmem [thread:$0]  (%p256), %s259, %s263, %s262, %s243, 512, 512, 32
        $region36: #{gnet_forward.1} parent=27 // pred_fallthru
          _
      $region28: #{gnet_forward.1} parent=5 // pred_fallthru
        _
      %p268 = scmp.le.s32.totalorder 1, %s21
      %p269 = scmp.lt.s32.totalorder %s21, 3
      %p270 = pnand %p268, %p269
      %p271 = pneg %p270
      // Predicated region
      $region37: #{gnet_forward.1} parent=5 // pred_check
        _
      $region38: #{gnet_forward.1} parent=5 // pred_check_branch
        %273 = sbr.rel (%p270) target = $region40
      $region39: #{gnet_forward.1} parent=5 // pred_region
        %s274 = ssub.s32 %s21, 1
        %s275 = sand.u32 %s34, 1
        %s276 = scalar_lea.sflag [#allocation3], %s275
        %s277 = sand.u32 %s34, 1
        %s278 = smul.addr %s277, 800
        %s279 = scalar_lea.vmem [#allocation2], %s278
        // Predicated region
        $region41: #{gnet_forward.1} parent=39 // pred_check
          %p280 = pneg %p47
        $region42: #{gnet_forward.1} parent=39 // pred_check_branch
          %282 = sbr.rel (%p280) target = $region44
        $region43: #{gnet_forward.1} parent=39 // pred_region
          %283 = dma.done %s276, 12800
        $region44: #{gnet_forward.1} parent=39 // pred_fallthru
          _
        %s284 = sand.u32 %s26, 1
        %s285 = scalar_lea.sflag [#allocation6], %s284
        %s286 = sand.u32 %s60, 1
        %s287 = smul.addr %s286, 800
        %s288 = scalar_lea.vmem [#allocation5], %s287
        // Predicated region
        $region45: #{gnet_forward.1} parent=39 // pred_check
          %p289 = pneg %p73
        $region46: #{gnet_forward.1} parent=39 // pred_check_branch
          %291 = sbr.rel (%p289) target = $region48
        $region47: #{gnet_forward.1} parent=39 // pred_region
          %292 = dma.done %s285, 12800
        $region48: #{gnet_forward.1} parent=39 // pred_fallthru
          _
        // Predicated region
        $region49: #{gnet_forward.1} parent=39 // pred_check
          %p293 = pneg %p94
        $region50: #{gnet_forward.1} parent=39 // pred_check_branch
          %295 = sbr.rel (%p293) target = $region52
        $region51: #{gnet_forward.1} parent=39 // pred_region
          %296 = dma.done [#allocation6], 16384
        $region52: #{gnet_forward.1} parent=39 // pred_fallthru
          _
        // Predicated region
        $region53: #{gnet_forward.1} parent=39 // pred_check
          %p297 = pneg %p115
        $region54: #{gnet_forward.1} parent=39 // pred_check_branch
          %299 = sbr.rel (%p297) target = $region56
        $region55: #{gnet_forward.1} parent=39 // pred_region
          %300 = dma.done [#allocation9], 16384
        $region56: #{gnet_forward.1} parent=39 // pred_fallthru
          _
        %s301 = sand.u32 %s34, 1
        %s302 = scalar_lea.sflag [#allocation3], %s301
        %s303 = sand.u32 %s34, 1
        %s304 = smul.addr %s303, 800
        %s305 = scalar_lea.vmem [#allocation2], %s304
        %p306 = pneg %p47
        %p307 = pneg %p44
        %s308 = sand.u32 %s26, 1
        %s309 = scalar_lea.sflag [#allocation6], %s308
        %s310 = sand.u32 %s60, 1
        %s311 = smul.addr %s310, 800
        %s312 = scalar_lea.vmem [#allocation5], %s311
        %p313 = pneg %p73
        %p314 = pneg %p70
        %p315 = pneg %p94
        %p316 = pneg %p91
        %p317 = pneg %p115
        %p318 = pneg %p112
        %p319 = pneg %p136
        %p320 = pneg %p133
        %p321 = pneg %p162
        %p322 = pneg %p159
        %s323 = sand.u32 %s149, 1
        %s324 = scalar_lea.sflag [#allocation4], %s323
        %s325 = sand.u32 %s149, 1
        %s326 = smul.addr %s325, 800
        %s327 = scalar_lea.vmem [#allocation10], %s326
        %s328 = smul.u32 25, %s26
        %s329 = ssub.s32 49, %s328
        %p330 = scmp.lt.s32.totalorder %s329, 25
        %s331 = scalar_select %p330, %s329, 25
        %s332 = smul.u32 128, %s331
        %s333 = smul.u32 %s332, 4
        %s334 = smul.u32 25, %s26
        %s335 = ssub.s32 49, %s334
        %p336 = scmp.lt.s32.totalorder %s335, 25
        %s337 = scalar_select %p336, %s335, 25
        %s338 = smul.u32 128, %s337
        %s339 = smul.u32 %s338, 4
        %s340 = smul.u32 25, %s26
        %s341 = ssub.s32 49, %s340
        %p342 = scmp.lt.s32.totalorder %s341, 25
        %s343 = scalar_select %p342, %s341, 25
        %s344 = smul.u32 128, %s343
        %s345 = smul.u32 %s344, 4
        %v346 = vld [vmem:[%s279] sm:$0xff]
        %v347 = vld [vmem:[%s279 + $0x8] sm:$0xff]
        %v348 = vld [vmem:[%s279 + $0x10] sm:$0xff]
        %v349 = vld [vmem:[%s279 + $0x18] sm:$0xff]
        %v350 = vld [vmem:[%s279 + $0x20] sm:$0xff]
        %v351 = vld [vmem:[%s279 + $0x28] sm:$0xff]
        %v352 = vld [vmem:[%s279 + $0x30] sm:$0xff]
        %v353 = vld [vmem:[%s279 + $0x38] sm:$0xff]
        %v354 = vld [vmem:[%s279 + $0x40] sm:$0xff]
        %v355 = vld [vmem:[%s279 + $0x48] sm:$0xff]
        %v356 = vld [vmem:[%s279 + $0x50] sm:$0xff]
        %v357 = vld [vmem:[%s279 + $0x58] sm:$0xff]
        %v358 = vld [vmem:[%s279 + $0x60] sm:$0xff]
        %v359 = vld [vmem:[%s279 + $0x68] sm:$0xff]
        %v360 = vld [vmem:[%s279 + $0x70] sm:$0xff]
        %v361 = vld [vmem:[%s279 + $0x78] sm:$0xff]
        %v362 = vld [vmem:[%s279 + $0x80] sm:$0xff]
        %v363 = vld [vmem:[%s279 + $0x88] sm:$0xff]
        %v364 = vld [vmem:[%s279 + $0x90] sm:$0xff]
        %v365 = vld [vmem:[%s279 + $0x98] sm:$0xff]
        %v366 = vld [vmem:[%s279 + $0xa0] sm:$0xff]
        %v367 = vld [vmem:[%s279 + $0xa8] sm:$0xff]
        %v368 = vld [vmem:[%s279 + $0xb0] sm:$0xff]
        %v369 = vld [vmem:[%s279 + $0xb8] sm:$0xff]
        %v370 = vld [vmem:[%s279 + $0xc0] sm:$0xff]
        %v371 = vld [vmem:[%s279 + $0xc8] sm:$0xff]
        %v372 = vld [vmem:[%s279 + $0xd0] sm:$0xff]
        %v373 = vld [vmem:[%s279 + $0xd8] sm:$0xff]
        %v374 = vld [vmem:[%s279 + $0xe0] sm:$0xff]
        %v375 = vld [vmem:[%s279 + $0xe8] sm:$0xff]
        %v376 = vld [vmem:[%s279 + $0xf0] sm:$0xff]
        %v377 = vld [vmem:[%s279 + $0xf8] sm:$0xff]
        %v378 = vld [vmem:[%s279 + $0x100] sm:$0xff]
        %v379 = vld [vmem:[%s279 + $0x108] sm:$0xff]
        %v380 = vld [vmem:[%s279 + $0x110] sm:$0xff]
        %v381 = vld [vmem:[%s279 + $0x118] sm:$0xff]
        %v382 = vld [vmem:[%s279 + $0x120] sm:$0xff]
        %v383 = vld [vmem:[%s279 + $0x128] sm:$0xff]
        %v384 = vld [vmem:[%s279 + $0x130] sm:$0xff]
        %v385 = vld [vmem:[%s279 + $0x138] sm:$0xff]
        %v386 = vld [vmem:[%s279 + $0x140] sm:$0xff]
        %v387 = vld [vmem:[%s279 + $0x148] sm:$0xff]
        %v388 = vld [vmem:[%s279 + $0x150] sm:$0xff]
        %v389 = vld [vmem:[%s279 + $0x158] sm:$0xff]
        %v390 = vld [vmem:[%s279 + $0x160] sm:$0xff]
        %v391 = vld [vmem:[%s279 + $0x168] sm:$0xff]
        %v392 = vld [vmem:[%s279 + $0x170] sm:$0xff]
        %v393 = vld [vmem:[%s279 + $0x178] sm:$0xff]
        %v394 = vld [vmem:[%s279 + $0x180] sm:$0xff]
        %v395 = vld [vmem:[%s279 + $0x188] sm:$0xff]
        %v396 = vld [vmem:[%s279 + $0x190] sm:$0xff]
        %v397 = vld [vmem:[%s279 + $0x198] sm:$0xff]
        %v398 = vld [vmem:[%s279 + $0x1a0] sm:$0xff]
        %v399 = vld [vmem:[%s279 + $0x1a8] sm:$0xff]
        %v400 = vld [vmem:[%s279 + $0x1b0] sm:$0xff]
        %v401 = vld [vmem:[%s279 + $0x1b8] sm:$0xff]
        %v402 = vld [vmem:[%s279 + $0x1c0] sm:$0xff]
        %v403 = vld [vmem:[%s279 + $0x1c8] sm:$0xff]
        %v404 = vld [vmem:[%s279 + $0x1d0] sm:$0xff]
        %v405 = vld [vmem:[%s279 + $0x1d8] sm:$0xff]
        %v406 = vld [vmem:[%s279 + $0x1e0] sm:$0xff]
        %v407 = vld [vmem:[%s279 + $0x1e8] sm:$0xff]
        %v408 = vld [vmem:[%s279 + $0x1f0] sm:$0xff]
        %v409 = vld [vmem:[%s279 + $0x1f8] sm:$0xff]
        %v410 = vld [vmem:[%s279 + $0x200] sm:$0xff]
        %v411 = vld [vmem:[%s279 + $0x208] sm:$0xff]
        %v412 = vld [vmem:[%s279 + $0x210] sm:$0xff]
        %v413 = vld [vmem:[%s279 + $0x218] sm:$0xff]
        %v414 = vld [vmem:[%s279 + $0x220] sm:$0xff]
        %v415 = vld [vmem:[%s279 + $0x228] sm:$0xff]
        %v416 = vld [vmem:[%s279 + $0x230] sm:$0xff]
        %v417 = vld [vmem:[%s279 + $0x238] sm:$0xff]
        %v418 = vld [vmem:[%s279 + $0x240] sm:$0xff]
        %v419 = vld [vmem:[%s279 + $0x248] sm:$0xff]
        %v420 = vld [vmem:[%s279 + $0x250] sm:$0xff]
        %v421 = vld [vmem:[%s279 + $0x258] sm:$0xff]
        %v422 = vld [vmem:[%s279 + $0x260] sm:$0xff]
        %v423 = vld [vmem:[%s279 + $0x268] sm:$0xff]
        %v424 = vld [vmem:[%s279 + $0x270] sm:$0xff]
        %v425 = vld [vmem:[%s279 + $0x278] sm:$0xff]
        %v426 = vld [vmem:[%s279 + $0x280] sm:$0xff]
        %v427 = vld [vmem:[%s279 + $0x288] sm:$0xff]
        %v428 = vld [vmem:[%s279 + $0x290] sm:$0xff]
        %v429 = vld [vmem:[%s279 + $0x298] sm:$0xff]
        %v430 = vld [vmem:[%s279 + $0x2a0] sm:$0xff]
        %v431 = vld [vmem:[%s279 + $0x2a8] sm:$0xff]
        %v432 = vld [vmem:[%s279 + $0x2b0] sm:$0xff]
        %v433 = vld [vmem:[%s279 + $0x2b8] sm:$0xff]
        %v434 = vld [vmem:[%s279 + $0x2c0] sm:$0xff]
        %v435 = vld [vmem:[%s279 + $0x2c8] sm:$0xff]
        %v436 = vld [vmem:[%s279 + $0x2d0] sm:$0xff]
        %v437 = vld [vmem:[%s279 + $0x2d8] sm:$0xff]
        %v438 = vld [vmem:[%s279 + $0x2e0] sm:$0xff]
        %v439 = vld [vmem:[%s279 + $0x2e8] sm:$0xff]
        %v440 = vld [vmem:[%s279 + $0x2f0] sm:$0xff]
        %v441 = vld [vmem:[%s279 + $0x2f8] sm:$0xff]
        %v442 = vld [vmem:[%s279 + $0x300] sm:$0xff]
        %v443 = vld [vmem:[%s279 + $0x308] sm:$0xff]
        %v444 = vld [vmem:[%s279 + $0x310] sm:$0xff]
        %v445 = vld [vmem:[%s279 + $0x318] sm:$0xff]
        %v446 = vld [vmem:[%s288] sm:$0xff]
        %v447 = vld [vmem:[%s288 + $0x8] sm:$0xff]
        %v448 = vld [vmem:[%s288 + $0x10] sm:$0xff]
        %v449 = vld [vmem:[%s288 + $0x18] sm:$0xff]
        %v450 = vld [vmem:[%s288 + $0x20] sm:$0xff]
        %v451 = vld [vmem:[%s288 + $0x28] sm:$0xff]
        %v452 = vld [vmem:[%s288 + $0x30] sm:$0xff]
        %v453 = vld [vmem:[%s288 + $0x38] sm:$0xff]
        %v454 = vld [vmem:[%s288 + $0x40] sm:$0xff]
        %v455 = vld [vmem:[%s288 + $0x48] sm:$0xff]
        %v456 = vld [vmem:[%s288 + $0x50] sm:$0xff]
        %v457 = vld [vmem:[%s288 + $0x58] sm:$0xff]
        %v458 = vld [vmem:[%s288 + $0x60] sm:$0xff]
        %v459 = vld [vmem:[%s288 + $0x68] sm:$0xff]
        %v460 = vld [vmem:[%s288 + $0x70] sm:$0xff]
        %v461 = vld [vmem:[%s288 + $0x78] sm:$0xff]
        %v462 = vld [vmem:[%s288 + $0x80] sm:$0xff]
        %v463 = vld [vmem:[%s288 + $0x88] sm:$0xff]
        %v464 = vld [vmem:[%s288 + $0x90] sm:$0xff]
        %v465 = vld [vmem:[%s288 + $0x98] sm:$0xff]
        %v466 = vld [vmem:[%s288 + $0xa0] sm:$0xff]
        %v467 = vld [vmem:[%s288 + $0xa8] sm:$0xff]
        %v468 = vld [vmem:[%s288 + $0xb0] sm:$0xff]
        %v469 = vld [vmem:[%s288 + $0xb8] sm:$0xff]
        %v470 = vld [vmem:[%s288 + $0xc0] sm:$0xff]
        %v471 = vld [vmem:[%s288 + $0xc8] sm:$0xff]
        %v472 = vld [vmem:[%s288 + $0xd0] sm:$0xff]
        %v473 = vld [vmem:[%s288 + $0xd8] sm:$0xff]
        %v474 = vld [vmem:[%s288 + $0xe0] sm:$0xff]
        %v475 = vld [vmem:[%s288 + $0xe8] sm:$0xff]
        %v476 = vld [vmem:[%s288 + $0xf0] sm:$0xff]
        %v477 = vld [vmem:[%s288 + $0xf8] sm:$0xff]
        %v478 = vld [vmem:[%s288 + $0x100] sm:$0xff]
        %v479 = vld [vmem:[%s288 + $0x108] sm:$0xff]
        %v480 = vld [vmem:[%s288 + $0x110] sm:$0xff]
        %v481 = vld [vmem:[%s288 + $0x118] sm:$0xff]
        %v482 = vld [vmem:[%s288 + $0x120] sm:$0xff]
        %v483 = vld [vmem:[%s288 + $0x128] sm:$0xff]
        %v484 = vld [vmem:[%s288 + $0x130] sm:$0xff]
        %v485 = vld [vmem:[%s288 + $0x138] sm:$0xff]
        %v486 = vld [vmem:[%s288 + $0x140] sm:$0xff]
        %v487 = vld [vmem:[%s288 + $0x148] sm:$0xff]
        %v488 = vld [vmem:[%s288 + $0x150] sm:$0xff]
        %v489 = vld [vmem:[%s288 + $0x158] sm:$0xff]
        %v490 = vld [vmem:[%s288 + $0x160] sm:$0xff]
        %v491 = vld [vmem:[%s288 + $0x168] sm:$0xff]
        %v492 = vld [vmem:[%s288 + $0x170] sm:$0xff]
        %v493 = vld [vmem:[%s288 + $0x178] sm:$0xff]
        %v494 = vld [vmem:[%s288 + $0x180] sm:$0xff]
        %v495 = vld [vmem:[%s288 + $0x188] sm:$0xff]
        %v496 = vld [vmem:[%s288 + $0x190] sm:$0xff]
        %v497 = vld [vmem:[%s288 + $0x198] sm:$0xff]
        %v498 = vld [vmem:[%s288 + $0x1a0] sm:$0xff]
        %v499 = vld [vmem:[%s288 + $0x1a8] sm:$0xff]
        %v500 = vld [vmem:[%s288 + $0x1b0] sm:$0xff]
        %v501 = vld [vmem:[%s288 + $0x1b8] sm:$0xff]
        %v502 = vld [vmem:[%s288 + $0x1c0] sm:$0xff]
        %v503 = vld [vmem:[%s288 + $0x1c8] sm:$0xff]
        %v504 = vld [vmem:[%s288 + $0x1d0] sm:$0xff]
        %v505 = vld [vmem:[%s288 + $0x1d8] sm:$0xff]
        %v506 = vld [vmem:[%s288 + $0x1e0] sm:$0xff]
        %v507 = vld [vmem:[%s288 + $0x1e8] sm:$0xff]
        %v508 = vld [vmem:[%s288 + $0x1f0] sm:$0xff]
        %v509 = vld [vmem:[%s288 + $0x1f8] sm:$0xff]
        %v510 = vld [vmem:[%s288 + $0x200] sm:$0xff]
        %v511 = vld [vmem:[%s288 + $0x208] sm:$0xff]
        %v512 = vld [vmem:[%s288 + $0x210] sm:$0xff]
        %v513 = vld [vmem:[%s288 + $0x218] sm:$0xff]
        %v514 = vld [vmem:[%s288 + $0x220] sm:$0xff]
        %v515 = vld [vmem:[%s288 + $0x228] sm:$0xff]
        %v516 = vld [vmem:[%s288 + $0x230] sm:$0xff]
        %v517 = vld [vmem:[%s288 + $0x238] sm:$0xff]
        %v518 = vld [vmem:[%s288 + $0x240] sm:$0xff]
        %v519 = vld [vmem:[%s288 + $0x248] sm:$0xff]
        %v520 = vld [vmem:[%s288 + $0x250] sm:$0xff]
        %v521 = vld [vmem:[%s288 + $0x258] sm:$0xff]
        %v522 = vld [vmem:[%s288 + $0x260] sm:$0xff]
        %v523 = vld [vmem:[%s288 + $0x268] sm:$0xff]
        %v524 = vld [vmem:[%s288 + $0x270] sm:$0xff]
        %v525 = vld [vmem:[%s288 + $0x278] sm:$0xff]
        %v526 = vld [vmem:[%s288 + $0x280] sm:$0xff]
        %v527 = vld [vmem:[%s288 + $0x288] sm:$0xff]
        %v528 = vld [vmem:[%s288 + $0x290] sm:$0xff]
        %v529 = vld [vmem:[%s288 + $0x298] sm:$0xff]
        %v530 = vld [vmem:[%s288 + $0x2a0] sm:$0xff]
        %v531 = vld [vmem:[%s288 + $0x2a8] sm:$0xff]
        %v532 = vld [vmem:[%s288 + $0x2b0] sm:$0xff]
        %v533 = vld [vmem:[%s288 + $0x2b8] sm:$0xff]
        %v534 = vld [vmem:[%s288 + $0x2c0] sm:$0xff]
        %v535 = vld [vmem:[%s288 + $0x2c8] sm:$0xff]
        %v536 = vld [vmem:[%s288 + $0x2d0] sm:$0xff]
        %v537 = vld [vmem:[%s288 + $0x2d8] sm:$0xff]
        %v538 = vld [vmem:[%s288 + $0x2e0] sm:$0xff]
        %v539 = vld [vmem:[%s288 + $0x2e8] sm:$0xff]
        %v540 = vld [vmem:[%s288 + $0x2f0] sm:$0xff]
        %v541 = vld [vmem:[%s288 + $0x2f8] sm:$0xff]
        %v542 = vld [vmem:[%s288 + $0x300] sm:$0xff]
        %v543 = vld [vmem:[%s288 + $0x308] sm:$0xff]
        %v544 = vld [vmem:[%s288 + $0x310] sm:$0xff]
        %v545 = vld [vmem:[%s288 + $0x318] sm:$0xff]
        %v546 = vadd.f32 %v346, %v446
        %v547 = vadd.f32 %v347, %v447
        %v548 = vadd.f32 %v348, %v448
        %v549 = vadd.f32 %v349, %v449
        %v550 = vadd.f32 %v350, %v450
        %v551 = vadd.f32 %v351, %v451
        %v552 = vadd.f32 %v352, %v452
        %v553 = vadd.f32 %v353, %v453
        %v554 = vadd.f32 %v354, %v454
        %v555 = vadd.f32 %v355, %v455
        %v556 = vadd.f32 %v356, %v456
        %v557 = vadd.f32 %v357, %v457
        %v558 = vadd.f32 %v358, %v458
        %v559 = vadd.f32 %v359, %v459
        %v560 = vadd.f32 %v360, %v460
        %v561 = vadd.f32 %v361, %v461
        %v562 = vadd.f32 %v362, %v462
        %v563 = vadd.f32 %v363, %v463
        %v564 = vadd.f32 %v364, %v464
        %v565 = vadd.f32 %v365, %v465
        %v566 = vadd.f32 %v366, %v466
        %v567 = vadd.f32 %v367, %v467
        %v568 = vadd.f32 %v368, %v468
        %v569 = vadd.f32 %v369, %v469
        %v570 = vadd.f32 %v370, %v470
        %v571 = vadd.f32 %v371, %v471
        %v572 = vadd.f32 %v372, %v472
        %v573 = vadd.f32 %v373, %v473
        %v574 = vadd.f32 %v374, %v474
        %v575 = vadd.f32 %v375, %v475
        %v576 = vadd.f32 %v376, %v476
        %v577 = vadd.f32 %v377, %v477
        %v578 = vadd.f32 %v378, %v478
        %v579 = vadd.f32 %v379, %v479
        %v580 = vadd.f32 %v380, %v480
        %v581 = vadd.f32 %v381, %v481
        %v582 = vadd.f32 %v382, %v482
        %v583 = vadd.f32 %v383, %v483
        %v584 = vadd.f32 %v384, %v484
        %v585 = vadd.f32 %v385, %v485
        %v586 = vadd.f32 %v386, %v486
        %v587 = vadd.f32 %v387, %v487
        %v588 = vadd.f32 %v388, %v488
        %v589 = vadd.f32 %v389, %v489
        %v590 = vadd.f32 %v390, %v490
        %v591 = vadd.f32 %v391, %v491
        %v592 = vadd.f32 %v392, %v492
        %v593 = vadd.f32 %v393, %v493
        %v594 = vadd.f32 %v394, %v494
        %v595 = vadd.f32 %v395, %v495
        %v596 = vadd.f32 %v396, %v496
        %v597 = vadd.f32 %v397, %v497
        %v598 = vadd.f32 %v398, %v498
        %v599 = vadd.f32 %v399, %v499
        %v600 = vadd.f32 %v400, %v500
        %v601 = vadd.f32 %v401, %v501
        %v602 = vadd.f32 %v402, %v502
        %v603 = vadd.f32 %v403, %v503
        %v604 = vadd.f32 %v404, %v504
        %v605 = vadd.f32 %v405, %v505
        %v606 = vadd.f32 %v406, %v506
        %v607 = vadd.f32 %v407, %v507
        %v608 = vadd.f32 %v408, %v508
        %v609 = vadd.f32 %v409, %v509
        %v610 = vadd.f32 %v410, %v510
        %v611 = vadd.f32 %v411, %v511
        %v612 = vadd.f32 %v412, %v512
        %v613 = vadd.f32 %v413, %v513
        %v614 = vadd.f32 %v414, %v514
        %v615 = vadd.f32 %v415, %v515
        %v616 = vadd.f32 %v416, %v516
        %v617 = vadd.f32 %v417, %v517
        %v618 = vadd.f32 %v418, %v518
        %v619 = vadd.f32 %v419, %v519
        %v620 = vadd.f32 %v420, %v520
        %v621 = vadd.f32 %v421, %v521
        %v622 = vadd.f32 %v422, %v522
        %v623 = vadd.f32 %v423, %v523
        %v624 = vadd.f32 %v424, %v524
        %v625 = vadd.f32 %v425, %v525
        %v626 = vadd.f32 %v426, %v526
        %v627 = vadd.f32 %v427, %v527
        %v628 = vadd.f32 %v428, %v528
        %v629 = vadd.f32 %v429, %v529
        %v630 = vadd.f32 %v430, %v530
        %v631 = vadd.f32 %v431, %v531
        %v632 = vadd.f32 %v432, %v532
        %v633 = vadd.f32 %v433, %v533
        %v634 = vadd.f32 %v434, %v534
        %v635 = vadd.f32 %v435, %v535
        %v636 = vadd.f32 %v436, %v536
        %v637 = vadd.f32 %v437, %v537
        %v638 = vadd.f32 %v438, %v538
        %v639 = vadd.f32 %v439, %v539
        %v640 = vadd.f32 %v440, %v540
        %v641 = vadd.f32 %v441, %v541
        %v642 = vadd.f32 %v442, %v542
        %v643 = vadd.f32 %v443, %v543
        %v644 = vadd.f32 %v444, %v544
        %v645 = vadd.f32 %v445, %v545
        %v646 = vpack.c.bf16 %v550, %v546
        %v647 = vpack.c.bf16 %v551, %v547
        %v648 = vpack.c.bf16 %v552, %v548
        %v649 = vpack.c.bf16 %v553, %v549
        %v650 = vpack.c.bf16 %v558, %v554
        %v651 = vpack.c.bf16 %v559, %v555
        %v652 = vpack.c.bf16 %v560, %v556
        %v653 = vpack.c.bf16 %v561, %v557
        %v654 = vpack.c.bf16 %v566, %v562
        %v655 = vpack.c.bf16 %v567, %v563
        %v656 = vpack.c.bf16 %v568, %v564
        %v657 = vpack.c.bf16 %v569, %v565
        %v658 = vpack.c.bf16 %v574, %v570
        %v659 = vpack.c.bf16 %v575, %v571
        %v660 = vpack.c.bf16 %v576, %v572
        %v661 = vpack.c.bf16 %v577, %v573
        %v662 = vpack.c.bf16 %v582, %v578
        %v663 = vpack.c.bf16 %v583, %v579
        %v664 = vpack.c.bf16 %v584, %v580
        %v665 = vpack.c.bf16 %v585, %v581
        %v666 = vpack.c.bf16 %v590, %v586
        %v667 = vpack.c.bf16 %v591, %v587
        %v668 = vpack.c.bf16 %v592, %v588
        %v669 = vpack.c.bf16 %v593, %v589
        %v670 = vpack.c.bf16 %v598, %v594
        %v671 = vpack.c.bf16 %v599, %v595
        %v672 = vpack.c.bf16 %v600, %v596
        %v673 = vpack.c.bf16 %v601, %v597
        %v674 = vpack.c.bf16 %v606, %v602
        %v675 = vpack.c.bf16 %v607, %v603
        %v676 = vpack.c.bf16 %v608, %v604
        %v677 = vpack.c.bf16 %v609, %v605
        %v678 = vpack.c.bf16 %v614, %v610
        %v679 = vpack.c.bf16 %v615, %v611
        %v680 = vpack.c.bf16 %v616, %v612
        %v681 = vpack.c.bf16 %v617, %v613
        %v682 = vpack.c.bf16 %v622, %v618
        %v683 = vpack.c.bf16 %v623, %v619
        %v684 = vpack.c.bf16 %v624, %v620
        %v685 = vpack.c.bf16 %v625, %v621
        %v686 = vpack.c.bf16 %v630, %v626
        %v687 = vpack.c.bf16 %v631, %v627
        %v688 = vpack.c.bf16 %v632, %v628
        %v689 = vpack.c.bf16 %v633, %v629
        %v690 = vpack.c.bf16 %v638, %v634
        %v691 = vpack.c.bf16 %v639, %v635
        %v692 = vpack.c.bf16 %v640, %v636
        %v693 = vpack.c.bf16 %v641, %v637
        %v694 = vpack.c.bf16 %v642, %v642
        %v695 = vpack.c.bf16 %v643, %v643
        %v696 = vpack.c.bf16 %v644, %v644
        %v697 = vpack.c.bf16 %v645, %v645
        %v698 = vmul.f32 %v346, %v446
        %v699 = vmul.f32 %v347, %v447
        %v700 = vmul.f32 %v348, %v448
        %v701 = vmul.f32 %v349, %v449
        %v702 = vmul.f32 %v350, %v450
        %v703 = vmul.f32 %v351, %v451
        %v704 = vmul.f32 %v352, %v452
        %v705 = vmul.f32 %v353, %v453
        %v706 = vmul.f32 %v354, %v454
        %v707 = vmul.f32 %v355, %v455
        %v708 = vmul.f32 %v356, %v456
        %v709 = vmul.f32 %v357, %v457
        %v710 = vmul.f32 %v358, %v458
        %v711 = vmul.f32 %v359, %v459
        %v712 = vmul.f32 %v360, %v460
        %v713 = vmul.f32 %v361, %v461
        %v714 = vmul.f32 %v362, %v462
        %v715 = vmul.f32 %v363, %v463
        %v716 = vmul.f32 %v364, %v464
        %v717 = vmul.f32 %v365, %v465
        %v718 = vmul.f32 %v366, %v466
        %v719 = vmul.f32 %v367, %v467
        %v720 = vmul.f32 %v368, %v468
        %v721 = vmul.f32 %v369, %v469
        %v722 = vmul.f32 %v370, %v470
        %v723 = vmul.f32 %v371, %v471
        %v724 = vmul.f32 %v372, %v472
        %v725 = vmul.f32 %v373, %v473
        %v726 = vmul.f32 %v374, %v474
        %v727 = vmul.f32 %v375, %v475
        %v728 = vmul.f32 %v376, %v476
        %v729 = vmul.f32 %v377, %v477
        %v730 = vmul.f32 %v378, %v478
        %v731 = vmul.f32 %v379, %v479
        %v732 = vmul.f32 %v380, %v480
        %v733 = vmul.f32 %v381, %v481
        %v734 = vmul.f32 %v382, %v482
        %v735 = vmul.f32 %v383, %v483
        %v736 = vmul.f32 %v384, %v484
        %v737 = vmul.f32 %v385, %v485
        %v738 = vmul.f32 %v386, %v486
        %v739 = vmul.f32 %v387, %v487
        %v740 = vmul.f32 %v388, %v488
        %v741 = vmul.f32 %v389, %v489
        %v742 = vmul.f32 %v390, %v490
        %v743 = vmul.f32 %v391, %v491
        %v744 = vmul.f32 %v392, %v492
        %v745 = vmul.f32 %v393, %v493
        %v746 = vmul.f32 %v394, %v494
        %v747 = vmul.f32 %v395, %v495
        %v748 = vmul.f32 %v396, %v496
        %v749 = vmul.f32 %v397, %v497
        %v750 = vmul.f32 %v398, %v498
        %v751 = vmul.f32 %v399, %v499
        %v752 = vmul.f32 %v400, %v500
        %v753 = vmul.f32 %v401, %v501
        %v754 = vmul.f32 %v402, %v502
        %v755 = vmul.f32 %v403, %v503
        %v756 = vmul.f32 %v404, %v504
        %v757 = vmul.f32 %v405, %v505
        %v758 = vmul.f32 %v406, %v506
        %v759 = vmul.f32 %v407, %v507
        %v760 = vmul.f32 %v408, %v508
        %v761 = vmul.f32 %v409, %v509
        %v762 = vmul.f32 %v410, %v510
        %v763 = vmul.f32 %v411, %v511
        %v764 = vmul.f32 %v412, %v512
        %v765 = vmul.f32 %v413, %v513
        %v766 = vmul.f32 %v414, %v514
        %v767 = vmul.f32 %v415, %v515
        %v768 = vmul.f32 %v416, %v516
        %v769 = vmul.f32 %v417, %v517
        %v770 = vmul.f32 %v418, %v518
        %v771 = vmul.f32 %v419, %v519
        %v772 = vmul.f32 %v420, %v520
        %v773 = vmul.f32 %v421, %v521
        %v774 = vmul.f32 %v422, %v522
        %v775 = vmul.f32 %v423, %v523
        %v776 = vmul.f32 %v424, %v524
        %v777 = vmul.f32 %v425, %v525
        %v778 = vmul.f32 %v426, %v526
        %v779 = vmul.f32 %v427, %v527
        %v780 = vmul.f32 %v428, %v528
        %v781 = vmul.f32 %v429, %v529
        %v782 = vmul.f32 %v430, %v530
        %v783 = vmul.f32 %v431, %v531
        %v784 = vmul.f32 %v432, %v532
        %v785 = vmul.f32 %v433, %v533
        %v786 = vmul.f32 %v434, %v534
        %v787 = vmul.f32 %v435, %v535
        %v788 = vmul.f32 %v436, %v536
        %v789 = vmul.f32 %v437, %v537
        %v790 = vmul.f32 %v438, %v538
        %v791 = vmul.f32 %v439, %v539
        %v792 = vmul.f32 %v440, %v540
        %v793 = vmul.f32 %v441, %v541
        %v794 = vmul.f32 %v442, %v542
        %v795 = vmul.f32 %v443, %v543
        %v796 = vmul.f32 %v444, %v544
        %v797 = vmul.f32 %v445, %v545
        %v798 = vpack.c.bf16 %v702, %v698
        %v799 = vpack.c.bf16 %v703, %v699
        %v800 = vpack.c.bf16 %v704, %v700
        %v801 = vpack.c.bf16 %v705, %v701
        %v802 = vpack.c.bf16 %v710, %v706
        %v803 = vpack.c.bf16 %v711, %v707
        %v804 = vpack.c.bf16 %v712, %v708
        %v805 = vpack.c.bf16 %v713, %v709
        %v806 = vpack.c.bf16 %v718, %v714
        %v807 = vpack.c.bf16 %v719, %v715
        %v808 = vpack.c.bf16 %v720, %v716
        %v809 = vpack.c.bf16 %v721, %v717
        %v810 = vpack.c.bf16 %v726, %v722
        %v811 = vpack.c.bf16 %v727, %v723
        %v812 = vpack.c.bf16 %v728, %v724
        %v813 = vpack.c.bf16 %v729, %v725
        %v814 = vpack.c.bf16 %v734, %v730
        %v815 = vpack.c.bf16 %v735, %v731
        %v816 = vpack.c.bf16 %v736, %v732
        %v817 = vpack.c.bf16 %v737, %v733
        %v818 = vpack.c.bf16 %v742, %v738
        %v819 = vpack.c.bf16 %v743, %v739
        %v820 = vpack.c.bf16 %v744, %v740
        %v821 = vpack.c.bf16 %v745, %v741
        %v822 = vpack.c.bf16 %v750, %v746
        %v823 = vpack.c.bf16 %v751, %v747
        %v824 = vpack.c.bf16 %v752, %v748
        %v825 = vpack.c.bf16 %v753, %v749
        %v826 = vpack.c.bf16 %v758, %v754
        %v827 = vpack.c.bf16 %v759, %v755
        %v828 = vpack.c.bf16 %v760, %v756
        %v829 = vpack.c.bf16 %v761, %v757
        %v830 = vpack.c.bf16 %v766, %v762
        %v831 = vpack.c.bf16 %v767, %v763
        %v832 = vpack.c.bf16 %v768, %v764
        %v833 = vpack.c.bf16 %v769, %v765
        %v834 = vpack.c.bf16 %v774, %v770
        %v835 = vpack.c.bf16 %v775, %v771
        %v836 = vpack.c.bf16 %v776, %v772
        %v837 = vpack.c.bf16 %v777, %v773
        %v838 = vpack.c.bf16 %v782, %v778
        %v839 = vpack.c.bf16 %v783, %v779
        %v840 = vpack.c.bf16 %v784, %v780
        %v841 = vpack.c.bf16 %v785, %v781
        %v842 = vpack.c.bf16 %v790, %v786
        %v843 = vpack.c.bf16 %v791, %v787
        %v844 = vpack.c.bf16 %v792, %v788
        %v845 = vpack.c.bf16 %v793, %v789
        %v846 = vpack.c.bf16 %v794, %v794
        %v847 = vpack.c.bf16 %v795, %v795
        %v848 = vpack.c.bf16 %v796, %v796
        %v849 = vpack.c.bf16 %v797, %v797
        %v850 = vld [vmem:[#allocation7] sm:$0xff]
        %v851 = vld [vmem:[#allocation7 + $0x8] sm:$0xff]
        %v852 = vld [vmem:[#allocation7 + $0x10] sm:$0xff]
        %v853 = vld [vmem:[#allocation7 + $0x18] sm:$0xff]
        %v854 = vld [vmem:[#allocation7 + $0x20] sm:$0xff]
        %v855 = vld [vmem:[#allocation7 + $0x28] sm:$0xff]
        %v856 = vld [vmem:[#allocation7 + $0x30] sm:$0xff]
        %v857 = vld [vmem:[#allocation7 + $0x38] sm:$0xff]
        %v858 = vld [vmem:[#allocation7 + $0x40] sm:$0xff]
        %v859 = vld [vmem:[#allocation7 + $0x48] sm:$0xff]
        %v860 = vld [vmem:[#allocation7 + $0x50] sm:$0xff]
        %v861 = vld [vmem:[#allocation7 + $0x58] sm:$0xff]
        %v862 = vld [vmem:[#allocation7 + $0x60] sm:$0xff]
        %v863 = vld [vmem:[#allocation7 + $0x68] sm:$0xff]
        %v864 = vld [vmem:[#allocation7 + $0x70] sm:$0xff]
        %v865 = vld [vmem:[#allocation7 + $0x78] sm:$0xff]
        %v866 = vld [vmem:[#allocation7 + $0x80] sm:$0xff]
        %v867 = vld [vmem:[#allocation7 + $0x88] sm:$0xff]
        %v868 = vld [vmem:[#allocation7 + $0x90] sm:$0xff]
        %v869 = vld [vmem:[#allocation7 + $0x98] sm:$0xff]
        %v870 = vld [vmem:[#allocation7 + $0xa0] sm:$0xff]
        %v871 = vld [vmem:[#allocation7 + $0xa8] sm:$0xff]
        %v872 = vld [vmem:[#allocation7 + $0xb0] sm:$0xff]
        %v873 = vld [vmem:[#allocation7 + $0xb8] sm:$0xff]
        %v874 = vld [vmem:[#allocation7 + $0xc0] sm:$0xff]
        %v875 = vld [vmem:[#allocation7 + $0xc8] sm:$0xff]
        %v876 = vld [vmem:[#allocation7 + $0xd0] sm:$0xff]
        %v877 = vld [vmem:[#allocation7 + $0xd8] sm:$0xff]
        %v878 = vld [vmem:[#allocation7 + $0xe0] sm:$0xff]
        %v879 = vld [vmem:[#allocation7 + $0xe8] sm:$0xff]
        %v880 = vld [vmem:[#allocation7 + $0xf0] sm:$0xff]
        %v881 = vld [vmem:[#allocation7 + $0xf8] sm:$0xff]
        %v882 = vld [vmem:[#allocation7 + $0x100] sm:$0xff]
        %v883 = vld [vmem:[#allocation7 + $0x108] sm:$0xff]
        %v884 = vld [vmem:[#allocation7 + $0x110] sm:$0xff]
        %v885 = vld [vmem:[#allocation7 + $0x118] sm:$0xff]
        %v886 = vld [vmem:[#allocation7 + $0x120] sm:$0xff]
        %v887 = vld [vmem:[#allocation7 + $0x128] sm:$0xff]
        %v888 = vld [vmem:[#allocation7 + $0x130] sm:$0xff]
        %v889 = vld [vmem:[#allocation7 + $0x138] sm:$0xff]
        %v890 = vld [vmem:[#allocation7 + $0x140] sm:$0xff]
        %v891 = vld [vmem:[#allocation7 + $0x148] sm:$0xff]
        %v892 = vld [vmem:[#allocation7 + $0x150] sm:$0xff]
        %v893 = vld [vmem:[#allocation7 + $0x158] sm:$0xff]
        %v894 = vld [vmem:[#allocation7 + $0x160] sm:$0xff]
        %v895 = vld [vmem:[#allocation7 + $0x168] sm:$0xff]
        %v896 = vld [vmem:[#allocation7 + $0x170] sm:$0xff]
        %v897 = vld [vmem:[#allocation7 + $0x178] sm:$0xff]
        %v898 = vld [vmem:[#allocation7 + $0x180] sm:$0xff]
        %v899 = vld [vmem:[#allocation7 + $0x188] sm:$0xff]
        %v900 = vld [vmem:[#allocation7 + $0x190] sm:$0xff]
        %v901 = vld [vmem:[#allocation7 + $0x198] sm:$0xff]
        %v902 = vld [vmem:[#allocation7 + $0x1a0] sm:$0xff]
        %v903 = vld [vmem:[#allocation7 + $0x1a8] sm:$0xff]
        %v904 = vld [vmem:[#allocation7 + $0x1b0] sm:$0xff]
        %v905 = vld [vmem:[#allocation7 + $0x1b8] sm:$0xff]
        %v906 = vld [vmem:[#allocation7 + $0x1c0] sm:$0xff]
        %v907 = vld [vmem:[#allocation7 + $0x1c8] sm:$0xff]
        %v908 = vld [vmem:[#allocation7 + $0x1d0] sm:$0xff]
        %v909 = vld [vmem:[#allocation7 + $0x1d8] sm:$0xff]
        %v910 = vld [vmem:[#allocation7 + $0x1e0] sm:$0xff]
        %v911 = vld [vmem:[#allocation7 + $0x1e8] sm:$0xff]
        %v912 = vld [vmem:[#allocation7 + $0x1f0] sm:$0xff]
        %v913 = vld [vmem:[#allocation7 + $0x1f8] sm:$0xff]
        %v914 = vld [vmem:[#allocation7 + $0x200] sm:$0xff]
        %v915 = vld [vmem:[#allocation7 + $0x208] sm:$0xff]
        %v916 = vld [vmem:[#allocation7 + $0x210] sm:$0xff]
        %v917 = vld [vmem:[#allocation7 + $0x218] sm:$0xff]
        %v918 = vld [vmem:[#allocation7 + $0x220] sm:$0xff]
        %v919 = vld [vmem:[#allocation7 + $0x228] sm:$0xff]
        %v920 = vld [vmem:[#allocation7 + $0x230] sm:$0xff]
        %v921 = vld [vmem:[#allocation7 + $0x238] sm:$0xff]
        %v922 = vld [vmem:[#allocation7 + $0x240] sm:$0xff]
        %v923 = vld [vmem:[#allocation7 + $0x248] sm:$0xff]
        %v924 = vld [vmem:[#allocation7 + $0x250] sm:$0xff]
        %v925 = vld [vmem:[#allocation7 + $0x258] sm:$0xff]
        %v926 = vld [vmem:[#allocation7 + $0x260] sm:$0xff]
        %v927 = vld [vmem:[#allocation7 + $0x268] sm:$0xff]
        %v928 = vld [vmem:[#allocation7 + $0x270] sm:$0xff]
        %v929 = vld [vmem:[#allocation7 + $0x278] sm:$0xff]
        %v930 = vld [vmem:[#allocation7 + $0x280] sm:$0xff]
        %v931 = vld [vmem:[#allocation7 + $0x288] sm:$0xff]
        %v932 = vld [vmem:[#allocation7 + $0x290] sm:$0xff]
        %v933 = vld [vmem:[#allocation7 + $0x298] sm:$0xff]
        %v934 = vld [vmem:[#allocation7 + $0x2a0] sm:$0xff]
        %v935 = vld [vmem:[#allocation7 + $0x2a8] sm:$0xff]
        %v936 = vld [vmem:[#allocation7 + $0x2b0] sm:$0xff]
        %v937 = vld [vmem:[#allocation7 + $0x2b8] sm:$0xff]
        %v938 = vld [vmem:[#allocation7 + $0x2c0] sm:$0xff]
        %v939 = vld [vmem:[#allocation7 + $0x2c8] sm:$0xff]
        %v940 = vld [vmem:[#allocation7 + $0x2d0] sm:$0xff]
        %v941 = vld [vmem:[#allocation7 + $0x2d8] sm:$0xff]
        %v942 = vld [vmem:[#allocation7 + $0x2e0] sm:$0xff]
        %v943 = vld [vmem:[#allocation7 + $0x2e8] sm:$0xff]
        %v944 = vld [vmem:[#allocation7 + $0x2f0] sm:$0xff]
        %v945 = vld [vmem:[#allocation7 + $0x2f8] sm:$0xff]
        %v946 = vld [vmem:[#allocation7 + $0x300] sm:$0xff]
        %v947 = vld [vmem:[#allocation7 + $0x308] sm:$0xff]
        %v948 = vld [vmem:[#allocation7 + $0x310] sm:$0xff]
        %v949 = vld [vmem:[#allocation7 + $0x318] sm:$0xff]
        %v950 = vld [vmem:[#allocation7 + $0x320] sm:$0xff]
        %v951 = vld [vmem:[#allocation7 + $0x328] sm:$0xff]
        %v952 = vld [vmem:[#allocation7 + $0x330] sm:$0xff]
        %v953 = vld [vmem:[#allocation7 + $0x338] sm:$0xff]
        %v954 = vld [vmem:[#allocation7 + $0x340] sm:$0xff]
        %v955 = vld [vmem:[#allocation7 + $0x348] sm:$0xff]
        %v956 = vld [vmem:[#allocation7 + $0x350] sm:$0xff]
        %v957 = vld [vmem:[#allocation7 + $0x358] sm:$0xff]
        %v958 = vld [vmem:[#allocation7 + $0x360] sm:$0xff]
        %v959 = vld [vmem:[#allocation7 + $0x368] sm:$0xff]
        %v960 = vld [vmem:[#allocation7 + $0x370] sm:$0xff]
        %v961 = vld [vmem:[#allocation7 + $0x378] sm:$0xff]
        %v962 = vld [vmem:[#allocation7 + $0x380] sm:$0xff]
        %v963 = vld [vmem:[#allocation7 + $0x388] sm:$0xff]
        %v964 = vld [vmem:[#allocation7 + $0x390] sm:$0xff]
        %v965 = vld [vmem:[#allocation7 + $0x398] sm:$0xff]
        %v966 = vld [vmem:[#allocation7 + $0x3a0] sm:$0xff]
        %v967 = vld [vmem:[#allocation7 + $0x3a8] sm:$0xff]
        %v968 = vld [vmem:[#allocation7 + $0x3b0] sm:$0xff]
        %v969 = vld [vmem:[#allocation7 + $0x3b8] sm:$0xff]
        %v970 = vld [vmem:[#allocation7 + $0x3c0] sm:$0xff]
        %v971 = vld [vmem:[#allocation7 + $0x3c8] sm:$0xff]
        %v972 = vld [vmem:[#allocation7 + $0x3d0] sm:$0xff]
        %v973 = vld [vmem:[#allocation7 + $0x3d8] sm:$0xff]
        %v974 = vld [vmem:[#allocation7 + $0x3e0] sm:$0xff]
        %v975 = vld [vmem:[#allocation7 + $0x3e8] sm:$0xff]
        %v976 = vld [vmem:[#allocation7 + $0x3f0] sm:$0xff]
        %v977 = vld [vmem:[#allocation7 + $0x3f8] sm:$0xff]
        %v978 = vld [vmem:[#allocation8] sm:$0xff]
        %v979 = vld [vmem:[#allocation8 + $0x8] sm:$0xff]
        %v980 = vld [vmem:[#allocation8 + $0x10] sm:$0xff]
        %v981 = vld [vmem:[#allocation8 + $0x18] sm:$0xff]
        %v982 = vld [vmem:[#allocation8 + $0x20] sm:$0xff]
        %v983 = vld [vmem:[#allocation8 + $0x28] sm:$0xff]
        %v984 = vld [vmem:[#allocation8 + $0x30] sm:$0xff]
        %v985 = vld [vmem:[#allocation8 + $0x38] sm:$0xff]
        %v986 = vld [vmem:[#allocation8 + $0x40] sm:$0xff]
        %v987 = vld [vmem:[#allocation8 + $0x48] sm:$0xff]
        %v988 = vld [vmem:[#allocation8 + $0x50] sm:$0xff]
        %v989 = vld [vmem:[#allocation8 + $0x58] sm:$0xff]
        %v990 = vld [vmem:[#allocation8 + $0x60] sm:$0xff]
        %v991 = vld [vmem:[#allocation8 + $0x68] sm:$0xff]
        %v992 = vld [vmem:[#allocation8 + $0x70] sm:$0xff]
        %v993 = vld [vmem:[#allocation8 + $0x78] sm:$0xff]
        %v994 = vld [vmem:[#allocation8 + $0x80] sm:$0xff]
        %v995 = vld [vmem:[#allocation8 + $0x88] sm:$0xff]
        %v996 = vld [vmem:[#allocation8 + $0x90] sm:$0xff]
        %v997 = vld [vmem:[#allocation8 + $0x98] sm:$0xff]
        %v998 = vld [vmem:[#allocation8 + $0xa0] sm:$0xff]
        %v999 = vld [vmem:[#allocation8 + $0xa8] sm:$0xff]
        %v1000 = vld [vmem:[#allocation8 + $0xb0] sm:$0xff]
        %v1001 = vld [vmem:[#allocation8 + $0xb8] sm:$0xff]
        %v1002 = vld [vmem:[#allocation8 + $0xc0] sm:$0xff]
        %v1003 = vld [vmem:[#allocation8 + $0xc8] sm:$0xff]
        %v1004 = vld [vmem:[#allocation8 + $0xd0] sm:$0xff]
        %v1005 = vld [vmem:[#allocation8 + $0xd8] sm:$0xff]
        %v1006 = vld [vmem:[#allocation8 + $0xe0] sm:$0xff]
        %v1007 = vld [vmem:[#allocation8 + $0xe8] sm:$0xff]
        %v1008 = vld [vmem:[#allocation8 + $0xf0] sm:$0xff]
        %v1009 = vld [vmem:[#allocation8 + $0xf8] sm:$0xff]
        %v1010 = vld [vmem:[#allocation8 + $0x100] sm:$0xff]
        %v1011 = vld [vmem:[#allocation8 + $0x108] sm:$0xff]
        %v1012 = vld [vmem:[#allocation8 + $0x110] sm:$0xff]
        %v1013 = vld [vmem:[#allocation8 + $0x118] sm:$0xff]
        %v1014 = vld [vmem:[#allocation8 + $0x120] sm:$0xff]
        %v1015 = vld [vmem:[#allocation8 + $0x128] sm:$0xff]
        %v1016 = vld [vmem:[#allocation8 + $0x130] sm:$0xff]
        %v1017 = vld [vmem:[#allocation8 + $0x138] sm:$0xff]
        %v1018 = vld [vmem:[#allocation8 + $0x140] sm:$0xff]
        %v1019 = vld [vmem:[#allocation8 + $0x148] sm:$0xff]
        %v1020 = vld [vmem:[#allocation8 + $0x150] sm:$0xff]
        %v1021 = vld [vmem:[#allocation8 + $0x158] sm:$0xff]
        %v1022 = vld [vmem:[#allocation8 + $0x160] sm:$0xff]
        %v1023 = vld [vmem:[#allocation8 + $0x168] sm:$0xff]
        %v1024 = vld [vmem:[#allocation8 + $0x170] sm:$0xff]
        %v1025 = vld [vmem:[#allocation8 + $0x178] sm:$0xff]
        %v1026 = vld [vmem:[#allocation8 + $0x180] sm:$0xff]
        %v1027 = vld [vmem:[#allocation8 + $0x188] sm:$0xff]
        %v1028 = vld [vmem:[#allocation8 + $0x190] sm:$0xff]
        %v1029 = vld [vmem:[#allocation8 + $0x198] sm:$0xff]
        %v1030 = vld [vmem:[#allocation8 + $0x1a0] sm:$0xff]
        %v1031 = vld [vmem:[#allocation8 + $0x1a8] sm:$0xff]
        %v1032 = vld [vmem:[#allocation8 + $0x1b0] sm:$0xff]
        %v1033 = vld [vmem:[#allocation8 + $0x1b8] sm:$0xff]
        %v1034 = vld [vmem:[#allocation8 + $0x1c0] sm:$0xff]
        %v1035 = vld [vmem:[#allocation8 + $0x1c8] sm:$0xff]
        %v1036 = vld [vmem:[#allocation8 + $0x1d0] sm:$0xff]
        %v1037 = vld [vmem:[#allocation8 + $0x1d8] sm:$0xff]
        %v1038 = vld [vmem:[#allocation8 + $0x1e0] sm:$0xff]
        %v1039 = vld [vmem:[#allocation8 + $0x1e8] sm:$0xff]
        %v1040 = vld [vmem:[#allocation8 + $0x1f0] sm:$0xff]
        %v1041 = vld [vmem:[#allocation8 + $0x1f8] sm:$0xff]
        %v1042 = vld [vmem:[#allocation8 + $0x200] sm:$0xff]
        %v1043 = vld [vmem:[#allocation8 + $0x208] sm:$0xff]
        %v1044 = vld [vmem:[#allocation8 + $0x210] sm:$0xff]
        %v1045 = vld [vmem:[#allocation8 + $0x218] sm:$0xff]
        %v1046 = vld [vmem:[#allocation8 + $0x220] sm:$0xff]
        %v1047 = vld [vmem:[#allocation8 + $0x228] sm:$0xff]
        %v1048 = vld [vmem:[#allocation8 + $0x230] sm:$0xff]
        %v1049 = vld [vmem:[#allocation8 + $0x238] sm:$0xff]
        %v1050 = vld [vmem:[#allocation8 + $0x240] sm:$0xff]
        %v1051 = vld [vmem:[#allocation8 + $0x248] sm:$0xff]
        %v1052 = vld [vmem:[#allocation8 + $0x250] sm:$0xff]
        %v1053 = vld [vmem:[#allocation8 + $0x258] sm:$0xff]
        %v1054 = vld [vmem:[#allocation8 + $0x260] sm:$0xff]
        %v1055 = vld [vmem:[#allocation8 + $0x268] sm:$0xff]
        %v1056 = vld [vmem:[#allocation8 + $0x270] sm:$0xff]
        %v1057 = vld [vmem:[#allocation8 + $0x278] sm:$0xff]
        %v1058 = vld [vmem:[#allocation8 + $0x280] sm:$0xff]
        %v1059 = vld [vmem:[#allocation8 + $0x288] sm:$0xff]
        %v1060 = vld [vmem:[#allocation8 + $0x290] sm:$0xff]
        %v1061 = vld [vmem:[#allocation8 + $0x298] sm:$0xff]
        %v1062 = vld [vmem:[#allocation8 + $0x2a0] sm:$0xff]
        %v1063 = vld [vmem:[#allocation8 + $0x2a8] sm:$0xff]
        %v1064 = vld [vmem:[#allocation8 + $0x2b0] sm:$0xff]
        %v1065 = vld [vmem:[#allocation8 + $0x2b8] sm:$0xff]
        %v1066 = vld [vmem:[#allocation8 + $0x2c0] sm:$0xff]
        %v1067 = vld [vmem:[#allocation8 + $0x2c8] sm:$0xff]
        %v1068 = vld [vmem:[#allocation8 + $0x2d0] sm:$0xff]
        %v1069 = vld [vmem:[#allocation8 + $0x2d8] sm:$0xff]
        %v1070 = vld [vmem:[#allocation8 + $0x2e0] sm:$0xff]
        %v1071 = vld [vmem:[#allocation8 + $0x2e8] sm:$0xff]
        %v1072 = vld [vmem:[#allocation8 + $0x2f0] sm:$0xff]
        %v1073 = vld [vmem:[#allocation8 + $0x2f8] sm:$0xff]
        %v1074 = vld [vmem:[#allocation8 + $0x300] sm:$0xff]
        %v1075 = vld [vmem:[#allocation8 + $0x308] sm:$0xff]
        %v1076 = vld [vmem:[#allocation8 + $0x310] sm:$0xff]
        %v1077 = vld [vmem:[#allocation8 + $0x318] sm:$0xff]
        %v1078 = vld [vmem:[#allocation8 + $0x320] sm:$0xff]
        %v1079 = vld [vmem:[#allocation8 + $0x328] sm:$0xff]
        %v1080 = vld [vmem:[#allocation8 + $0x330] sm:$0xff]
        %v1081 = vld [vmem:[#allocation8 + $0x338] sm:$0xff]
        %v1082 = vld [vmem:[#allocation8 + $0x340] sm:$0xff]
        %v1083 = vld [vmem:[#allocation8 + $0x348] sm:$0xff]
        %v1084 = vld [vmem:[#allocation8 + $0x350] sm:$0xff]
        %v1085 = vld [vmem:[#allocation8 + $0x358] sm:$0xff]
        %v1086 = vld [vmem:[#allocation8 + $0x360] sm:$0xff]
        %v1087 = vld [vmem:[#allocation8 + $0x368] sm:$0xff]
        %v1088 = vld [vmem:[#allocation8 + $0x370] sm:$0xff]
        %v1089 = vld [vmem:[#allocation8 + $0x378] sm:$0xff]
        %v1090 = vld [vmem:[#allocation8 + $0x380] sm:$0xff]
        %v1091 = vld [vmem:[#allocation8 + $0x388] sm:$0xff]
        %v1092 = vld [vmem:[#allocation8 + $0x390] sm:$0xff]
        %v1093 = vld [vmem:[#allocation8 + $0x398] sm:$0xff]
        %v1094 = vld [vmem:[#allocation8 + $0x3a0] sm:$0xff]
        %v1095 = vld [vmem:[#allocation8 + $0x3a8] sm:$0xff]
        %v1096 = vld [vmem:[#allocation8 + $0x3b0] sm:$0xff]
        %v1097 = vld [vmem:[#allocation8 + $0x3b8] sm:$0xff]
        %v1098 = vld [vmem:[#allocation8 + $0x3c0] sm:$0xff]
        %v1099 = vld [vmem:[#allocation8 + $0x3c8] sm:$0xff]
        %v1100 = vld [vmem:[#allocation8 + $0x3d0] sm:$0xff]
        %v1101 = vld [vmem:[#allocation8 + $0x3d8] sm:$0xff]
        %v1102 = vld [vmem:[#allocation8 + $0x3e0] sm:$0xff]
        %v1103 = vld [vmem:[#allocation8 + $0x3e8] sm:$0xff]
        %v1104 = vld [vmem:[#allocation8 + $0x3f0] sm:$0xff]
        %v1105 = vld [vmem:[#allocation8 + $0x3f8] sm:$0xff]
        %v1234 = vunpack.c.l.b16 %v978
        %v1235 = vunpack.c.h.b16 %v978
        %v1236 = vunpack.c.l.b16 %v979
        %v1237 = vunpack.c.h.b16 %v979
        %v1238 = vunpack.c.l.b16 %v980
        %v1239 = vunpack.c.h.b16 %v980
        %v1240 = vunpack.c.l.b16 %v981
        %v1241 = vunpack.c.h.b16 %v981
        %v1242 = vunpack.c.l.b16 %v982
        %v1243 = vunpack.c.h.b16 %v982
        %v1244 = vunpack.c.l.b16 %v983
        %v1245 = vunpack.c.h.b16 %v983
        %v1246 = vunpack.c.l.b16 %v984
        %v1247 = vunpack.c.h.b16 %v984
        %v1248 = vunpack.c.l.b16 %v985
        %v1249 = vunpack.c.h.b16 %v985
        %v1250 = vunpack.c.l.b16 %v986
        %v1251 = vunpack.c.h.b16 %v986
        %v1252 = vunpack.c.l.b16 %v987
        %v1253 = vunpack.c.h.b16 %v987
        %v1254 = vunpack.c.l.b16 %v988
        %v1255 = vunpack.c.h.b16 %v988
        %v1256 = vunpack.c.l.b16 %v989
        %v1257 = vunpack.c.h.b16 %v989
        %v1258 = vunpack.c.l.b16 %v990
        %v1259 = vunpack.c.h.b16 %v990
        %v1260 = vunpack.c.l.b16 %v991
        %v1261 = vunpack.c.h.b16 %v991
        %v1262 = vunpack.c.l.b16 %v992
        %v1263 = vunpack.c.h.b16 %v992
        %v1264 = vunpack.c.l.b16 %v993
        %v1265 = vunpack.c.h.b16 %v993
        %v1266 = vunpack.c.l.b16 %v994
        %v1267 = vunpack.c.h.b16 %v994
        %v1268 = vunpack.c.l.b16 %v995
        %v1269 = vunpack.c.h.b16 %v995
        %v1270 = vunpack.c.l.b16 %v996
        %v1271 = vunpack.c.h.b16 %v996
        %v1272 = vunpack.c.l.b16 %v997
        %v1273 = vunpack.c.h.b16 %v997
        %v1274 = vunpack.c.l.b16 %v998
        %v1275 = vunpack.c.h.b16 %v998
        %v1276 = vunpack.c.l.b16 %v999
        %v1277 = vunpack.c.h.b16 %v999
        %v1278 = vunpack.c.l.b16 %v1000
        %v1279 = vunpack.c.h.b16 %v1000
        %v1280 = vunpack.c.l.b16 %v1001
        %v1281 = vunpack.c.h.b16 %v1001
        %v1282 = vunpack.c.l.b16 %v1002
        %v1283 = vunpack.c.h.b16 %v1002
        %v1284 = vunpack.c.l.b16 %v1003
        %v1285 = vunpack.c.h.b16 %v1003
        %v1286 = vunpack.c.l.b16 %v1004
        %v1287 = vunpack.c.h.b16 %v1004
        %v1288 = vunpack.c.l.b16 %v1005
        %v1289 = vunpack.c.h.b16 %v1005
        %v1290 = vunpack.c.l.b16 %v1006
        %v1291 = vunpack.c.h.b16 %v1006
        %v1292 = vunpack.c.l.b16 %v1007
        %v1293 = vunpack.c.h.b16 %v1007
        %v1294 = vunpack.c.l.b16 %v1008
        %v1295 = vunpack.c.h.b16 %v1008
        %v1296 = vunpack.c.l.b16 %v1009
        %v1297 = vunpack.c.h.b16 %v1009
        %v1298 = vunpack.c.l.b16 %v1010
        %v1299 = vunpack.c.h.b16 %v1010
        %v1300 = vunpack.c.l.b16 %v1011
        %v1301 = vunpack.c.h.b16 %v1011
        %v1302 = vunpack.c.l.b16 %v1012
        %v1303 = vunpack.c.h.b16 %v1012
        %v1304 = vunpack.c.l.b16 %v1013
        %v1305 = vunpack.c.h.b16 %v1013
        %v1306 = vunpack.c.l.b16 %v1014
        %v1307 = vunpack.c.h.b16 %v1014
        %v1308 = vunpack.c.l.b16 %v1015
        %v1309 = vunpack.c.h.b16 %v1015
        %v1310 = vunpack.c.l.b16 %v1016
        %v1311 = vunpack.c.h.b16 %v1016
        %v1312 = vunpack.c.l.b16 %v1017
        %v1313 = vunpack.c.h.b16 %v1017
        %v1314 = vunpack.c.l.b16 %v1018
        %v1315 = vunpack.c.h.b16 %v1018
        %v1316 = vunpack.c.l.b16 %v1019
        %v1317 = vunpack.c.h.b16 %v1019
        %v1318 = vunpack.c.l.b16 %v1020
        %v1319 = vunpack.c.h.b16 %v1020
        %v1320 = vunpack.c.l.b16 %v1021
        %v1321 = vunpack.c.h.b16 %v1021
        %v1322 = vunpack.c.l.b16 %v1022
        %v1323 = vunpack.c.h.b16 %v1022
        %v1324 = vunpack.c.l.b16 %v1023
        %v1325 = vunpack.c.h.b16 %v1023
        %v1326 = vunpack.c.l.b16 %v1024
        %v1327 = vunpack.c.h.b16 %v1024
        %v1328 = vunpack.c.l.b16 %v1025
        %v1329 = vunpack.c.h.b16 %v1025
        %v1330 = vunpack.c.l.b16 %v1026
        %v1331 = vunpack.c.h.b16 %v1026
        %v1332 = vunpack.c.l.b16 %v1027
        %v1333 = vunpack.c.h.b16 %v1027
        %v1334 = vunpack.c.l.b16 %v1028
        %v1335 = vunpack.c.h.b16 %v1028
        %v1336 = vunpack.c.l.b16 %v1029
        %v1337 = vunpack.c.h.b16 %v1029
        %v1338 = vunpack.c.l.b16 %v1030
        %v1339 = vunpack.c.h.b16 %v1030
        %v1340 = vunpack.c.l.b16 %v1031
        %v1341 = vunpack.c.h.b16 %v1031
        %v1342 = vunpack.c.l.b16 %v1032
        %v1343 = vunpack.c.h.b16 %v1032
        %v1344 = vunpack.c.l.b16 %v1033
        %v1345 = vunpack.c.h.b16 %v1033
        %v1346 = vunpack.c.l.b16 %v1034
        %v1347 = vunpack.c.h.b16 %v1034
        %v1348 = vunpack.c.l.b16 %v1035
        %v1349 = vunpack.c.h.b16 %v1035
        %v1350 = vunpack.c.l.b16 %v1036
        %v1351 = vunpack.c.h.b16 %v1036
        %v1352 = vunpack.c.l.b16 %v1037
        %v1353 = vunpack.c.h.b16 %v1037
        %v1354 = vunpack.c.l.b16 %v1038
        %v1355 = vunpack.c.h.b16 %v1038
        %v1356 = vunpack.c.l.b16 %v1039
        %v1357 = vunpack.c.h.b16 %v1039
        %v1358 = vunpack.c.l.b16 %v1040
        %v1359 = vunpack.c.h.b16 %v1040
        %v1360 = vunpack.c.l.b16 %v1041
        %v1361 = vunpack.c.h.b16 %v1041
        %v1362 = vunpack.c.l.b16 %v1042
        %v1363 = vunpack.c.h.b16 %v1042
        %v1364 = vunpack.c.l.b16 %v1043
        %v1365 = vunpack.c.h.b16 %v1043
        %v1366 = vunpack.c.l.b16 %v1044
        %v1367 = vunpack.c.h.b16 %v1044
        %v1368 = vunpack.c.l.b16 %v1045
        %v1369 = vunpack.c.h.b16 %v1045
        %v1370 = vunpack.c.l.b16 %v1046
        %v1371 = vunpack.c.h.b16 %v1046
        %v1372 = vunpack.c.l.b16 %v1047
        %v1373 = vunpack.c.h.b16 %v1047
        %v1374 = vunpack.c.l.b16 %v1048
        %v1375 = vunpack.c.h.b16 %v1048
        %v1376 = vunpack.c.l.b16 %v1049
        %v1377 = vunpack.c.h.b16 %v1049
        %v1378 = vunpack.c.l.b16 %v1050
        %v1379 = vunpack.c.h.b16 %v1050
        %v1380 = vunpack.c.l.b16 %v1051
        %v1381 = vunpack.c.h.b16 %v1051
        %v1382 = vunpack.c.l.b16 %v1052
        %v1383 = vunpack.c.h.b16 %v1052
        %v1384 = vunpack.c.l.b16 %v1053
        %v1385 = vunpack.c.h.b16 %v1053
        %v1386 = vunpack.c.l.b16 %v1054
        %v1387 = vunpack.c.h.b16 %v1054
        %v1388 = vunpack.c.l.b16 %v1055
        %v1389 = vunpack.c.h.b16 %v1055
        %v1390 = vunpack.c.l.b16 %v1056
        %v1391 = vunpack.c.h.b16 %v1056
        %v1392 = vunpack.c.l.b16 %v1057
        %v1393 = vunpack.c.h.b16 %v1057
        %v1394 = vunpack.c.l.b16 %v1058
        %v1395 = vunpack.c.h.b16 %v1058
        %v1396 = vunpack.c.l.b16 %v1059
        %v1397 = vunpack.c.h.b16 %v1059
        %v1398 = vunpack.c.l.b16 %v1060
        %v1399 = vunpack.c.h.b16 %v1060
        %v1400 = vunpack.c.l.b16 %v1061
        %v1401 = vunpack.c.h.b16 %v1061
        %v1402 = vunpack.c.l.b16 %v1062
        %v1403 = vunpack.c.h.b16 %v1062
        %v1404 = vunpack.c.l.b16 %v1063
        %v1405 = vunpack.c.h.b16 %v1063
        %v1406 = vunpack.c.l.b16 %v1064
        %v1407 = vunpack.c.h.b16 %v1064
        %v1408 = vunpack.c.l.b16 %v1065
        %v1409 = vunpack.c.h.b16 %v1065
        %v1410 = vunpack.c.l.b16 %v1066
        %v1411 = vunpack.c.h.b16 %v1066
        %v1412 = vunpack.c.l.b16 %v1067
        %v1413 = vunpack.c.h.b16 %v1067
        %v1414 = vunpack.c.l.b16 %v1068
        %v1415 = vunpack.c.h.b16 %v1068
        %v1416 = vunpack.c.l.b16 %v1069
        %v1417 = vunpack.c.h.b16 %v1069
        %v1418 = vunpack.c.l.b16 %v1070
        %v1419 = vunpack.c.h.b16 %v1070
        %v1420 = vunpack.c.l.b16 %v1071
        %v1421 = vunpack.c.h.b16 %v1071
        %v1422 = vunpack.c.l.b16 %v1072
        %v1423 = vunpack.c.h.b16 %v1072
        %v1424 = vunpack.c.l.b16 %v1073
        %v1425 = vunpack.c.h.b16 %v1073
        %v1426 = vunpack.c.l.b16 %v1074
        %v1427 = vunpack.c.h.b16 %v1074
        %v1428 = vunpack.c.l.b16 %v1075
        %v1429 = vunpack.c.h.b16 %v1075
        %v1430 = vunpack.c.l.b16 %v1076
        %v1431 = vunpack.c.h.b16 %v1076
        %v1432 = vunpack.c.l.b16 %v1077
        %v1433 = vunpack.c.h.b16 %v1077
        %v1434 = vunpack.c.l.b16 %v1078
        %v1435 = vunpack.c.h.b16 %v1078
        %v1436 = vunpack.c.l.b16 %v1079
        %v1437 = vunpack.c.h.b16 %v1079
        %v1438 = vunpack.c.l.b16 %v1080
        %v1439 = vunpack.c.h.b16 %v1080
        %v1440 = vunpack.c.l.b16 %v1081
        %v1441 = vunpack.c.h.b16 %v1081
        %v1442 = vunpack.c.l.b16 %v1082
        %v1443 = vunpack.c.h.b16 %v1082
        %v1444 = vunpack.c.l.b16 %v1083
        %v1445 = vunpack.c.h.b16 %v1083
        %v1446 = vunpack.c.l.b16 %v1084
        %v1447 = vunpack.c.h.b16 %v1084
        %v1448 = vunpack.c.l.b16 %v1085
        %v1449 = vunpack.c.h.b16 %v1085
        %v1450 = vunpack.c.l.b16 %v1086
        %v1451 = vunpack.c.h.b16 %v1086
        %v1452 = vunpack.c.l.b16 %v1087
        %v1453 = vunpack.c.h.b16 %v1087
        %v1454 = vunpack.c.l.b16 %v1088
        %v1455 = vunpack.c.h.b16 %v1088
        %v1456 = vunpack.c.l.b16 %v1089
        %v1457 = vunpack.c.h.b16 %v1089
        %v1458 = vunpack.c.l.b16 %v1090
        %v1459 = vunpack.c.h.b16 %v1090
        %v1460 = vunpack.c.l.b16 %v1091
        %v1461 = vunpack.c.h.b16 %v1091
        %v1462 = vunpack.c.l.b16 %v1092
        %v1463 = vunpack.c.h.b16 %v1092
        %v1464 = vunpack.c.l.b16 %v1093
        %v1465 = vunpack.c.h.b16 %v1093
        %v1466 = vunpack.c.l.b16 %v1094
        %v1467 = vunpack.c.h.b16 %v1094
        %v1468 = vunpack.c.l.b16 %v1095
        %v1469 = vunpack.c.h.b16 %v1095
        %v1470 = vunpack.c.l.b16 %v1096
        %v1471 = vunpack.c.h.b16 %v1096
        %v1472 = vunpack.c.l.b16 %v1097
        %v1473 = vunpack.c.h.b16 %v1097
        %v1474 = vunpack.c.l.b16 %v1098
        %v1475 = vunpack.c.h.b16 %v1098
        %v1476 = vunpack.c.l.b16 %v1099
        %v1477 = vunpack.c.h.b16 %v1099
        %v1478 = vunpack.c.l.b16 %v1100
        %v1479 = vunpack.c.h.b16 %v1100
        %v1480 = vunpack.c.l.b16 %v1101
        %v1481 = vunpack.c.h.b16 %v1101
        %v1482 = vunpack.c.l.b16 %v1102
        %v1483 = vunpack.c.h.b16 %v1102
        %v1484 = vunpack.c.l.b16 %v1103
        %v1485 = vunpack.c.h.b16 %v1103
        %v1486 = vunpack.c.l.b16 %v1104
        %v1487 = vunpack.c.h.b16 %v1104
        %v1488 = vunpack.c.l.b16 %v1105
        %v1489 = vunpack.c.h.b16 %v1105
        %v1490 = vpack.c.b16 %v1238, %v1234
        %v1491 = vpack.c.b16 %v1239, %v1235
        %v1492 = vpack.c.b16 %v1240, %v1236
        %v1493 = vpack.c.b16 %v1241, %v1237
        %v1494 = vpack.c.b16 %v1246, %v1242
        %v1495 = vpack.c.b16 %v1247, %v1243
        %v1496 = vpack.c.b16 %v1248, %v1244
        %v1497 = vpack.c.b16 %v1249, %v1245
        %v1498 = vpack.c.b16 %v1254, %v1250
        %v1499 = vpack.c.b16 %v1255, %v1251
        %v1500 = vpack.c.b16 %v1256, %v1252
        %v1501 = vpack.c.b16 %v1257, %v1253
        %v1502 = vpack.c.b16 %v1262, %v1258
        %v1503 = vpack.c.b16 %v1263, %v1259
        %v1504 = vpack.c.b16 %v1264, %v1260
        %v1505 = vpack.c.b16 %v1265, %v1261
        %v1506 = vpack.c.b16 %v1270, %v1266
        %v1507 = vpack.c.b16 %v1271, %v1267
        %v1508 = vpack.c.b16 %v1272, %v1268
        %v1509 = vpack.c.b16 %v1273, %v1269
        %v1510 = vpack.c.b16 %v1278, %v1274
        %v1511 = vpack.c.b16 %v1279, %v1275
        %v1512 = vpack.c.b16 %v1280, %v1276
        %v1513 = vpack.c.b16 %v1281, %v1277
        %v1514 = vpack.c.b16 %v1286, %v1282
        %v1515 = vpack.c.b16 %v1287, %v1283
        %v1516 = vpack.c.b16 %v1288, %v1284
        %v1517 = vpack.c.b16 %v1289, %v1285
        %v1518 = vpack.c.b16 %v1294, %v1290
        %v1519 = vpack.c.b16 %v1295, %v1291
        %v1520 = vpack.c.b16 %v1296, %v1292
        %v1521 = vpack.c.b16 %v1297, %v1293
        %v1522 = vpack.c.b16 %v1302, %v1298
        %v1523 = vpack.c.b16 %v1303, %v1299
        %v1524 = vpack.c.b16 %v1304, %v1300
        %v1525 = vpack.c.b16 %v1305, %v1301
        %v1526 = vpack.c.b16 %v1310, %v1306
        %v1527 = vpack.c.b16 %v1311, %v1307
        %v1528 = vpack.c.b16 %v1312, %v1308
        %v1529 = vpack.c.b16 %v1313, %v1309
        %v1530 = vpack.c.b16 %v1318, %v1314
        %v1531 = vpack.c.b16 %v1319, %v1315
        %v1532 = vpack.c.b16 %v1320, %v1316
        %v1533 = vpack.c.b16 %v1321, %v1317
        %v1534 = vpack.c.b16 %v1326, %v1322
        %v1535 = vpack.c.b16 %v1327, %v1323
        %v1536 = vpack.c.b16 %v1328, %v1324
        %v1537 = vpack.c.b16 %v1329, %v1325
        %v1538 = vpack.c.b16 %v1334, %v1330
        %v1539 = vpack.c.b16 %v1335, %v1331
        %v1540 = vpack.c.b16 %v1336, %v1332
        %v1541 = vpack.c.b16 %v1337, %v1333
        %v1542 = vpack.c.b16 %v1342, %v1338
        %v1543 = vpack.c.b16 %v1343, %v1339
        %v1544 = vpack.c.b16 %v1344, %v1340
        %v1545 = vpack.c.b16 %v1345, %v1341
        %v1546 = vpack.c.b16 %v1350, %v1346
        %v1547 = vpack.c.b16 %v1351, %v1347
        %v1548 = vpack.c.b16 %v1352, %v1348
        %v1549 = vpack.c.b16 %v1353, %v1349
        %v1550 = vpack.c.b16 %v1358, %v1354
        %v1551 = vpack.c.b16 %v1359, %v1355
        %v1552 = vpack.c.b16 %v1360, %v1356
        %v1553 = vpack.c.b16 %v1361, %v1357
        %v1554 = vpack.c.b16 %v1366, %v1362
        %v1555 = vpack.c.b16 %v1367, %v1363
        %v1556 = vpack.c.b16 %v1368, %v1364
        %v1557 = vpack.c.b16 %v1369, %v1365
        %v1558 = vpack.c.b16 %v1374, %v1370
        %v1559 = vpack.c.b16 %v1375, %v1371
        %v1560 = vpack.c.b16 %v1376, %v1372
        %v1561 = vpack.c.b16 %v1377, %v1373
        %v1562 = vpack.c.b16 %v1382, %v1378
        %v1563 = vpack.c.b16 %v1383, %v1379
        %v1564 = vpack.c.b16 %v1384, %v1380
        %v1565 = vpack.c.b16 %v1385, %v1381
        %v1566 = vpack.c.b16 %v1390, %v1386
        %v1567 = vpack.c.b16 %v1391, %v1387
        %v1568 = vpack.c.b16 %v1392, %v1388
        %v1569 = vpack.c.b16 %v1393, %v1389
        %v1570 = vpack.c.b16 %v1398, %v1394
        %v1571 = vpack.c.b16 %v1399, %v1395
        %v1572 = vpack.c.b16 %v1400, %v1396
        %v1573 = vpack.c.b16 %v1401, %v1397
        %v1574 = vpack.c.b16 %v1406, %v1402
        %v1575 = vpack.c.b16 %v1407, %v1403
        %v1576 = vpack.c.b16 %v1408, %v1404
        %v1577 = vpack.c.b16 %v1409, %v1405
        %v1578 = vpack.c.b16 %v1414, %v1410
        %v1579 = vpack.c.b16 %v1415, %v1411
        %v1580 = vpack.c.b16 %v1416, %v1412
        %v1581 = vpack.c.b16 %v1417, %v1413
        %v1582 = vpack.c.b16 %v1422, %v1418
        %v1583 = vpack.c.b16 %v1423, %v1419
        %v1584 = vpack.c.b16 %v1424, %v1420
        %v1585 = vpack.c.b16 %v1425, %v1421
        %v1586 = vpack.c.b16 %v1430, %v1426
        %v1587 = vpack.c.b16 %v1431, %v1427
        %v1588 = vpack.c.b16 %v1432, %v1428
        %v1589 = vpack.c.b16 %v1433, %v1429
        %v1590 = vpack.c.b16 %v1438, %v1434
        %v1591 = vpack.c.b16 %v1439, %v1435
        %v1592 = vpack.c.b16 %v1440, %v1436
        %v1593 = vpack.c.b16 %v1441, %v1437
        %v1594 = vpack.c.b16 %v1446, %v1442
        %v1595 = vpack.c.b16 %v1447, %v1443
        %v1596 = vpack.c.b16 %v1448, %v1444
        %v1597 = vpack.c.b16 %v1449, %v1445
        %v1598 = vpack.c.b16 %v1454, %v1450
        %v1599 = vpack.c.b16 %v1455, %v1451
        %v1600 = vpack.c.b16 %v1456, %v1452
        %v1601 = vpack.c.b16 %v1457, %v1453
        %v1602 = vpack.c.b16 %v1462, %v1458
        %v1603 = vpack.c.b16 %v1463, %v1459
        %v1604 = vpack.c.b16 %v1464, %v1460
        %v1605 = vpack.c.b16 %v1465, %v1461
        %v1606 = vpack.c.b16 %v1470, %v1466
        %v1607 = vpack.c.b16 %v1471, %v1467
        %v1608 = vpack.c.b16 %v1472, %v1468
        %v1609 = vpack.c.b16 %v1473, %v1469
        %v1610 = vpack.c.b16 %v1478, %v1474
        %v1611 = vpack.c.b16 %v1479, %v1475
        %v1612 = vpack.c.b16 %v1480, %v1476
        %v1613 = vpack.c.b16 %v1481, %v1477
        %v1614 = vpack.c.b16 %v1486, %v1482
        %v1615 = vpack.c.b16 %v1487, %v1483
        %v1616 = vpack.c.b16 %v1488, %v1484
        %v1617 = vpack.c.b16 %v1489, %v1485
        %1746 = vmatprep.subr.bf16.mxu0 %v1519
        %1747 = vmatpush1.bf16.msra.mxu0 %v1518
        %1748 = vmatprep.subr.bf16.mxu0 %v1515
        %1749 = vmatpush1.bf16.msra.mxu0 %v1514
        %1750 = vmatprep.subr.bf16.mxu0 %v1511
        %1751 = vmatpush1.bf16.msra.mxu0 %v1510
        %1752 = vmatprep.subr.bf16.mxu0 %v1507
        %1753 = vmatpush1.bf16.msra.mxu0 %v1506
        %1754 = vmatprep.subr.bf16.mxu0 %v1503
        %1755 = vmatpush1.bf16.msra.mxu0 %v1502
        %1756 = vmatprep.subr.bf16.mxu0 %v1499
        %1757 = vmatpush1.bf16.msra.mxu0 %v1498
        %1758 = vmatprep.subr.bf16.mxu0 %v1495
        %1759 = vmatpush1.bf16.msra.mxu0 %v1494
        %1760 = vmatprep.subr.bf16.mxu0 %v1491
        %1761 = vmatpush1.bf16.msra.mxu0 %v1490
        %1762 = vmatprep.subr.bf16.mxu0 %v1551
        %1763 = vmatpush2.bf16.msra.mxu0 %v1550
        %1764 = vmatprep.subr.bf16.mxu0 %v1547
        %1765 = vmatpush2.bf16.msra.mxu0 %v1546
        %1766 = vmatprep.subr.bf16.mxu0 %v1543
        %1767 = vmatpush2.bf16.msra.mxu0 %v1542
        %1768 = vmatprep.subr.bf16.mxu0 %v1539
        %1769 = vmatpush2.bf16.msra.mxu0 %v1538
        %1770 = vmatprep.subr.bf16.mxu0 %v1535
        %1771 = vmatpush2.bf16.msra.mxu0 %v1534
        %1772 = vmatprep.subr.bf16.mxu0 %v1531
        %1773 = vmatpush2.bf16.msra.mxu0 %v1530
        %1774 = vmatprep.subr.bf16.mxu0 %v1527
        %1775 = vmatpush2.bf16.msra.mxu0 %v1526
        %1776 = vmatprep.subr.bf16.mxu0 %v1523
        %1777 = vmatpush2.bf16.msra.mxu0 %v1522
        %1778 = vmatprep.mubr.bf16.mxu0 %v799
        %1779 = vmatmul.mubr.bf16.gmra.mxu0 %v798
        %v1780 = vpop.f32.mrf.mxu0
        %v1781 = vadd.f32 0.0, %v1780
        %v1782 = vpop.f32.mrf.mxu0
        %v1783 = vadd.f32 0.0, %v1782
        %v1784 = vpop.f32.mrf.mxu0
        %v1785 = vadd.f32 0.0, %v1784
        %v1786 = vpop.f32.mrf.mxu0
        %v1787 = vadd.f32 0.0, %v1786
        %1788 = vmatprep.mubr.bf16.mxu0 %v803
        %1789 = vmatmul.mubr.bf16.gmra.mxu0 %v802
        %v1790 = vpop.f32.mrf.mxu0
        %v1791 = vadd.f32 0.0, %v1790
        %v1792 = vpop.f32.mrf.mxu0
        %v1793 = vadd.f32 0.0, %v1792
        %v1794 = vpop.f32.mrf.mxu0
        %v1795 = vadd.f32 0.0, %v1794
        %v1796 = vpop.f32.mrf.mxu0
        %v1797 = vadd.f32 0.0, %v1796
        %1798 = vmatprep.mubr.bf16.mxu0 %v807
        %1799 = vmatmul.mubr.bf16.gmra.mxu0 %v806
        %v1800 = vpop.f32.mrf.mxu0
        %v1801 = vadd.f32 0.0, %v1800
        %v1802 = vpop.f32.mrf.mxu0
        %v1803 = vadd.f32 0.0, %v1802
        %v1804 = vpop.f32.mrf.mxu0
        %v1805 = vadd.f32 0.0, %v1804
        %v1806 = vpop.f32.mrf.mxu0
        %v1807 = vadd.f32 0.0, %v1806
        %1808 = vmatprep.mubr.bf16.mxu0 %v811
        %1809 = vmatmul.mubr.bf16.gmra.mxu0 %v810
        %v1810 = vpop.f32.mrf.mxu0
        %v1811 = vadd.f32 0.0, %v1810
        %v1812 = vpop.f32.mrf.mxu0
        %v1813 = vadd.f32 0.0, %v1812
        %v1814 = vpop.f32.mrf.mxu0
        %v1815 = vadd.f32 0.0, %v1814
        %v1816 = vpop.f32.mrf.mxu0
        %v1817 = vadd.f32 0.0, %v1816
        %1818 = vmatprep.mubr.bf16.mxu0 %v815
        %1819 = vmatmul.mubr.bf16.gmra.mxu0 %v814
        %v1820 = vpop.f32.mrf.mxu0
        %v1821 = vadd.f32 0.0, %v1820
        %v1822 = vpop.f32.mrf.mxu0
        %v1823 = vadd.f32 0.0, %v1822
        %v1824 = vpop.f32.mrf.mxu0
        %v1825 = vadd.f32 0.0, %v1824
        %v1826 = vpop.f32.mrf.mxu0
        %v1827 = vadd.f32 0.0, %v1826
        %1828 = vmatprep.mubr.bf16.mxu0 %v819
        %1829 = vmatmul.mubr.bf16.gmra.mxu0 %v818
        %v1830 = vpop.f32.mrf.mxu0
        %v1831 = vadd.f32 0.0, %v1830
        %v1832 = vpop.f32.mrf.mxu0
        %v1833 = vadd.f32 0.0, %v1832
        %v1834 = vpop.f32.mrf.mxu0
        %v1835 = vadd.f32 0.0, %v1834
        %v1836 = vpop.f32.mrf.mxu0
        %v1837 = vadd.f32 0.0, %v1836
        %1838 = vmatprep.mubr.bf16.mxu0 %v823
        %1839 = vmatmul.mubr.bf16.gmra.mxu0 %v822
        %v1840 = vpop.f32.mrf.mxu0
        %v1841 = vadd.f32 0.0, %v1840
        %v1842 = vpop.f32.mrf.mxu0
        %v1843 = vadd.f32 0.0, %v1842
        %v1844 = vpop.f32.mrf.mxu0
        %v1845 = vadd.f32 0.0, %v1844
        %v1846 = vpop.f32.mrf.mxu0
        %v1847 = vadd.f32 0.0, %v1846
        %1848 = vmatprep.mubr.bf16.mxu0 %v827
        %1849 = vmatmul.mubr.bf16.gmra.mxu0 %v826
        %v1850 = vpop.f32.mrf.mxu0
        %v1851 = vadd.f32 0.0, %v1850
        %v1852 = vpop.f32.mrf.mxu0
        %v1853 = vadd.f32 0.0, %v1852
        %v1854 = vpop.f32.mrf.mxu0
        %v1855 = vadd.f32 0.0, %v1854
        %v1856 = vpop.f32.mrf.mxu0
        %v1857 = vadd.f32 0.0, %v1856
        %1858 = vmatprep.mubr.bf16.mxu0 %v831
        %1859 = vmatmul.mubr.bf16.gmra.mxu0 %v830
        %v1860 = vpop.f32.mrf.mxu0
        %v1861 = vadd.f32 0.0, %v1860
        %v1862 = vpop.f32.mrf.mxu0
        %v1863 = vadd.f32 0.0, %v1862
        %v1864 = vpop.f32.mrf.mxu0
        %v1865 = vadd.f32 0.0, %v1864
        %v1866 = vpop.f32.mrf.mxu0
        %v1867 = vadd.f32 0.0, %v1866
        %1868 = vmatprep.mubr.bf16.mxu0 %v835
        %1869 = vmatmul.mubr.bf16.gmra.mxu0 %v834
        %v1870 = vpop.f32.mrf.mxu0
        %v1871 = vadd.f32 0.0, %v1870
        %v1872 = vpop.f32.mrf.mxu0
        %v1873 = vadd.f32 0.0, %v1872
        %v1874 = vpop.f32.mrf.mxu0
        %v1875 = vadd.f32 0.0, %v1874
        %v1876 = vpop.f32.mrf.mxu0
        %v1877 = vadd.f32 0.0, %v1876
        %1878 = vmatprep.mubr.bf16.mxu0 %v839
        %1879 = vmatmul.mubr.bf16.gmra.mxu0 %v838
        %v1880 = vpop.f32.mrf.mxu0
        %v1881 = vadd.f32 0.0, %v1880
        %v1882 = vpop.f32.mrf.mxu0
        %v1883 = vadd.f32 0.0, %v1882
        %v1884 = vpop.f32.mrf.mxu0
        %v1885 = vadd.f32 0.0, %v1884
        %v1886 = vpop.f32.mrf.mxu0
        %v1887 = vadd.f32 0.0, %v1886
        %1888 = vmatprep.mubr.bf16.mxu0 %v843
        %1889 = vmatmul.mubr.bf16.gmra.mxu0 %v842
        %v1890 = vpop.f32.mrf.mxu0
        %v1891 = vadd.f32 0.0, %v1890
        %v1892 = vpop.f32.mrf.mxu0
        %v1893 = vadd.f32 0.0, %v1892
        %v1894 = vpop.f32.mrf.mxu0
        %v1895 = vadd.f32 0.0, %v1894
        %v1896 = vpop.f32.mrf.mxu0
        %v1897 = vadd.f32 0.0, %v1896
        %1898 = vmatprep.mubr.bf16.mxu0 %v847
        %1899 = vmatmul.mubr.bf16.gmra.mxu0 %v846
        %v1900 = vpop.f32.mrf.mxu0
        %v1901 = vadd.f32 0.0, %v1900
        %v1902 = vpop.f32.mrf.mxu0
        %v1903 = vadd.f32 0.0, %v1902
        %v1904 = vpop.f32.mrf.mxu0
        %v1905 = vpop.f32.mrf.mxu0
        %1906 = vdwg.mxu0
        %1907 = vmatprep.subr.bf16.mxu0 %v1583
        %1908 = vmatpush1.bf16.msra.mxu0 %v1582
        %1909 = vmatprep.subr.bf16.mxu0 %v1579
        %1910 = vmatpush1.bf16.msra.mxu0 %v1578
        %1911 = vmatprep.subr.bf16.mxu0 %v1575
        %1912 = vmatpush1.bf16.msra.mxu0 %v1574
        %1913 = vmatprep.subr.bf16.mxu0 %v1571
        %1914 = vmatpush1.bf16.msra.mxu0 %v1570
        %1915 = vmatprep.subr.bf16.mxu0 %v1567
        %1916 = vmatpush1.bf16.msra.mxu0 %v1566
        %1917 = vmatprep.subr.bf16.mxu0 %v1563
        %1918 = vmatpush1.bf16.msra.mxu0 %v1562
        %1919 = vmatprep.subr.bf16.mxu0 %v1559
        %1920 = vmatpush1.bf16.msra.mxu0 %v1558
        %1921 = vmatprep.subr.bf16.mxu0 %v1555
        %1922 = vmatpush1.bf16.msra.mxu0 %v1554
        %1923 = vmatprep.subr.bf16.mxu0 %v1615
        %1924 = vmatpush2.bf16.msra.mxu0 %v1614
        %1925 = vmatprep.subr.bf16.mxu0 %v1611
        %1926 = vmatpush2.bf16.msra.mxu0 %v1610
        %1927 = vmatprep.subr.bf16.mxu0 %v1607
        %1928 = vmatpush2.bf16.msra.mxu0 %v1606
        %1929 = vmatprep.subr.bf16.mxu0 %v1603
        %1930 = vmatpush2.bf16.msra.mxu0 %v1602
        %1931 = vmatprep.subr.bf16.mxu0 %v1599
        %1932 = vmatpush2.bf16.msra.mxu0 %v1598
        %1933 = vmatprep.subr.bf16.mxu0 %v1595
        %1934 = vmatpush2.bf16.msra.mxu0 %v1594
        %1935 = vmatprep.subr.bf16.mxu0 %v1591
        %1936 = vmatpush2.bf16.msra.mxu0 %v1590
        %1937 = vmatprep.subr.bf16.mxu0 %v1587
        %1938 = vmatpush2.bf16.msra.mxu0 %v1586
        %1939 = vmatprep.mubr.bf16.mxu0 %v801
        %1940 = vmatmul.mubr.bf16.gmra.mxu0 %v800
        %v1941 = vpop.f32.mrf.mxu0
        %v1942 = vadd.f32 %v1781, %v1941
        %v1943 = vpop.f32.mrf.mxu0
        %v1944 = vadd.f32 %v1783, %v1943
        %v1945 = vpop.f32.mrf.mxu0
        %v1946 = vadd.f32 %v1785, %v1945
        %v1947 = vpop.f32.mrf.mxu0
        %v1948 = vadd.f32 %v1787, %v1947
        %1949 = vmatprep.mubr.bf16.mxu0 %v805
        %1950 = vmatmul.mubr.bf16.gmra.mxu0 %v804
        %v1951 = vpop.f32.mrf.mxu0
        %v1952 = vadd.f32 %v1791, %v1951
        %v1953 = vpop.f32.mrf.mxu0
        %v1954 = vadd.f32 %v1793, %v1953
        %v1955 = vpop.f32.mrf.mxu0
        %v1956 = vadd.f32 %v1795, %v1955
        %v1957 = vpop.f32.mrf.mxu0
        %v1958 = vadd.f32 %v1797, %v1957
        %1959 = vmatprep.mubr.bf16.mxu0 %v809
        %1960 = vmatmul.mubr.bf16.gmra.mxu0 %v808
        %v1961 = vpop.f32.mrf.mxu0
        %v1962 = vadd.f32 %v1801, %v1961
        %v1963 = vpop.f32.mrf.mxu0
        %v1964 = vadd.f32 %v1803, %v1963
        %v1965 = vpop.f32.mrf.mxu0
        %v1966 = vadd.f32 %v1805, %v1965
        %v1967 = vpop.f32.mrf.mxu0
        %v1968 = vadd.f32 %v1807, %v1967
        %1969 = vmatprep.mubr.bf16.mxu0 %v813
        %1970 = vmatmul.mubr.bf16.gmra.mxu0 %v812
        %v1971 = vpop.f32.mrf.mxu0
        %v1972 = vadd.f32 %v1811, %v1971
        %v1973 = vpop.f32.mrf.mxu0
        %v1974 = vadd.f32 %v1813, %v1973
        %v1975 = vpop.f32.mrf.mxu0
        %v1976 = vadd.f32 %v1815, %v1975
        %v1977 = vpop.f32.mrf.mxu0
        %v1978 = vadd.f32 %v1817, %v1977
        %1979 = vmatprep.mubr.bf16.mxu0 %v817
        %1980 = vmatmul.mubr.bf16.gmra.mxu0 %v816
        %v1981 = vpop.f32.mrf.mxu0
        %v1982 = vadd.f32 %v1821, %v1981
        %v1983 = vpop.f32.mrf.mxu0
        %v1984 = vadd.f32 %v1823, %v1983
        %v1985 = vpop.f32.mrf.mxu0
        %v1986 = vadd.f32 %v1825, %v1985
        %v1987 = vpop.f32.mrf.mxu0
        %v1988 = vadd.f32 %v1827, %v1987
        %1989 = vmatprep.mubr.bf16.mxu0 %v821
        %1990 = vmatmul.mubr.bf16.gmra.mxu0 %v820
        %v1991 = vpop.f32.mrf.mxu0
        %v1992 = vadd.f32 %v1831, %v1991
        %v1993 = vpop.f32.mrf.mxu0
        %v1994 = vadd.f32 %v1833, %v1993
        %v1995 = vpop.f32.mrf.mxu0
        %v1996 = vadd.f32 %v1835, %v1995
        %v1997 = vpop.f32.mrf.mxu0
        %v1998 = vadd.f32 %v1837, %v1997
        %1999 = vmatprep.mubr.bf16.mxu0 %v825
        %2000 = vmatmul.mubr.bf16.gmra.mxu0 %v824
        %v2001 = vpop.f32.mrf.mxu0
        %v2002 = vadd.f32 %v1841, %v2001
        %v2003 = vpop.f32.mrf.mxu0
        %v2004 = vadd.f32 %v1843, %v2003
        %v2005 = vpop.f32.mrf.mxu0
        %v2006 = vadd.f32 %v1845, %v2005
        %v2007 = vpop.f32.mrf.mxu0
        %v2008 = vadd.f32 %v1847, %v2007
        %2009 = vmatprep.mubr.bf16.mxu0 %v829
        %2010 = vmatmul.mubr.bf16.gmra.mxu0 %v828
        %v2011 = vpop.f32.mrf.mxu0
        %v2012 = vadd.f32 %v1851, %v2011
        %v2013 = vpop.f32.mrf.mxu0
        %v2014 = vadd.f32 %v1853, %v2013
        %v2015 = vpop.f32.mrf.mxu0
        %v2016 = vadd.f32 %v1855, %v2015
        %v2017 = vpop.f32.mrf.mxu0
        %v2018 = vadd.f32 %v1857, %v2017
        %2019 = vmatprep.mubr.bf16.mxu0 %v833
        %2020 = vmatmul.mubr.bf16.gmra.mxu0 %v832
        %v2021 = vpop.f32.mrf.mxu0
        %v2022 = vadd.f32 %v1861, %v2021
        %v2023 = vpop.f32.mrf.mxu0
        %v2024 = vadd.f32 %v1863, %v2023
        %v2025 = vpop.f32.mrf.mxu0
        %v2026 = vadd.f32 %v1865, %v2025
        %v2027 = vpop.f32.mrf.mxu0
        %v2028 = vadd.f32 %v1867, %v2027
        %2029 = vmatprep.mubr.bf16.mxu0 %v837
        %2030 = vmatmul.mubr.bf16.gmra.mxu0 %v836
        %v2031 = vpop.f32.mrf.mxu0
        %v2032 = vadd.f32 %v1871, %v2031
        %v2033 = vpop.f32.mrf.mxu0
        %v2034 = vadd.f32 %v1873, %v2033
        %v2035 = vpop.f32.mrf.mxu0
        %v2036 = vadd.f32 %v1875, %v2035
        %v2037 = vpop.f32.mrf.mxu0
        %v2038 = vadd.f32 %v1877, %v2037
        %2039 = vmatprep.mubr.bf16.mxu0 %v841
        %2040 = vmatmul.mubr.bf16.gmra.mxu0 %v840
        %v2041 = vpop.f32.mrf.mxu0
        %v2042 = vadd.f32 %v1881, %v2041
        %v2043 = vpop.f32.mrf.mxu0
        %v2044 = vadd.f32 %v1883, %v2043
        %v2045 = vpop.f32.mrf.mxu0
        %v2046 = vadd.f32 %v1885, %v2045
        %v2047 = vpop.f32.mrf.mxu0
        %v2048 = vadd.f32 %v1887, %v2047
        %2049 = vmatprep.mubr.bf16.mxu0 %v845
        %2050 = vmatmul.mubr.bf16.gmra.mxu0 %v844
        %v2051 = vpop.f32.mrf.mxu0
        %v2052 = vadd.f32 %v1891, %v2051
        %v2053 = vpop.f32.mrf.mxu0
        %v2054 = vadd.f32 %v1893, %v2053
        %v2055 = vpop.f32.mrf.mxu0
        %v2056 = vadd.f32 %v1895, %v2055
        %v2057 = vpop.f32.mrf.mxu0
        %v2058 = vadd.f32 %v1897, %v2057
        %2059 = vmatprep.mubr.bf16.mxu0 %v849
        %2060 = vmatmul.mubr.bf16.gmra.mxu0 %v848
        %v2061 = vpop.f32.mrf.mxu0
        %v2062 = vadd.f32 %v1901, %v2061
        %v2063 = vpop.f32.mrf.mxu0
        %v2064 = vadd.f32 %v1903, %v2063
        %v2065 = vpop.f32.mrf.mxu0
        %v2066 = vpop.f32.mrf.mxu0
        %2067 = vdwg.mxu0
        %2068 = vmatprep.subr.bf16.mxu0 %v1521
        %2069 = vmatpush1.bf16.msra.mxu0 %v1520
        %2070 = vmatprep.subr.bf16.mxu0 %v1517
        %2071 = vmatpush1.bf16.msra.mxu0 %v1516
        %2072 = vmatprep.subr.bf16.mxu0 %v1513
        %2073 = vmatpush1.bf16.msra.mxu0 %v1512
        %2074 = vmatprep.subr.bf16.mxu0 %v1509
        %2075 = vmatpush1.bf16.msra.mxu0 %v1508
        %2076 = vmatprep.subr.bf16.mxu0 %v1505
        %2077 = vmatpush1.bf16.msra.mxu0 %v1504
        %2078 = vmatprep.subr.bf16.mxu0 %v1501
        %2079 = vmatpush1.bf16.msra.mxu0 %v1500
        %2080 = vmatprep.subr.bf16.mxu0 %v1497
        %2081 = vmatpush1.bf16.msra.mxu0 %v1496
        %2082 = vmatprep.subr.bf16.mxu0 %v1493
        %2083 = vmatpush1.bf16.msra.mxu0 %v1492
        %2084 = vmatprep.subr.bf16.mxu0 %v1553
        %2085 = vmatpush2.bf16.msra.mxu0 %v1552
        %2086 = vmatprep.subr.bf16.mxu0 %v1549
        %2087 = vmatpush2.bf16.msra.mxu0 %v1548
        %2088 = vmatprep.subr.bf16.mxu0 %v1545
        %2089 = vmatpush2.bf16.msra.mxu0 %v1544
        %2090 = vmatprep.subr.bf16.mxu0 %v1541
        %2091 = vmatpush2.bf16.msra.mxu0 %v1540
        %2092 = vmatprep.subr.bf16.mxu0 %v1537
        %2093 = vmatpush2.bf16.msra.mxu0 %v1536
        %2094 = vmatprep.subr.bf16.mxu0 %v1533
        %2095 = vmatpush2.bf16.msra.mxu0 %v1532
        %2096 = vmatprep.subr.bf16.mxu0 %v1529
        %2097 = vmatpush2.bf16.msra.mxu0 %v1528
        %2098 = vmatprep.subr.bf16.mxu0 %v1525
        %2099 = vmatpush2.bf16.msra.mxu0 %v1524
        %2100 = vmatprep.mubr.bf16.mxu0 %v799
        %2101 = vmatmul.mubr.bf16.gmra.mxu0 %v798
        %v2102 = vpop.f32.mrf.mxu0
        %v2103 = vadd.f32 0.0, %v2102
        %v2104 = vpop.f32.mrf.mxu0
        %v2105 = vadd.f32 0.0, %v2104
        %v2106 = vpop.f32.mrf.mxu0
        %v2107 = vadd.f32 0.0, %v2106
        %v2108 = vpop.f32.mrf.mxu0
        %v2109 = vadd.f32 0.0, %v2108
        %2110 = vmatprep.mubr.bf16.mxu0 %v803
        %2111 = vmatmul.mubr.bf16.gmra.mxu0 %v802
        %v2112 = vpop.f32.mrf.mxu0
        %v2113 = vadd.f32 0.0, %v2112
        %v2114 = vpop.f32.mrf.mxu0
        %v2115 = vadd.f32 0.0, %v2114
        %v2116 = vpop.f32.mrf.mxu0
        %v2117 = vadd.f32 0.0, %v2116
        %v2118 = vpop.f32.mrf.mxu0
        %v2119 = vadd.f32 0.0, %v2118
        %2120 = vmatprep.mubr.bf16.mxu0 %v807
        %2121 = vmatmul.mubr.bf16.gmra.mxu0 %v806
        %v2122 = vpop.f32.mrf.mxu0
        %v2123 = vadd.f32 0.0, %v2122
        %v2124 = vpop.f32.mrf.mxu0
        %v2125 = vadd.f32 0.0, %v2124
        %v2126 = vpop.f32.mrf.mxu0
        %v2127 = vadd.f32 0.0, %v2126
        %v2128 = vpop.f32.mrf.mxu0
        %v2129 = vadd.f32 0.0, %v2128
        %2130 = vmatprep.mubr.bf16.mxu0 %v811
        %2131 = vmatmul.mubr.bf16.gmra.mxu0 %v810
        %v2132 = vpop.f32.mrf.mxu0
        %v2133 = vadd.f32 0.0, %v2132
        %v2134 = vpop.f32.mrf.mxu0
        %v2135 = vadd.f32 0.0, %v2134
        %v2136 = vpop.f32.mrf.mxu0
        %v2137 = vadd.f32 0.0, %v2136
        %v2138 = vpop.f32.mrf.mxu0
        %v2139 = vadd.f32 0.0, %v2138
        %2140 = vmatprep.mubr.bf16.mxu0 %v815
        %2141 = vmatmul.mubr.bf16.gmra.mxu0 %v814
        %v2142 = vpop.f32.mrf.mxu0
        %v2143 = vadd.f32 0.0, %v2142
        %v2144 = vpop.f32.mrf.mxu0
        %v2145 = vadd.f32 0.0, %v2144
        %v2146 = vpop.f32.mrf.mxu0
        %v2147 = vadd.f32 0.0, %v2146
        %v2148 = vpop.f32.mrf.mxu0
        %v2149 = vadd.f32 0.0, %v2148
        %2150 = vmatprep.mubr.bf16.mxu0 %v819
        %2151 = vmatmul.mubr.bf16.gmra.mxu0 %v818
        %v2152 = vpop.f32.mrf.mxu0
        %v2153 = vadd.f32 0.0, %v2152
        %v2154 = vpop.f32.mrf.mxu0
        %v2155 = vadd.f32 0.0, %v2154
        %v2156 = vpop.f32.mrf.mxu0
        %v2157 = vadd.f32 0.0, %v2156
        %v2158 = vpop.f32.mrf.mxu0
        %v2159 = vadd.f32 0.0, %v2158
        %2160 = vmatprep.mubr.bf16.mxu0 %v823
        %2161 = vmatmul.mubr.bf16.gmra.mxu0 %v822
        %v2162 = vpop.f32.mrf.mxu0
        %v2163 = vadd.f32 0.0, %v2162
        %v2164 = vpop.f32.mrf.mxu0
        %v2165 = vadd.f32 0.0, %v2164
        %v2166 = vpop.f32.mrf.mxu0
        %v2167 = vadd.f32 0.0, %v2166
        %v2168 = vpop.f32.mrf.mxu0
        %v2169 = vadd.f32 0.0, %v2168
        %2170 = vmatprep.mubr.bf16.mxu0 %v827
        %2171 = vmatmul.mubr.bf16.gmra.mxu0 %v826
        %v2172 = vpop.f32.mrf.mxu0
        %v2173 = vadd.f32 0.0, %v2172
        %v2174 = vpop.f32.mrf.mxu0
        %v2175 = vadd.f32 0.0, %v2174
        %v2176 = vpop.f32.mrf.mxu0
        %v2177 = vadd.f32 0.0, %v2176
        %v2178 = vpop.f32.mrf.mxu0
        %v2179 = vadd.f32 0.0, %v2178
        %2180 = vmatprep.mubr.bf16.mxu0 %v831
        %2181 = vmatmul.mubr.bf16.gmra.mxu0 %v830
        %v2182 = vpop.f32.mrf.mxu0
        %v2183 = vadd.f32 0.0, %v2182
        %v2184 = vpop.f32.mrf.mxu0
        %v2185 = vadd.f32 0.0, %v2184
        %v2186 = vpop.f32.mrf.mxu0
        %v2187 = vadd.f32 0.0, %v2186
        %v2188 = vpop.f32.mrf.mxu0
        %v2189 = vadd.f32 0.0, %v2188
        %2190 = vmatprep.mubr.bf16.mxu0 %v835
        %2191 = vmatmul.mubr.bf16.gmra.mxu0 %v834
        %v2192 = vpop.f32.mrf.mxu0
        %v2193 = vadd.f32 0.0, %v2192
        %v2194 = vpop.f32.mrf.mxu0
        %v2195 = vadd.f32 0.0, %v2194
        %v2196 = vpop.f32.mrf.mxu0
        %v2197 = vadd.f32 0.0, %v2196
        %v2198 = vpop.f32.mrf.mxu0
        %v2199 = vadd.f32 0.0, %v2198
        %2200 = vmatprep.mubr.bf16.mxu0 %v839
        %2201 = vmatmul.mubr.bf16.gmra.mxu0 %v838
        %v2202 = vpop.f32.mrf.mxu0
        %v2203 = vadd.f32 0.0, %v2202
        %v2204 = vpop.f32.mrf.mxu0
        %v2205 = vadd.f32 0.0, %v2204
        %v2206 = vpop.f32.mrf.mxu0
        %v2207 = vadd.f32 0.0, %v2206
        %v2208 = vpop.f32.mrf.mxu0
        %v2209 = vadd.f32 0.0, %v2208
        %2210 = vmatprep.mubr.bf16.mxu0 %v843
        %2211 = vmatmul.mubr.bf16.gmra.mxu0 %v842
        %v2212 = vpop.f32.mrf.mxu0
        %v2213 = vadd.f32 0.0, %v2212
        %v2214 = vpop.f32.mrf.mxu0
        %v2215 = vadd.f32 0.0, %v2214
        %v2216 = vpop.f32.mrf.mxu0
        %v2217 = vadd.f32 0.0, %v2216
        %v2218 = vpop.f32.mrf.mxu0
        %v2219 = vadd.f32 0.0, %v2218
        %2220 = vmatprep.mubr.bf16.mxu0 %v847
        %2221 = vmatmul.mubr.bf16.gmra.mxu0 %v846
        %v2222 = vpop.f32.mrf.mxu0
        %v2223 = vadd.f32 0.0, %v2222
        %v2224 = vpop.f32.mrf.mxu0
        %v2225 = vadd.f32 0.0, %v2224
        %v2226 = vpop.f32.mrf.mxu0
        %v2227 = vpop.f32.mrf.mxu0
        %2228 = vdwg.mxu0
        %2229 = vmatprep.subr.bf16.mxu0 %v1585
        %2230 = vmatpush1.bf16.msra.mxu0 %v1584
        %2231 = vmatprep.subr.bf16.mxu0 %v1581
        %2232 = vmatpush1.bf16.msra.mxu0 %v1580
        %2233 = vmatprep.subr.bf16.mxu0 %v1577
        %2234 = vmatpush1.bf16.msra.mxu0 %v1576
        %2235 = vmatprep.subr.bf16.mxu0 %v1573
        %2236 = vmatpush1.bf16.msra.mxu0 %v1572
        %2237 = vmatprep.subr.bf16.mxu0 %v1569
        %2238 = vmatpush1.bf16.msra.mxu0 %v1568
        %2239 = vmatprep.subr.bf16.mxu0 %v1565
        %2240 = vmatpush1.bf16.msra.mxu0 %v1564
        %2241 = vmatprep.subr.bf16.mxu0 %v1561
        %2242 = vmatpush1.bf16.msra.mxu0 %v1560
        %2243 = vmatprep.subr.bf16.mxu0 %v1557
        %2244 = vmatpush1.bf16.msra.mxu0 %v1556
        %2245 = vmatprep.subr.bf16.mxu0 %v1617
        %2246 = vmatpush2.bf16.msra.mxu0 %v1616
        %2247 = vmatprep.subr.bf16.mxu0 %v1613
        %2248 = vmatpush2.bf16.msra.mxu0 %v1612
        %2249 = vmatprep.subr.bf16.mxu0 %v1609
        %2250 = vmatpush2.bf16.msra.mxu0 %v1608
        %2251 = vmatprep.subr.bf16.mxu0 %v1605
        %2252 = vmatpush2.bf16.msra.mxu0 %v1604
        %2253 = vmatprep.subr.bf16.mxu0 %v1601
        %2254 = vmatpush2.bf16.msra.mxu0 %v1600
        %2255 = vmatprep.subr.bf16.mxu0 %v1597
        %2256 = vmatpush2.bf16.msra.mxu0 %v1596
        %2257 = vmatprep.subr.bf16.mxu0 %v1593
        %2258 = vmatpush2.bf16.msra.mxu0 %v1592
        %2259 = vmatprep.subr.bf16.mxu0 %v1589
        %2260 = vmatpush2.bf16.msra.mxu0 %v1588
        %2261 = vmatprep.mubr.bf16.mxu0 %v801
        %2262 = vmatmul.mubr.bf16.gmra.mxu0 %v800
        %v2263 = vpop.f32.mrf.mxu0
        %v2264 = vadd.f32 %v2103, %v2263
        %v2265 = vpop.f32.mrf.mxu0
        %v2266 = vadd.f32 %v2105, %v2265
        %v2267 = vpop.f32.mrf.mxu0
        %v2268 = vadd.f32 %v2107, %v2267
        %v2269 = vpop.f32.mrf.mxu0
        %v2270 = vadd.f32 %v2109, %v2269
        %2271 = vmatprep.mubr.bf16.mxu0 %v805
        %2272 = vmatmul.mubr.bf16.gmra.mxu0 %v804
        %v2273 = vpop.f32.mrf.mxu0
        %v2274 = vadd.f32 %v2113, %v2273
        %v2275 = vpop.f32.mrf.mxu0
        %v2276 = vadd.f32 %v2115, %v2275
        %v2277 = vpop.f32.mrf.mxu0
        %v2278 = vadd.f32 %v2117, %v2277
        %v2279 = vpop.f32.mrf.mxu0
        %v2280 = vadd.f32 %v2119, %v2279
        %2281 = vmatprep.mubr.bf16.mxu0 %v809
        %2282 = vmatmul.mubr.bf16.gmra.mxu0 %v808
        %v2283 = vpop.f32.mrf.mxu0
        %v2284 = vadd.f32 %v2123, %v2283
        %v2285 = vpop.f32.mrf.mxu0
        %v2286 = vadd.f32 %v2125, %v2285
        %v2287 = vpop.f32.mrf.mxu0
        %v2288 = vadd.f32 %v2127, %v2287
        %v2289 = vpop.f32.mrf.mxu0
        %v2290 = vadd.f32 %v2129, %v2289
        %2291 = vmatprep.mubr.bf16.mxu0 %v813
        %2292 = vmatmul.mubr.bf16.gmra.mxu0 %v812
        %v2293 = vpop.f32.mrf.mxu0
        %v2294 = vadd.f32 %v2133, %v2293
        %v2295 = vpop.f32.mrf.mxu0
        %v2296 = vadd.f32 %v2135, %v2295
        %v2297 = vpop.f32.mrf.mxu0
        %v2298 = vadd.f32 %v2137, %v2297
        %v2299 = vpop.f32.mrf.mxu0
        %v2300 = vadd.f32 %v2139, %v2299
        %2301 = vmatprep.mubr.bf16.mxu0 %v817
        %2302 = vmatmul.mubr.bf16.gmra.mxu0 %v816
        %v2303 = vpop.f32.mrf.mxu0
        %v2304 = vadd.f32 %v2143, %v2303
        %v2305 = vpop.f32.mrf.mxu0
        %v2306 = vadd.f32 %v2145, %v2305
        %v2307 = vpop.f32.mrf.mxu0
        %v2308 = vadd.f32 %v2147, %v2307
        %v2309 = vpop.f32.mrf.mxu0
        %v2310 = vadd.f32 %v2149, %v2309
        %2311 = vmatprep.mubr.bf16.mxu0 %v821
        %2312 = vmatmul.mubr.bf16.gmra.mxu0 %v820
        %v2313 = vpop.f32.mrf.mxu0
        %v2314 = vadd.f32 %v2153, %v2313
        %v2315 = vpop.f32.mrf.mxu0
        %v2316 = vadd.f32 %v2155, %v2315
        %v2317 = vpop.f32.mrf.mxu0
        %v2318 = vadd.f32 %v2157, %v2317
        %v2319 = vpop.f32.mrf.mxu0
        %v2320 = vadd.f32 %v2159, %v2319
        %2321 = vmatprep.mubr.bf16.mxu0 %v825
        %2322 = vmatmul.mubr.bf16.gmra.mxu0 %v824
        %v2323 = vpop.f32.mrf.mxu0
        %v2324 = vadd.f32 %v2163, %v2323
        %v2325 = vpop.f32.mrf.mxu0
        %v2326 = vadd.f32 %v2165, %v2325
        %v2327 = vpop.f32.mrf.mxu0
        %v2328 = vadd.f32 %v2167, %v2327
        %v2329 = vpop.f32.mrf.mxu0
        %v2330 = vadd.f32 %v2169, %v2329
        %2331 = vmatprep.mubr.bf16.mxu0 %v829
        %2332 = vmatmul.mubr.bf16.gmra.mxu0 %v828
        %v2333 = vpop.f32.mrf.mxu0
        %v2334 = vadd.f32 %v2173, %v2333
        %v2335 = vpop.f32.mrf.mxu0
        %v2336 = vadd.f32 %v2175, %v2335
        %v2337 = vpop.f32.mrf.mxu0
        %v2338 = vadd.f32 %v2177, %v2337
        %v2339 = vpop.f32.mrf.mxu0
        %v2340 = vadd.f32 %v2179, %v2339
        %2341 = vmatprep.mubr.bf16.mxu0 %v833
        %2342 = vmatmul.mubr.bf16.gmra.mxu0 %v832
        %v2343 = vpop.f32.mrf.mxu0
        %v2344 = vadd.f32 %v2183, %v2343
        %v2345 = vpop.f32.mrf.mxu0
        %v2346 = vadd.f32 %v2185, %v2345
        %v2347 = vpop.f32.mrf.mxu0
        %v2348 = vadd.f32 %v2187, %v2347
        %v2349 = vpop.f32.mrf.mxu0
        %v2350 = vadd.f32 %v2189, %v2349
        %2351 = vmatprep.mubr.bf16.mxu0 %v837
        %2352 = vmatmul.mubr.bf16.gmra.mxu0 %v836
        %v2353 = vpop.f32.mrf.mxu0
        %v2354 = vadd.f32 %v2193, %v2353
        %v2355 = vpop.f32.mrf.mxu0
        %v2356 = vadd.f32 %v2195, %v2355
        %v2357 = vpop.f32.mrf.mxu0
        %v2358 = vadd.f32 %v2197, %v2357
        %v2359 = vpop.f32.mrf.mxu0
        %v2360 = vadd.f32 %v2199, %v2359
        %2361 = vmatprep.mubr.bf16.mxu0 %v841
        %2362 = vmatmul.mubr.bf16.gmra.mxu0 %v840
        %v2363 = vpop.f32.mrf.mxu0
        %v2364 = vadd.f32 %v2203, %v2363
        %v2365 = vpop.f32.mrf.mxu0
        %v2366 = vadd.f32 %v2205, %v2365
        %v2367 = vpop.f32.mrf.mxu0
        %v2368 = vadd.f32 %v2207, %v2367
        %v2369 = vpop.f32.mrf.mxu0
        %v2370 = vadd.f32 %v2209, %v2369
        %2371 = vmatprep.mubr.bf16.mxu0 %v845
        %2372 = vmatmul.mubr.bf16.gmra.mxu0 %v844
        %v2373 = vpop.f32.mrf.mxu0
        %v2374 = vadd.f32 %v2213, %v2373
        %v2375 = vpop.f32.mrf.mxu0
        %v2376 = vadd.f32 %v2215, %v2375
        %v2377 = vpop.f32.mrf.mxu0
        %v2378 = vadd.f32 %v2217, %v2377
        %v2379 = vpop.f32.mrf.mxu0
        %v2380 = vadd.f32 %v2219, %v2379
        %2381 = vmatprep.mubr.bf16.mxu0 %v849
        %2382 = vmatmul.mubr.bf16.gmra.mxu0 %v848
        %v2383 = vpop.f32.mrf.mxu0
        %v2384 = vadd.f32 %v2223, %v2383
        %v2385 = vpop.f32.mrf.mxu0
        %v2386 = vadd.f32 %v2225, %v2385
        %v2387 = vpop.f32.mrf.mxu0
        %v2388 = vpop.f32.mrf.mxu0
        %2389 = vdwg.mxu0
        %v2518 = vunpack.c.l.b16 %v850
        %v2519 = vunpack.c.h.b16 %v850
        %v2520 = vunpack.c.l.b16 %v851
        %v2521 = vunpack.c.h.b16 %v851
        %v2522 = vunpack.c.l.b16 %v852
        %v2523 = vunpack.c.h.b16 %v852
        %v2524 = vunpack.c.l.b16 %v853
        %v2525 = vunpack.c.h.b16 %v853
        %v2526 = vunpack.c.l.b16 %v854
        %v2527 = vunpack.c.h.b16 %v854
        %v2528 = vunpack.c.l.b16 %v855
        %v2529 = vunpack.c.h.b16 %v855
        %v2530 = vunpack.c.l.b16 %v856
        %v2531 = vunpack.c.h.b16 %v856
        %v2532 = vunpack.c.l.b16 %v857
        %v2533 = vunpack.c.h.b16 %v857
        %v2534 = vunpack.c.l.b16 %v858
        %v2535 = vunpack.c.h.b16 %v858
        %v2536 = vunpack.c.l.b16 %v859
        %v2537 = vunpack.c.h.b16 %v859
        %v2538 = vunpack.c.l.b16 %v860
        %v2539 = vunpack.c.h.b16 %v860
        %v2540 = vunpack.c.l.b16 %v861
        %v2541 = vunpack.c.h.b16 %v861
        %v2542 = vunpack.c.l.b16 %v862
        %v2543 = vunpack.c.h.b16 %v862
        %v2544 = vunpack.c.l.b16 %v863
        %v2545 = vunpack.c.h.b16 %v863
        %v2546 = vunpack.c.l.b16 %v864
        %v2547 = vunpack.c.h.b16 %v864
        %v2548 = vunpack.c.l.b16 %v865
        %v2549 = vunpack.c.h.b16 %v865
        %v2550 = vunpack.c.l.b16 %v866
        %v2551 = vunpack.c.h.b16 %v866
        %v2552 = vunpack.c.l.b16 %v867
        %v2553 = vunpack.c.h.b16 %v867
        %v2554 = vunpack.c.l.b16 %v868
        %v2555 = vunpack.c.h.b16 %v868
        %v2556 = vunpack.c.l.b16 %v869
        %v2557 = vunpack.c.h.b16 %v869
        %v2558 = vunpack.c.l.b16 %v870
        %v2559 = vunpack.c.h.b16 %v870
        %v2560 = vunpack.c.l.b16 %v871
        %v2561 = vunpack.c.h.b16 %v871
        %v2562 = vunpack.c.l.b16 %v872
        %v2563 = vunpack.c.h.b16 %v872
        %v2564 = vunpack.c.l.b16 %v873
        %v2565 = vunpack.c.h.b16 %v873
        %v2566 = vunpack.c.l.b16 %v874
        %v2567 = vunpack.c.h.b16 %v874
        %v2568 = vunpack.c.l.b16 %v875
        %v2569 = vunpack.c.h.b16 %v875
        %v2570 = vunpack.c.l.b16 %v876
        %v2571 = vunpack.c.h.b16 %v876
        %v2572 = vunpack.c.l.b16 %v877
        %v2573 = vunpack.c.h.b16 %v877
        %v2574 = vunpack.c.l.b16 %v878
        %v2575 = vunpack.c.h.b16 %v878
        %v2576 = vunpack.c.l.b16 %v879
        %v2577 = vunpack.c.h.b16 %v879
        %v2578 = vunpack.c.l.b16 %v880
        %v2579 = vunpack.c.h.b16 %v880
        %v2580 = vunpack.c.l.b16 %v881
        %v2581 = vunpack.c.h.b16 %v881
        %v2582 = vunpack.c.l.b16 %v882
        %v2583 = vunpack.c.h.b16 %v882
        %v2584 = vunpack.c.l.b16 %v883
        %v2585 = vunpack.c.h.b16 %v883
        %v2586 = vunpack.c.l.b16 %v884
        %v2587 = vunpack.c.h.b16 %v884
        %v2588 = vunpack.c.l.b16 %v885
        %v2589 = vunpack.c.h.b16 %v885
        %v2590 = vunpack.c.l.b16 %v886
        %v2591 = vunpack.c.h.b16 %v886
        %v2592 = vunpack.c.l.b16 %v887
        %v2593 = vunpack.c.h.b16 %v887
        %v2594 = vunpack.c.l.b16 %v888
        %v2595 = vunpack.c.h.b16 %v888
        %v2596 = vunpack.c.l.b16 %v889
        %v2597 = vunpack.c.h.b16 %v889
        %v2598 = vunpack.c.l.b16 %v890
        %v2599 = vunpack.c.h.b16 %v890
        %v2600 = vunpack.c.l.b16 %v891
        %v2601 = vunpack.c.h.b16 %v891
        %v2602 = vunpack.c.l.b16 %v892
        %v2603 = vunpack.c.h.b16 %v892
        %v2604 = vunpack.c.l.b16 %v893
        %v2605 = vunpack.c.h.b16 %v893
        %v2606 = vunpack.c.l.b16 %v894
        %v2607 = vunpack.c.h.b16 %v894
        %v2608 = vunpack.c.l.b16 %v895
        %v2609 = vunpack.c.h.b16 %v895
        %v2610 = vunpack.c.l.b16 %v896
        %v2611 = vunpack.c.h.b16 %v896
        %v2612 = vunpack.c.l.b16 %v897
        %v2613 = vunpack.c.h.b16 %v897
        %v2614 = vunpack.c.l.b16 %v898
        %v2615 = vunpack.c.h.b16 %v898
        %v2616 = vunpack.c.l.b16 %v899
        %v2617 = vunpack.c.h.b16 %v899
        %v2618 = vunpack.c.l.b16 %v900
        %v2619 = vunpack.c.h.b16 %v900
        %v2620 = vunpack.c.l.b16 %v901
        %v2621 = vunpack.c.h.b16 %v901
        %v2622 = vunpack.c.l.b16 %v902
        %v2623 = vunpack.c.h.b16 %v902
        %v2624 = vunpack.c.l.b16 %v903
        %v2625 = vunpack.c.h.b16 %v903
        %v2626 = vunpack.c.l.b16 %v904
        %v2627 = vunpack.c.h.b16 %v904
        %v2628 = vunpack.c.l.b16 %v905
        %v2629 = vunpack.c.h.b16 %v905
        %v2630 = vunpack.c.l.b16 %v906
        %v2631 = vunpack.c.h.b16 %v906
        %v2632 = vunpack.c.l.b16 %v907
        %v2633 = vunpack.c.h.b16 %v907
        %v2634 = vunpack.c.l.b16 %v908
        %v2635 = vunpack.c.h.b16 %v908
        %v2636 = vunpack.c.l.b16 %v909
        %v2637 = vunpack.c.h.b16 %v909
        %v2638 = vunpack.c.l.b16 %v910
        %v2639 = vunpack.c.h.b16 %v910
        %v2640 = vunpack.c.l.b16 %v911
        %v2641 = vunpack.c.h.b16 %v911
        %v2642 = vunpack.c.l.b16 %v912
        %v2643 = vunpack.c.h.b16 %v912
        %v2644 = vunpack.c.l.b16 %v913
        %v2645 = vunpack.c.h.b16 %v913
        %v2646 = vunpack.c.l.b16 %v914
        %v2647 = vunpack.c.h.b16 %v914
        %v2648 = vunpack.c.l.b16 %v915
        %v2649 = vunpack.c.h.b16 %v915
        %v2650 = vunpack.c.l.b16 %v916
        %v2651 = vunpack.c.h.b16 %v916
        %v2652 = vunpack.c.l.b16 %v917
        %v2653 = vunpack.c.h.b16 %v917
        %v2654 = vunpack.c.l.b16 %v918
        %v2655 = vunpack.c.h.b16 %v918
        %v2656 = vunpack.c.l.b16 %v919
        %v2657 = vunpack.c.h.b16 %v919
        %v2658 = vunpack.c.l.b16 %v920
        %v2659 = vunpack.c.h.b16 %v920
        %v2660 = vunpack.c.l.b16 %v921
        %v2661 = vunpack.c.h.b16 %v921
        %v2662 = vunpack.c.l.b16 %v922
        %v2663 = vunpack.c.h.b16 %v922
        %v2664 = vunpack.c.l.b16 %v923
        %v2665 = vunpack.c.h.b16 %v923
        %v2666 = vunpack.c.l.b16 %v924
        %v2667 = vunpack.c.h.b16 %v924
        %v2668 = vunpack.c.l.b16 %v925
        %v2669 = vunpack.c.h.b16 %v925
        %v2670 = vunpack.c.l.b16 %v926
        %v2671 = vunpack.c.h.b16 %v926
        %v2672 = vunpack.c.l.b16 %v927
        %v2673 = vunpack.c.h.b16 %v927
        %v2674 = vunpack.c.l.b16 %v928
        %v2675 = vunpack.c.h.b16 %v928
        %v2676 = vunpack.c.l.b16 %v929
        %v2677 = vunpack.c.h.b16 %v929
        %v2678 = vunpack.c.l.b16 %v930
        %v2679 = vunpack.c.h.b16 %v930
        %v2680 = vunpack.c.l.b16 %v931
        %v2681 = vunpack.c.h.b16 %v931
        %v2682 = vunpack.c.l.b16 %v932
        %v2683 = vunpack.c.h.b16 %v932
        %v2684 = vunpack.c.l.b16 %v933
        %v2685 = vunpack.c.h.b16 %v933
        %v2686 = vunpack.c.l.b16 %v934
        %v2687 = vunpack.c.h.b16 %v934
        %v2688 = vunpack.c.l.b16 %v935
        %v2689 = vunpack.c.h.b16 %v935
        %v2690 = vunpack.c.l.b16 %v936
        %v2691 = vunpack.c.h.b16 %v936
        %v2692 = vunpack.c.l.b16 %v937
        %v2693 = vunpack.c.h.b16 %v937
        %v2694 = vunpack.c.l.b16 %v938
        %v2695 = vunpack.c.h.b16 %v938
        %v2696 = vunpack.c.l.b16 %v939
        %v2697 = vunpack.c.h.b16 %v939
        %v2698 = vunpack.c.l.b16 %v940
        %v2699 = vunpack.c.h.b16 %v940
        %v2700 = vunpack.c.l.b16 %v941
        %v2701 = vunpack.c.h.b16 %v941
        %v2702 = vunpack.c.l.b16 %v942
        %v2703 = vunpack.c.h.b16 %v942
        %v2704 = vunpack.c.l.b16 %v943
        %v2705 = vunpack.c.h.b16 %v943
        %v2706 = vunpack.c.l.b16 %v944
        %v2707 = vunpack.c.h.b16 %v944
        %v2708 = vunpack.c.l.b16 %v945
        %v2709 = vunpack.c.h.b16 %v945
        %v2710 = vunpack.c.l.b16 %v946
        %v2711 = vunpack.c.h.b16 %v946
        %v2712 = vunpack.c.l.b16 %v947
        %v2713 = vunpack.c.h.b16 %v947
        %v2714 = vunpack.c.l.b16 %v948
        %v2715 = vunpack.c.h.b16 %v948
        %v2716 = vunpack.c.l.b16 %v949
        %v2717 = vunpack.c.h.b16 %v949
        %v2718 = vunpack.c.l.b16 %v950
        %v2719 = vunpack.c.h.b16 %v950
        %v2720 = vunpack.c.l.b16 %v951
        %v2721 = vunpack.c.h.b16 %v951
        %v2722 = vunpack.c.l.b16 %v952
        %v2723 = vunpack.c.h.b16 %v952
        %v2724 = vunpack.c.l.b16 %v953
        %v2725 = vunpack.c.h.b16 %v953
        %v2726 = vunpack.c.l.b16 %v954
        %v2727 = vunpack.c.h.b16 %v954
        %v2728 = vunpack.c.l.b16 %v955
        %v2729 = vunpack.c.h.b16 %v955
        %v2730 = vunpack.c.l.b16 %v956
        %v2731 = vunpack.c.h.b16 %v956
        %v2732 = vunpack.c.l.b16 %v957
        %v2733 = vunpack.c.h.b16 %v957
        %v2734 = vunpack.c.l.b16 %v958
        %v2735 = vunpack.c.h.b16 %v958
        %v2736 = vunpack.c.l.b16 %v959
        %v2737 = vunpack.c.h.b16 %v959
        %v2738 = vunpack.c.l.b16 %v960
        %v2739 = vunpack.c.h.b16 %v960
        %v2740 = vunpack.c.l.b16 %v961
        %v2741 = vunpack.c.h.b16 %v961
        %v2742 = vunpack.c.l.b16 %v962
        %v2743 = vunpack.c.h.b16 %v962
        %v2744 = vunpack.c.l.b16 %v963
        %v2745 = vunpack.c.h.b16 %v963
        %v2746 = vunpack.c.l.b16 %v964
        %v2747 = vunpack.c.h.b16 %v964
        %v2748 = vunpack.c.l.b16 %v965
        %v2749 = vunpack.c.h.b16 %v965
        %v2750 = vunpack.c.l.b16 %v966
        %v2751 = vunpack.c.h.b16 %v966
        %v2752 = vunpack.c.l.b16 %v967
        %v2753 = vunpack.c.h.b16 %v967
        %v2754 = vunpack.c.l.b16 %v968
        %v2755 = vunpack.c.h.b16 %v968
        %v2756 = vunpack.c.l.b16 %v969
        %v2757 = vunpack.c.h.b16 %v969
        %v2758 = vunpack.c.l.b16 %v970
        %v2759 = vunpack.c.h.b16 %v970
        %v2760 = vunpack.c.l.b16 %v971
        %v2761 = vunpack.c.h.b16 %v971
        %v2762 = vunpack.c.l.b16 %v972
        %v2763 = vunpack.c.h.b16 %v972
        %v2764 = vunpack.c.l.b16 %v973
        %v2765 = vunpack.c.h.b16 %v973
        %v2766 = vunpack.c.l.b16 %v974
        %v2767 = vunpack.c.h.b16 %v974
        %v2768 = vunpack.c.l.b16 %v975
        %v2769 = vunpack.c.h.b16 %v975
        %v2770 = vunpack.c.l.b16 %v976
        %v2771 = vunpack.c.h.b16 %v976
        %v2772 = vunpack.c.l.b16 %v977
        %v2773 = vunpack.c.h.b16 %v977
        %v2774 = vpack.c.b16 %v2522, %v2518
        %v2775 = vpack.c.b16 %v2523, %v2519
        %v2776 = vpack.c.b16 %v2524, %v2520
        %v2777 = vpack.c.b16 %v2525, %v2521
        %v2778 = vpack.c.b16 %v2530, %v2526
        %v2779 = vpack.c.b16 %v2531, %v2527
        %v2780 = vpack.c.b16 %v2532, %v2528
        %v2781 = vpack.c.b16 %v2533, %v2529
        %v2782 = vpack.c.b16 %v2538, %v2534
        %v2783 = vpack.c.b16 %v2539, %v2535
        %v2784 = vpack.c.b16 %v2540, %v2536
        %v2785 = vpack.c.b16 %v2541, %v2537
        %v2786 = vpack.c.b16 %v2546, %v2542
        %v2787 = vpack.c.b16 %v2547, %v2543
        %v2788 = vpack.c.b16 %v2548, %v2544
        %v2789 = vpack.c.b16 %v2549, %v2545
        %v2790 = vpack.c.b16 %v2554, %v2550
        %v2791 = vpack.c.b16 %v2555, %v2551
        %v2792 = vpack.c.b16 %v2556, %v2552
        %v2793 = vpack.c.b16 %v2557, %v2553
        %v2794 = vpack.c.b16 %v2562, %v2558
        %v2795 = vpack.c.b16 %v2563, %v2559
        %v2796 = vpack.c.b16 %v2564, %v2560
        %v2797 = vpack.c.b16 %v2565, %v2561
        %v2798 = vpack.c.b16 %v2570, %v2566
        %v2799 = vpack.c.b16 %v2571, %v2567
        %v2800 = vpack.c.b16 %v2572, %v2568
        %v2801 = vpack.c.b16 %v2573, %v2569
        %v2802 = vpack.c.b16 %v2578, %v2574
        %v2803 = vpack.c.b16 %v2579, %v2575
        %v2804 = vpack.c.b16 %v2580, %v2576
        %v2805 = vpack.c.b16 %v2581, %v2577
        %v2806 = vpack.c.b16 %v2586, %v2582
        %v2807 = vpack.c.b16 %v2587, %v2583
        %v2808 = vpack.c.b16 %v2588, %v2584
        %v2809 = vpack.c.b16 %v2589, %v2585
        %v2810 = vpack.c.b16 %v2594, %v2590
        %v2811 = vpack.c.b16 %v2595, %v2591
        %v2812 = vpack.c.b16 %v2596, %v2592
        %v2813 = vpack.c.b16 %v2597, %v2593
        %v2814 = vpack.c.b16 %v2602, %v2598
        %v2815 = vpack.c.b16 %v2603, %v2599
        %v2816 = vpack.c.b16 %v2604, %v2600
        %v2817 = vpack.c.b16 %v2605, %v2601
        %v2818 = vpack.c.b16 %v2610, %v2606
        %v2819 = vpack.c.b16 %v2611, %v2607
        %v2820 = vpack.c.b16 %v2612, %v2608
        %v2821 = vpack.c.b16 %v2613, %v2609
        %v2822 = vpack.c.b16 %v2618, %v2614
        %v2823 = vpack.c.b16 %v2619, %v2615
        %v2824 = vpack.c.b16 %v2620, %v2616
        %v2825 = vpack.c.b16 %v2621, %v2617
        %v2826 = vpack.c.b16 %v2626, %v2622
        %v2827 = vpack.c.b16 %v2627, %v2623
        %v2828 = vpack.c.b16 %v2628, %v2624
        %v2829 = vpack.c.b16 %v2629, %v2625
        %v2830 = vpack.c.b16 %v2634, %v2630
        %v2831 = vpack.c.b16 %v2635, %v2631
        %v2832 = vpack.c.b16 %v2636, %v2632
        %v2833 = vpack.c.b16 %v2637, %v2633
        %v2834 = vpack.c.b16 %v2642, %v2638
        %v2835 = vpack.c.b16 %v2643, %v2639
        %v2836 = vpack.c.b16 %v2644, %v2640
        %v2837 = vpack.c.b16 %v2645, %v2641
        %v2838 = vpack.c.b16 %v2650, %v2646
        %v2839 = vpack.c.b16 %v2651, %v2647
        %v2840 = vpack.c.b16 %v2652, %v2648
        %v2841 = vpack.c.b16 %v2653, %v2649
        %v2842 = vpack.c.b16 %v2658, %v2654
        %v2843 = vpack.c.b16 %v2659, %v2655
        %v2844 = vpack.c.b16 %v2660, %v2656
        %v2845 = vpack.c.b16 %v2661, %v2657
        %v2846 = vpack.c.b16 %v2666, %v2662
        %v2847 = vpack.c.b16 %v2667, %v2663
        %v2848 = vpack.c.b16 %v2668, %v2664
        %v2849 = vpack.c.b16 %v2669, %v2665
        %v2850 = vpack.c.b16 %v2674, %v2670
        %v2851 = vpack.c.b16 %v2675, %v2671
        %v2852 = vpack.c.b16 %v2676, %v2672
        %v2853 = vpack.c.b16 %v2677, %v2673
        %v2854 = vpack.c.b16 %v2682, %v2678
        %v2855 = vpack.c.b16 %v2683, %v2679
        %v2856 = vpack.c.b16 %v2684, %v2680
        %v2857 = vpack.c.b16 %v2685, %v2681
        %v2858 = vpack.c.b16 %v2690, %v2686
        %v2859 = vpack.c.b16 %v2691, %v2687
        %v2860 = vpack.c.b16 %v2692, %v2688
        %v2861 = vpack.c.b16 %v2693, %v2689
        %v2862 = vpack.c.b16 %v2698, %v2694
        %v2863 = vpack.c.b16 %v2699, %v2695
        %v2864 = vpack.c.b16 %v2700, %v2696
        %v2865 = vpack.c.b16 %v2701, %v2697
        %v2866 = vpack.c.b16 %v2706, %v2702
        %v2867 = vpack.c.b16 %v2707, %v2703
        %v2868 = vpack.c.b16 %v2708, %v2704
        %v2869 = vpack.c.b16 %v2709, %v2705
        %v2870 = vpack.c.b16 %v2714, %v2710
        %v2871 = vpack.c.b16 %v2715, %v2711
        %v2872 = vpack.c.b16 %v2716, %v2712
        %v2873 = vpack.c.b16 %v2717, %v2713
        %v2874 = vpack.c.b16 %v2722, %v2718
        %v2875 = vpack.c.b16 %v2723, %v2719
        %v2876 = vpack.c.b16 %v2724, %v2720
        %v2877 = vpack.c.b16 %v2725, %v2721
        %v2878 = vpack.c.b16 %v2730, %v2726
        %v2879 = vpack.c.b16 %v2731, %v2727
        %v2880 = vpack.c.b16 %v2732, %v2728
        %v2881 = vpack.c.b16 %v2733, %v2729
        %v2882 = vpack.c.b16 %v2738, %v2734
        %v2883 = vpack.c.b16 %v2739, %v2735
        %v2884 = vpack.c.b16 %v2740, %v2736
        %v2885 = vpack.c.b16 %v2741, %v2737
        %v2886 = vpack.c.b16 %v2746, %v2742
        %v2887 = vpack.c.b16 %v2747, %v2743
        %v2888 = vpack.c.b16 %v2748, %v2744
        %v2889 = vpack.c.b16 %v2749, %v2745
        %v2890 = vpack.c.b16 %v2754, %v2750
        %v2891 = vpack.c.b16 %v2755, %v2751
        %v2892 = vpack.c.b16 %v2756, %v2752
        %v2893 = vpack.c.b16 %v2757, %v2753
        %v2894 = vpack.c.b16 %v2762, %v2758
        %v2895 = vpack.c.b16 %v2763, %v2759
        %v2896 = vpack.c.b16 %v2764, %v2760
        %v2897 = vpack.c.b16 %v2765, %v2761
        %v2898 = vpack.c.b16 %v2770, %v2766
        %v2899 = vpack.c.b16 %v2771, %v2767
        %v2900 = vpack.c.b16 %v2772, %v2768
        %v2901 = vpack.c.b16 %v2773, %v2769
        %3030 = vmatprep.subr.bf16.mxu0 %v2803
        %3031 = vmatpush1.bf16.msra.mxu0 %v2802
        %3032 = vmatprep.subr.bf16.mxu0 %v2799
        %3033 = vmatpush1.bf16.msra.mxu0 %v2798
        %3034 = vmatprep.subr.bf16.mxu0 %v2795
        %3035 = vmatpush1.bf16.msra.mxu0 %v2794
        %3036 = vmatprep.subr.bf16.mxu0 %v2791
        %3037 = vmatpush1.bf16.msra.mxu0 %v2790
        %3038 = vmatprep.subr.bf16.mxu0 %v2787
        %3039 = vmatpush1.bf16.msra.mxu0 %v2786
        %3040 = vmatprep.subr.bf16.mxu0 %v2783
        %3041 = vmatpush1.bf16.msra.mxu0 %v2782
        %3042 = vmatprep.subr.bf16.mxu0 %v2779
        %3043 = vmatpush1.bf16.msra.mxu0 %v2778
        %3044 = vmatprep.subr.bf16.mxu0 %v2775
        %3045 = vmatpush1.bf16.msra.mxu0 %v2774
        %3046 = vmatprep.subr.bf16.mxu0 %v2835
        %3047 = vmatpush2.bf16.msra.mxu0 %v2834
        %3048 = vmatprep.subr.bf16.mxu0 %v2831
        %3049 = vmatpush2.bf16.msra.mxu0 %v2830
        %3050 = vmatprep.subr.bf16.mxu0 %v2827
        %3051 = vmatpush2.bf16.msra.mxu0 %v2826
        %3052 = vmatprep.subr.bf16.mxu0 %v2823
        %3053 = vmatpush2.bf16.msra.mxu0 %v2822
        %3054 = vmatprep.subr.bf16.mxu0 %v2819
        %3055 = vmatpush2.bf16.msra.mxu0 %v2818
        %3056 = vmatprep.subr.bf16.mxu0 %v2815
        %3057 = vmatpush2.bf16.msra.mxu0 %v2814
        %3058 = vmatprep.subr.bf16.mxu0 %v2811
        %3059 = vmatpush2.bf16.msra.mxu0 %v2810
        %3060 = vmatprep.subr.bf16.mxu0 %v2807
        %3061 = vmatpush2.bf16.msra.mxu0 %v2806
        %3062 = vmatprep.mubr.bf16.mxu0 %v647
        %3063 = vmatmul.mubr.bf16.gmra.mxu0 %v646
        %v3064 = vpop.f32.mrf.mxu0
        %v3065 = vadd.f32 %v1942, %v3064
        %v3066 = vpop.f32.mrf.mxu0
        %v3067 = vadd.f32 %v1944, %v3066
        %v3068 = vpop.f32.mrf.mxu0
        %v3069 = vadd.f32 %v1946, %v3068
        %v3070 = vpop.f32.mrf.mxu0
        %v3071 = vadd.f32 %v1948, %v3070
        %3072 = vmatprep.mubr.bf16.mxu0 %v651
        %3073 = vmatmul.mubr.bf16.gmra.mxu0 %v650
        %v3074 = vpop.f32.mrf.mxu0
        %v3075 = vadd.f32 %v1952, %v3074
        %v3076 = vpop.f32.mrf.mxu0
        %v3077 = vadd.f32 %v1954, %v3076
        %v3078 = vpop.f32.mrf.mxu0
        %v3079 = vadd.f32 %v1956, %v3078
        %v3080 = vpop.f32.mrf.mxu0
        %v3081 = vadd.f32 %v1958, %v3080
        %3082 = vmatprep.mubr.bf16.mxu0 %v655
        %3083 = vmatmul.mubr.bf16.gmra.mxu0 %v654
        %v3084 = vpop.f32.mrf.mxu0
        %v3085 = vadd.f32 %v1962, %v3084
        %v3086 = vpop.f32.mrf.mxu0
        %v3087 = vadd.f32 %v1964, %v3086
        %v3088 = vpop.f32.mrf.mxu0
        %v3089 = vadd.f32 %v1966, %v3088
        %v3090 = vpop.f32.mrf.mxu0
        %v3091 = vadd.f32 %v1968, %v3090
        %3092 = vmatprep.mubr.bf16.mxu0 %v659
        %3093 = vmatmul.mubr.bf16.gmra.mxu0 %v658
        %v3094 = vpop.f32.mrf.mxu0
        %v3095 = vadd.f32 %v1972, %v3094
        %v3096 = vpop.f32.mrf.mxu0
        %v3097 = vadd.f32 %v1974, %v3096
        %v3098 = vpop.f32.mrf.mxu0
        %v3099 = vadd.f32 %v1976, %v3098
        %v3100 = vpop.f32.mrf.mxu0
        %v3101 = vadd.f32 %v1978, %v3100
        %3102 = vmatprep.mubr.bf16.mxu0 %v663
        %3103 = vmatmul.mubr.bf16.gmra.mxu0 %v662
        %v3104 = vpop.f32.mrf.mxu0
        %v3105 = vadd.f32 %v1982, %v3104
        %v3106 = vpop.f32.mrf.mxu0
        %v3107 = vadd.f32 %v1984, %v3106
        %v3108 = vpop.f32.mrf.mxu0
        %v3109 = vadd.f32 %v1986, %v3108
        %v3110 = vpop.f32.mrf.mxu0
        %v3111 = vadd.f32 %v1988, %v3110
        %3112 = vmatprep.mubr.bf16.mxu0 %v667
        %3113 = vmatmul.mubr.bf16.gmra.mxu0 %v666
        %v3114 = vpop.f32.mrf.mxu0
        %v3115 = vadd.f32 %v1992, %v3114
        %v3116 = vpop.f32.mrf.mxu0
        %v3117 = vadd.f32 %v1994, %v3116
        %v3118 = vpop.f32.mrf.mxu0
        %v3119 = vadd.f32 %v1996, %v3118
        %v3120 = vpop.f32.mrf.mxu0
        %v3121 = vadd.f32 %v1998, %v3120
        %3122 = vmatprep.mubr.bf16.mxu0 %v671
        %3123 = vmatmul.mubr.bf16.gmra.mxu0 %v670
        %v3124 = vpop.f32.mrf.mxu0
        %v3125 = vadd.f32 %v2002, %v3124
        %v3126 = vpop.f32.mrf.mxu0
        %v3127 = vadd.f32 %v2004, %v3126
        %v3128 = vpop.f32.mrf.mxu0
        %v3129 = vadd.f32 %v2006, %v3128
        %v3130 = vpop.f32.mrf.mxu0
        %v3131 = vadd.f32 %v2008, %v3130
        %3132 = vmatprep.mubr.bf16.mxu0 %v675
        %3133 = vmatmul.mubr.bf16.gmra.mxu0 %v674
        %v3134 = vpop.f32.mrf.mxu0
        %v3135 = vadd.f32 %v2012, %v3134
        %v3136 = vpop.f32.mrf.mxu0
        %v3137 = vadd.f32 %v2014, %v3136
        %v3138 = vpop.f32.mrf.mxu0
        %v3139 = vadd.f32 %v2016, %v3138
        %v3140 = vpop.f32.mrf.mxu0
        %v3141 = vadd.f32 %v2018, %v3140
        %3142 = vmatprep.mubr.bf16.mxu0 %v679
        %3143 = vmatmul.mubr.bf16.gmra.mxu0 %v678
        %v3144 = vpop.f32.mrf.mxu0
        %v3145 = vadd.f32 %v2022, %v3144
        %v3146 = vpop.f32.mrf.mxu0
        %v3147 = vadd.f32 %v2024, %v3146
        %v3148 = vpop.f32.mrf.mxu0
        %v3149 = vadd.f32 %v2026, %v3148
        %v3150 = vpop.f32.mrf.mxu0
        %v3151 = vadd.f32 %v2028, %v3150
        %3152 = vmatprep.mubr.bf16.mxu0 %v683
        %3153 = vmatmul.mubr.bf16.gmra.mxu0 %v682
        %v3154 = vpop.f32.mrf.mxu0
        %v3155 = vadd.f32 %v2032, %v3154
        %v3156 = vpop.f32.mrf.mxu0
        %v3157 = vadd.f32 %v2034, %v3156
        %v3158 = vpop.f32.mrf.mxu0
        %v3159 = vadd.f32 %v2036, %v3158
        %v3160 = vpop.f32.mrf.mxu0
        %v3161 = vadd.f32 %v2038, %v3160
        %3162 = vmatprep.mubr.bf16.mxu0 %v687
        %3163 = vmatmul.mubr.bf16.gmra.mxu0 %v686
        %v3164 = vpop.f32.mrf.mxu0
        %v3165 = vadd.f32 %v2042, %v3164
        %v3166 = vpop.f32.mrf.mxu0
        %v3167 = vadd.f32 %v2044, %v3166
        %v3168 = vpop.f32.mrf.mxu0
        %v3169 = vadd.f32 %v2046, %v3168
        %v3170 = vpop.f32.mrf.mxu0
        %v3171 = vadd.f32 %v2048, %v3170
        %3172 = vmatprep.mubr.bf16.mxu0 %v691
        %3173 = vmatmul.mubr.bf16.gmra.mxu0 %v690
        %v3174 = vpop.f32.mrf.mxu0
        %v3175 = vadd.f32 %v2052, %v3174
        %v3176 = vpop.f32.mrf.mxu0
        %v3177 = vadd.f32 %v2054, %v3176
        %v3178 = vpop.f32.mrf.mxu0
        %v3179 = vadd.f32 %v2056, %v3178
        %v3180 = vpop.f32.mrf.mxu0
        %v3181 = vadd.f32 %v2058, %v3180
        %3182 = vmatprep.mubr.bf16.mxu0 %v695
        %3183 = vmatmul.mubr.bf16.gmra.mxu0 %v694
        %v3184 = vpop.f32.mrf.mxu0
        %v3185 = vadd.f32 %v2062, %v3184
        %v3186 = vpop.f32.mrf.mxu0
        %v3187 = vadd.f32 %v2064, %v3186
        %v3188 = vpop.f32.mrf.mxu0
        %v3189 = vpop.f32.mrf.mxu0
        %3190 = vdwg.mxu0
        %3191 = vmatprep.subr.bf16.mxu0 %v2867
        %3192 = vmatpush1.bf16.msra.mxu0 %v2866
        %3193 = vmatprep.subr.bf16.mxu0 %v2863
        %3194 = vmatpush1.bf16.msra.mxu0 %v2862
        %3195 = vmatprep.subr.bf16.mxu0 %v2859
        %3196 = vmatpush1.bf16.msra.mxu0 %v2858
        %3197 = vmatprep.subr.bf16.mxu0 %v2855
        %3198 = vmatpush1.bf16.msra.mxu0 %v2854
        %3199 = vmatprep.subr.bf16.mxu0 %v2851
        %3200 = vmatpush1.bf16.msra.mxu0 %v2850
        %3201 = vmatprep.subr.bf16.mxu0 %v2847
        %3202 = vmatpush1.bf16.msra.mxu0 %v2846
        %3203 = vmatprep.subr.bf16.mxu0 %v2843
        %3204 = vmatpush1.bf16.msra.mxu0 %v2842
        %3205 = vmatprep.subr.bf16.mxu0 %v2839
        %3206 = vmatpush1.bf16.msra.mxu0 %v2838
        %3207 = vmatprep.subr.bf16.mxu0 %v2899
        %3208 = vmatpush2.bf16.msra.mxu0 %v2898
        %3209 = vmatprep.subr.bf16.mxu0 %v2895
        %3210 = vmatpush2.bf16.msra.mxu0 %v2894
        %3211 = vmatprep.subr.bf16.mxu0 %v2891
        %3212 = vmatpush2.bf16.msra.mxu0 %v2890
        %3213 = vmatprep.subr.bf16.mxu0 %v2887
        %3214 = vmatpush2.bf16.msra.mxu0 %v2886
        %3215 = vmatprep.subr.bf16.mxu0 %v2883
        %3216 = vmatpush2.bf16.msra.mxu0 %v2882
        %3217 = vmatprep.subr.bf16.mxu0 %v2879
        %3218 = vmatpush2.bf16.msra.mxu0 %v2878
        %3219 = vmatprep.subr.bf16.mxu0 %v2875
        %3220 = vmatpush2.bf16.msra.mxu0 %v2874
        %3221 = vmatprep.subr.bf16.mxu0 %v2871
        %3222 = vmatpush2.bf16.msra.mxu0 %v2870
        %3223 = vmatprep.mubr.bf16.mxu0 %v649
        %3224 = vmatmul.mubr.bf16.gmra.mxu0 %v648
        %v3225 = vpop.f32.mrf.mxu0
        %v3226 = vadd.f32 %v3065, %v3225
        %v3227 = vpop.f32.mrf.mxu0
        %v3228 = vadd.f32 %v3067, %v3227
        %v3229 = vpop.f32.mrf.mxu0
        %v3230 = vadd.f32 %v3069, %v3229
        %v3231 = vpop.f32.mrf.mxu0
        %v3232 = vadd.f32 %v3071, %v3231
        %3233 = vmatprep.mubr.bf16.mxu0 %v653
        %3234 = vmatmul.mubr.bf16.gmra.mxu0 %v652
        %v3235 = vpop.f32.mrf.mxu0
        %v3236 = vadd.f32 %v3075, %v3235
        %v3237 = vpop.f32.mrf.mxu0
        %v3238 = vadd.f32 %v3077, %v3237
        %v3239 = vpop.f32.mrf.mxu0
        %v3240 = vadd.f32 %v3079, %v3239
        %v3241 = vpop.f32.mrf.mxu0
        %v3242 = vadd.f32 %v3081, %v3241
        %3243 = vmatprep.mubr.bf16.mxu0 %v657
        %3244 = vmatmul.mubr.bf16.gmra.mxu0 %v656
        %v3245 = vpop.f32.mrf.mxu0
        %v3246 = vadd.f32 %v3085, %v3245
        %v3247 = vpop.f32.mrf.mxu0
        %v3248 = vadd.f32 %v3087, %v3247
        %v3249 = vpop.f32.mrf.mxu0
        %v3250 = vadd.f32 %v3089, %v3249
        %v3251 = vpop.f32.mrf.mxu0
        %v3252 = vadd.f32 %v3091, %v3251
        %3253 = vmatprep.mubr.bf16.mxu0 %v661
        %3254 = vmatmul.mubr.bf16.gmra.mxu0 %v660
        %v3255 = vpop.f32.mrf.mxu0
        %v3256 = vadd.f32 %v3095, %v3255
        %v3257 = vpop.f32.mrf.mxu0
        %v3258 = vadd.f32 %v3097, %v3257
        %v3259 = vpop.f32.mrf.mxu0
        %v3260 = vadd.f32 %v3099, %v3259
        %v3261 = vpop.f32.mrf.mxu0
        %v3262 = vadd.f32 %v3101, %v3261
        %3263 = vmatprep.mubr.bf16.mxu0 %v665
        %3264 = vmatmul.mubr.bf16.gmra.mxu0 %v664
        %v3265 = vpop.f32.mrf.mxu0
        %v3266 = vadd.f32 %v3105, %v3265
        %v3267 = vpop.f32.mrf.mxu0
        %v3268 = vadd.f32 %v3107, %v3267
        %v3269 = vpop.f32.mrf.mxu0
        %v3270 = vadd.f32 %v3109, %v3269
        %v3271 = vpop.f32.mrf.mxu0
        %v3272 = vadd.f32 %v3111, %v3271
        %3273 = vmatprep.mubr.bf16.mxu0 %v669
        %3274 = vmatmul.mubr.bf16.gmra.mxu0 %v668
        %v3275 = vpop.f32.mrf.mxu0
        %v3276 = vadd.f32 %v3115, %v3275
        %v3277 = vpop.f32.mrf.mxu0
        %v3278 = vadd.f32 %v3117, %v3277
        %v3279 = vpop.f32.mrf.mxu0
        %v3280 = vadd.f32 %v3119, %v3279
        %v3281 = vpop.f32.mrf.mxu0
        %v3282 = vadd.f32 %v3121, %v3281
        %3283 = vmatprep.mubr.bf16.mxu0 %v673
        %3284 = vmatmul.mubr.bf16.gmra.mxu0 %v672
        %v3285 = vpop.f32.mrf.mxu0
        %v3286 = vadd.f32 %v3125, %v3285
        %v3287 = vpop.f32.mrf.mxu0
        %v3288 = vadd.f32 %v3127, %v3287
        %v3289 = vpop.f32.mrf.mxu0
        %v3290 = vadd.f32 %v3129, %v3289
        %v3291 = vpop.f32.mrf.mxu0
        %v3292 = vadd.f32 %v3131, %v3291
        %3293 = vmatprep.mubr.bf16.mxu0 %v677
        %3294 = vmatmul.mubr.bf16.gmra.mxu0 %v676
        %v3295 = vpop.f32.mrf.mxu0
        %v3296 = vadd.f32 %v3135, %v3295
        %v3297 = vpop.f32.mrf.mxu0
        %v3298 = vadd.f32 %v3137, %v3297
        %v3299 = vpop.f32.mrf.mxu0
        %v3300 = vadd.f32 %v3139, %v3299
        %v3301 = vpop.f32.mrf.mxu0
        %v3302 = vadd.f32 %v3141, %v3301
        %3303 = vmatprep.mubr.bf16.mxu0 %v681
        %3304 = vmatmul.mubr.bf16.gmra.mxu0 %v680
        %v3305 = vpop.f32.mrf.mxu0
        %v3306 = vadd.f32 %v3145, %v3305
        %v3307 = vpop.f32.mrf.mxu0
        %v3308 = vadd.f32 %v3147, %v3307
        %v3309 = vpop.f32.mrf.mxu0
        %v3310 = vadd.f32 %v3149, %v3309
        %v3311 = vpop.f32.mrf.mxu0
        %v3312 = vadd.f32 %v3151, %v3311
        %3313 = vmatprep.mubr.bf16.mxu0 %v685
        %3314 = vmatmul.mubr.bf16.gmra.mxu0 %v684
        %v3315 = vpop.f32.mrf.mxu0
        %v3316 = vadd.f32 %v3155, %v3315
        %v3317 = vpop.f32.mrf.mxu0
        %v3318 = vadd.f32 %v3157, %v3317
        %v3319 = vpop.f32.mrf.mxu0
        %v3320 = vadd.f32 %v3159, %v3319
        %v3321 = vpop.f32.mrf.mxu0
        %v3322 = vadd.f32 %v3161, %v3321
        %3323 = vmatprep.mubr.bf16.mxu0 %v689
        %3324 = vmatmul.mubr.bf16.gmra.mxu0 %v688
        %v3325 = vpop.f32.mrf.mxu0
        %v3326 = vadd.f32 %v3165, %v3325
        %v3327 = vpop.f32.mrf.mxu0
        %v3328 = vadd.f32 %v3167, %v3327
        %v3329 = vpop.f32.mrf.mxu0
        %v3330 = vadd.f32 %v3169, %v3329
        %v3331 = vpop.f32.mrf.mxu0
        %v3332 = vadd.f32 %v3171, %v3331
        %3333 = vmatprep.mubr.bf16.mxu0 %v693
        %3334 = vmatmul.mubr.bf16.gmra.mxu0 %v692
        %v3335 = vpop.f32.mrf.mxu0
        %v3336 = vadd.f32 %v3175, %v3335
        %v3337 = vpop.f32.mrf.mxu0
        %v3338 = vadd.f32 %v3177, %v3337
        %v3339 = vpop.f32.mrf.mxu0
        %v3340 = vadd.f32 %v3179, %v3339
        %v3341 = vpop.f32.mrf.mxu0
        %v3342 = vadd.f32 %v3181, %v3341
        %3343 = vmatprep.mubr.bf16.mxu0 %v697
        %3344 = vmatmul.mubr.bf16.gmra.mxu0 %v696
        %v3345 = vpop.f32.mrf.mxu0
        %v3346 = vadd.f32 %v3185, %v3345
        %v3347 = vpop.f32.mrf.mxu0
        %v3348 = vadd.f32 %v3187, %v3347
        %v3349 = vpop.f32.mrf.mxu0
        %v3350 = vpop.f32.mrf.mxu0
        %3351 = vdwg.mxu0
        %3352 = vmatprep.subr.bf16.mxu0 %v2805
        %3353 = vmatpush1.bf16.msra.mxu0 %v2804
        %3354 = vmatprep.subr.bf16.mxu0 %v2801
        %3355 = vmatpush1.bf16.msra.mxu0 %v2800
        %3356 = vmatprep.subr.bf16.mxu0 %v2797
        %3357 = vmatpush1.bf16.msra.mxu0 %v2796
        %3358 = vmatprep.subr.bf16.mxu0 %v2793
        %3359 = vmatpush1.bf16.msra.mxu0 %v2792
        %3360 = vmatprep.subr.bf16.mxu0 %v2789
        %3361 = vmatpush1.bf16.msra.mxu0 %v2788
        %3362 = vmatprep.subr.bf16.mxu0 %v2785
        %3363 = vmatpush1.bf16.msra.mxu0 %v2784
        %3364 = vmatprep.subr.bf16.mxu0 %v2781
        %3365 = vmatpush1.bf16.msra.mxu0 %v2780
        %3366 = vmatprep.subr.bf16.mxu0 %v2777
        %3367 = vmatpush1.bf16.msra.mxu0 %v2776
        %3368 = vmatprep.subr.bf16.mxu0 %v2837
        %3369 = vmatpush2.bf16.msra.mxu0 %v2836
        %3370 = vmatprep.subr.bf16.mxu0 %v2833
        %3371 = vmatpush2.bf16.msra.mxu0 %v2832
        %3372 = vmatprep.subr.bf16.mxu0 %v2829
        %3373 = vmatpush2.bf16.msra.mxu0 %v2828
        %3374 = vmatprep.subr.bf16.mxu0 %v2825
        %3375 = vmatpush2.bf16.msra.mxu0 %v2824
        %3376 = vmatprep.subr.bf16.mxu0 %v2821
        %3377 = vmatpush2.bf16.msra.mxu0 %v2820
        %3378 = vmatprep.subr.bf16.mxu0 %v2817
        %3379 = vmatpush2.bf16.msra.mxu0 %v2816
        %3380 = vmatprep.subr.bf16.mxu0 %v2813
        %3381 = vmatpush2.bf16.msra.mxu0 %v2812
        %3382 = vmatprep.subr.bf16.mxu0 %v2809
        %3383 = vmatpush2.bf16.msra.mxu0 %v2808
        %3384 = vmatprep.mubr.bf16.mxu0 %v647
        %3385 = vmatmul.mubr.bf16.gmra.mxu0 %v646
        %v3386 = vpop.f32.mrf.mxu0
        %v3387 = vadd.f32 %v2264, %v3386
        %v3388 = vpop.f32.mrf.mxu0
        %v3389 = vadd.f32 %v2266, %v3388
        %v3390 = vpop.f32.mrf.mxu0
        %v3391 = vadd.f32 %v2268, %v3390
        %v3392 = vpop.f32.mrf.mxu0
        %v3393 = vadd.f32 %v2270, %v3392
        %3394 = vmatprep.mubr.bf16.mxu0 %v651
        %3395 = vmatmul.mubr.bf16.gmra.mxu0 %v650
        %v3396 = vpop.f32.mrf.mxu0
        %v3397 = vadd.f32 %v2274, %v3396
        %v3398 = vpop.f32.mrf.mxu0
        %v3399 = vadd.f32 %v2276, %v3398
        %v3400 = vpop.f32.mrf.mxu0
        %v3401 = vadd.f32 %v2278, %v3400
        %v3402 = vpop.f32.mrf.mxu0
        %v3403 = vadd.f32 %v2280, %v3402
        %3404 = vmatprep.mubr.bf16.mxu0 %v655
        %3405 = vmatmul.mubr.bf16.gmra.mxu0 %v654
        %v3406 = vpop.f32.mrf.mxu0
        %v3407 = vadd.f32 %v2284, %v3406
        %v3408 = vpop.f32.mrf.mxu0
        %v3409 = vadd.f32 %v2286, %v3408
        %v3410 = vpop.f32.mrf.mxu0
        %v3411 = vadd.f32 %v2288, %v3410
        %v3412 = vpop.f32.mrf.mxu0
        %v3413 = vadd.f32 %v2290, %v3412
        %3414 = vmatprep.mubr.bf16.mxu0 %v659
        %3415 = vmatmul.mubr.bf16.gmra.mxu0 %v658
        %v3416 = vpop.f32.mrf.mxu0
        %v3417 = vadd.f32 %v2294, %v3416
        %v3418 = vpop.f32.mrf.mxu0
        %v3419 = vadd.f32 %v2296, %v3418
        %v3420 = vpop.f32.mrf.mxu0
        %v3421 = vadd.f32 %v2298, %v3420
        %v3422 = vpop.f32.mrf.mxu0
        %v3423 = vadd.f32 %v2300, %v3422
        %3424 = vmatprep.mubr.bf16.mxu0 %v663
        %3425 = vmatmul.mubr.bf16.gmra.mxu0 %v662
        %v3426 = vpop.f32.mrf.mxu0
        %v3427 = vadd.f32 %v2304, %v3426
        %v3428 = vpop.f32.mrf.mxu0
        %v3429 = vadd.f32 %v2306, %v3428
        %v3430 = vpop.f32.mrf.mxu0
        %v3431 = vadd.f32 %v2308, %v3430
        %v3432 = vpop.f32.mrf.mxu0
        %v3433 = vadd.f32 %v2310, %v3432
        %3434 = vmatprep.mubr.bf16.mxu0 %v667
        %3435 = vmatmul.mubr.bf16.gmra.mxu0 %v666
        %v3436 = vpop.f32.mrf.mxu0
        %v3437 = vadd.f32 %v2314, %v3436
        %v3438 = vpop.f32.mrf.mxu0
        %v3439 = vadd.f32 %v2316, %v3438
        %v3440 = vpop.f32.mrf.mxu0
        %v3441 = vadd.f32 %v2318, %v3440
        %v3442 = vpop.f32.mrf.mxu0
        %v3443 = vadd.f32 %v2320, %v3442
        %3444 = vmatprep.mubr.bf16.mxu0 %v671
        %3445 = vmatmul.mubr.bf16.gmra.mxu0 %v670
        %v3446 = vpop.f32.mrf.mxu0
        %v3447 = vadd.f32 %v2324, %v3446
        %v3448 = vpop.f32.mrf.mxu0
        %v3449 = vadd.f32 %v2326, %v3448
        %v3450 = vpop.f32.mrf.mxu0
        %v3451 = vadd.f32 %v2328, %v3450
        %v3452 = vpop.f32.mrf.mxu0
        %v3453 = vadd.f32 %v2330, %v3452
        %3454 = vmatprep.mubr.bf16.mxu0 %v675
        %3455 = vmatmul.mubr.bf16.gmra.mxu0 %v674
        %v3456 = vpop.f32.mrf.mxu0
        %v3457 = vadd.f32 %v2334, %v3456
        %v3458 = vpop.f32.mrf.mxu0
        %v3459 = vadd.f32 %v2336, %v3458
        %v3460 = vpop.f32.mrf.mxu0
        %v3461 = vadd.f32 %v2338, %v3460
        %v3462 = vpop.f32.mrf.mxu0
        %v3463 = vadd.f32 %v2340, %v3462
        %3464 = vmatprep.mubr.bf16.mxu0 %v679
        %3465 = vmatmul.mubr.bf16.gmra.mxu0 %v678
        %v3466 = vpop.f32.mrf.mxu0
        %v3467 = vadd.f32 %v2344, %v3466
        %v3468 = vpop.f32.mrf.mxu0
        %v3469 = vadd.f32 %v2346, %v3468
        %v3470 = vpop.f32.mrf.mxu0
        %v3471 = vadd.f32 %v2348, %v3470
        %v3472 = vpop.f32.mrf.mxu0
        %v3473 = vadd.f32 %v2350, %v3472
        %3474 = vmatprep.mubr.bf16.mxu0 %v683
        %3475 = vmatmul.mubr.bf16.gmra.mxu0 %v682
        %v3476 = vpop.f32.mrf.mxu0
        %v3477 = vadd.f32 %v2354, %v3476
        %v3478 = vpop.f32.mrf.mxu0
        %v3479 = vadd.f32 %v2356, %v3478
        %v3480 = vpop.f32.mrf.mxu0
        %v3481 = vadd.f32 %v2358, %v3480
        %v3482 = vpop.f32.mrf.mxu0
        %v3483 = vadd.f32 %v2360, %v3482
        %3484 = vmatprep.mubr.bf16.mxu0 %v687
        %3485 = vmatmul.mubr.bf16.gmra.mxu0 %v686
        %v3486 = vpop.f32.mrf.mxu0
        %v3487 = vadd.f32 %v2364, %v3486
        %v3488 = vpop.f32.mrf.mxu0
        %v3489 = vadd.f32 %v2366, %v3488
        %v3490 = vpop.f32.mrf.mxu0
        %v3491 = vadd.f32 %v2368, %v3490
        %v3492 = vpop.f32.mrf.mxu0
        %v3493 = vadd.f32 %v2370, %v3492
        %3494 = vmatprep.mubr.bf16.mxu0 %v691
        %3495 = vmatmul.mubr.bf16.gmra.mxu0 %v690
        %v3496 = vpop.f32.mrf.mxu0
        %v3497 = vadd.f32 %v2374, %v3496
        %v3498 = vpop.f32.mrf.mxu0
        %v3499 = vadd.f32 %v2376, %v3498
        %v3500 = vpop.f32.mrf.mxu0
        %v3501 = vadd.f32 %v2378, %v3500
        %v3502 = vpop.f32.mrf.mxu0
        %v3503 = vadd.f32 %v2380, %v3502
        %3504 = vmatprep.mubr.bf16.mxu0 %v695
        %3505 = vmatmul.mubr.bf16.gmra.mxu0 %v694
        %v3506 = vpop.f32.mrf.mxu0
        %v3507 = vadd.f32 %v2384, %v3506
        %v3508 = vpop.f32.mrf.mxu0
        %v3509 = vadd.f32 %v2386, %v3508
        %v3510 = vpop.f32.mrf.mxu0
        %v3511 = vpop.f32.mrf.mxu0
        %3512 = vdwg.mxu0
        %3513 = vmatprep.subr.bf16.mxu0 %v2869
        %3514 = vmatpush1.bf16.msra.mxu0 %v2868
        %3515 = vmatprep.subr.bf16.mxu0 %v2865
        %3516 = vmatpush1.bf16.msra.mxu0 %v2864
        %3517 = vmatprep.subr.bf16.mxu0 %v2861
        %3518 = vmatpush1.bf16.msra.mxu0 %v2860
        %3519 = vmatprep.subr.bf16.mxu0 %v2857
        %3520 = vmatpush1.bf16.msra.mxu0 %v2856
        %3521 = vmatprep.subr.bf16.mxu0 %v2853
        %3522 = vmatpush1.bf16.msra.mxu0 %v2852
        %3523 = vmatprep.subr.bf16.mxu0 %v2849
        %3524 = vmatpush1.bf16.msra.mxu0 %v2848
        %3525 = vmatprep.subr.bf16.mxu0 %v2845
        %3526 = vmatpush1.bf16.msra.mxu0 %v2844
        %3527 = vmatprep.subr.bf16.mxu0 %v2841
        %3528 = vmatpush1.bf16.msra.mxu0 %v2840
        %3529 = vmatprep.subr.bf16.mxu0 %v2901
        %3530 = vmatpush2.bf16.msra.mxu0 %v2900
        %3531 = vmatprep.subr.bf16.mxu0 %v2897
        %3532 = vmatpush2.bf16.msra.mxu0 %v2896
        %3533 = vmatprep.subr.bf16.mxu0 %v2893
        %3534 = vmatpush2.bf16.msra.mxu0 %v2892
        %3535 = vmatprep.subr.bf16.mxu0 %v2889
        %3536 = vmatpush2.bf16.msra.mxu0 %v2888
        %3537 = vmatprep.subr.bf16.mxu0 %v2885
        %3538 = vmatpush2.bf16.msra.mxu0 %v2884
        %3539 = vmatprep.subr.bf16.mxu0 %v2881
        %3540 = vmatpush2.bf16.msra.mxu0 %v2880
        %3541 = vmatprep.subr.bf16.mxu0 %v2877
        %3542 = vmatpush2.bf16.msra.mxu0 %v2876
        %3543 = vmatprep.subr.bf16.mxu0 %v2873
        %3544 = vmatpush2.bf16.msra.mxu0 %v2872
        %3545 = vmatprep.mubr.bf16.mxu0 %v649
        %3546 = vmatmul.mubr.bf16.gmra.mxu0 %v648
        %v3547 = vpop.f32.mrf.mxu0
        %v3548 = vadd.f32 %v3387, %v3547
        %v3549 = vpop.f32.mrf.mxu0
        %v3550 = vadd.f32 %v3389, %v3549
        %v3551 = vpop.f32.mrf.mxu0
        %v3552 = vadd.f32 %v3391, %v3551
        %v3553 = vpop.f32.mrf.mxu0
        %v3554 = vadd.f32 %v3393, %v3553
        %3555 = vmatprep.mubr.bf16.mxu0 %v653
        %3556 = vmatmul.mubr.bf16.gmra.mxu0 %v652
        %v3557 = vpop.f32.mrf.mxu0
        %v3558 = vadd.f32 %v3397, %v3557
        %v3559 = vpop.f32.mrf.mxu0
        %v3560 = vadd.f32 %v3399, %v3559
        %v3561 = vpop.f32.mrf.mxu0
        %v3562 = vadd.f32 %v3401, %v3561
        %v3563 = vpop.f32.mrf.mxu0
        %v3564 = vadd.f32 %v3403, %v3563
        %3565 = vmatprep.mubr.bf16.mxu0 %v657
        %3566 = vmatmul.mubr.bf16.gmra.mxu0 %v656
        %v3567 = vpop.f32.mrf.mxu0
        %v3568 = vadd.f32 %v3407, %v3567
        %v3569 = vpop.f32.mrf.mxu0
        %v3570 = vadd.f32 %v3409, %v3569
        %v3571 = vpop.f32.mrf.mxu0
        %v3572 = vadd.f32 %v3411, %v3571
        %v3573 = vpop.f32.mrf.mxu0
        %v3574 = vadd.f32 %v3413, %v3573
        %3575 = vmatprep.mubr.bf16.mxu0 %v661
        %3576 = vmatmul.mubr.bf16.gmra.mxu0 %v660
        %v3577 = vpop.f32.mrf.mxu0
        %v3578 = vadd.f32 %v3417, %v3577
        %v3579 = vpop.f32.mrf.mxu0
        %v3580 = vadd.f32 %v3419, %v3579
        %v3581 = vpop.f32.mrf.mxu0
        %v3582 = vadd.f32 %v3421, %v3581
        %v3583 = vpop.f32.mrf.mxu0
        %v3584 = vadd.f32 %v3423, %v3583
        %3585 = vmatprep.mubr.bf16.mxu0 %v665
        %3586 = vmatmul.mubr.bf16.gmra.mxu0 %v664
        %v3587 = vpop.f32.mrf.mxu0
        %v3588 = vadd.f32 %v3427, %v3587
        %v3589 = vpop.f32.mrf.mxu0
        %v3590 = vadd.f32 %v3429, %v3589
        %v3591 = vpop.f32.mrf.mxu0
        %v3592 = vadd.f32 %v3431, %v3591
        %v3593 = vpop.f32.mrf.mxu0
        %v3594 = vadd.f32 %v3433, %v3593
        %3595 = vmatprep.mubr.bf16.mxu0 %v669
        %3596 = vmatmul.mubr.bf16.gmra.mxu0 %v668
        %v3597 = vpop.f32.mrf.mxu0
        %v3598 = vadd.f32 %v3437, %v3597
        %v3599 = vpop.f32.mrf.mxu0
        %v3600 = vadd.f32 %v3439, %v3599
        %v3601 = vpop.f32.mrf.mxu0
        %v3602 = vadd.f32 %v3441, %v3601
        %v3603 = vpop.f32.mrf.mxu0
        %v3604 = vadd.f32 %v3443, %v3603
        %3605 = vmatprep.mubr.bf16.mxu0 %v673
        %3606 = vmatmul.mubr.bf16.gmra.mxu0 %v672
        %v3607 = vpop.f32.mrf.mxu0
        %v3608 = vadd.f32 %v3447, %v3607
        %v3609 = vpop.f32.mrf.mxu0
        %v3610 = vadd.f32 %v3449, %v3609
        %v3611 = vpop.f32.mrf.mxu0
        %v3612 = vadd.f32 %v3451, %v3611
        %v3613 = vpop.f32.mrf.mxu0
        %v3614 = vadd.f32 %v3453, %v3613
        %3615 = vmatprep.mubr.bf16.mxu0 %v677
        %3616 = vmatmul.mubr.bf16.gmra.mxu0 %v676
        %v3617 = vpop.f32.mrf.mxu0
        %v3618 = vadd.f32 %v3457, %v3617
        %v3619 = vpop.f32.mrf.mxu0
        %v3620 = vadd.f32 %v3459, %v3619
        %v3621 = vpop.f32.mrf.mxu0
        %v3622 = vadd.f32 %v3461, %v3621
        %v3623 = vpop.f32.mrf.mxu0
        %v3624 = vadd.f32 %v3463, %v3623
        %3625 = vmatprep.mubr.bf16.mxu0 %v681
        %3626 = vmatmul.mubr.bf16.gmra.mxu0 %v680
        %v3627 = vpop.f32.mrf.mxu0
        %v3628 = vadd.f32 %v3467, %v3627
        %v3629 = vpop.f32.mrf.mxu0
        %v3630 = vadd.f32 %v3469, %v3629
        %v3631 = vpop.f32.mrf.mxu0
        %v3632 = vadd.f32 %v3471, %v3631
        %v3633 = vpop.f32.mrf.mxu0
        %v3634 = vadd.f32 %v3473, %v3633
        %3635 = vmatprep.mubr.bf16.mxu0 %v685
        %3636 = vmatmul.mubr.bf16.gmra.mxu0 %v684
        %v3637 = vpop.f32.mrf.mxu0
        %v3638 = vadd.f32 %v3477, %v3637
        %v3639 = vpop.f32.mrf.mxu0
        %v3640 = vadd.f32 %v3479, %v3639
        %v3641 = vpop.f32.mrf.mxu0
        %v3642 = vadd.f32 %v3481, %v3641
        %v3643 = vpop.f32.mrf.mxu0
        %v3644 = vadd.f32 %v3483, %v3643
        %3645 = vmatprep.mubr.bf16.mxu0 %v689
        %3646 = vmatmul.mubr.bf16.gmra.mxu0 %v688
        %v3647 = vpop.f32.mrf.mxu0
        %v3648 = vadd.f32 %v3487, %v3647
        %v3649 = vpop.f32.mrf.mxu0
        %v3650 = vadd.f32 %v3489, %v3649
        %v3651 = vpop.f32.mrf.mxu0
        %v3652 = vadd.f32 %v3491, %v3651
        %v3653 = vpop.f32.mrf.mxu0
        %v3654 = vadd.f32 %v3493, %v3653
        %3655 = vmatprep.mubr.bf16.mxu0 %v693
        %3656 = vmatmul.mubr.bf16.gmra.mxu0 %v692
        %v3657 = vpop.f32.mrf.mxu0
        %v3658 = vadd.f32 %v3497, %v3657
        %v3659 = vpop.f32.mrf.mxu0
        %v3660 = vadd.f32 %v3499, %v3659
        %v3661 = vpop.f32.mrf.mxu0
        %v3662 = vadd.f32 %v3501, %v3661
        %v3663 = vpop.f32.mrf.mxu0
        %v3664 = vadd.f32 %v3503, %v3663
        %3665 = vmatprep.mubr.bf16.mxu0 %v697
        %3666 = vmatmul.mubr.bf16.gmra.mxu0 %v696
        %v3667 = vpop.f32.mrf.mxu0
        %v3668 = vadd.f32 %v3507, %v3667
        %v3669 = vpop.f32.mrf.mxu0
        %v3670 = vadd.f32 %v3509, %v3669
        %v3671 = vpop.f32.mrf.mxu0
        %v3672 = vpop.f32.mrf.mxu0
        %3673 = vdwg.mxu0
        %v3674 = vld [vmem:[%s4] sm:$0xf]
        %v3676 = vlaneseq
        %v3677 = vshrl.u32 %v3676, 7
        %v3678 = vsub.s32 0, %v3677
        %v3679 = vrot.slane %v3674, %v3678
        %v3680 = vlaneseq
        %v3681 = vshrl.u32 %v3680, 7
        %v3682 = vsub.s32 1, %v3681
        %v3683 = vrot.slane %v3674, %v3682
        %v3684 = vlaneseq
        %v3685 = vshrl.u32 %v3684, 7
        %v3686 = vsub.s32 2, %v3685
        %v3687 = vrot.slane %v3674, %v3686
        %v3688 = vlaneseq
        %v3689 = vshrl.u32 %v3688, 7
        %v3690 = vsub.s32 3, %v3689
        %v3691 = vrot.slane %v3674, %v3690
        %v3696 = vadd.f32 %v3226, %v3679
        %v3697 = vadd.f32 %v3228, %v3683
        %v3698 = vadd.f32 %v3548, %v3687
        %v3699 = vadd.f32 %v3550, %v3691
        %v3700 = vadd.f32 %v3230, %v3679
        %v3701 = vadd.f32 %v3232, %v3683
        %v3702 = vadd.f32 %v3552, %v3687
        %v3703 = vadd.f32 %v3554, %v3691
        %v3704 = vadd.f32 %v3236, %v3679
        %v3705 = vadd.f32 %v3238, %v3683
        %v3706 = vadd.f32 %v3558, %v3687
        %v3707 = vadd.f32 %v3560, %v3691
        %v3708 = vadd.f32 %v3240, %v3679
        %v3709 = vadd.f32 %v3242, %v3683
        %v3710 = vadd.f32 %v3562, %v3687
        %v3711 = vadd.f32 %v3564, %v3691
        %v3712 = vadd.f32 %v3246, %v3679
        %v3713 = vadd.f32 %v3248, %v3683
        %v3714 = vadd.f32 %v3568, %v3687
        %v3715 = vadd.f32 %v3570, %v3691
        %v3716 = vadd.f32 %v3250, %v3679
        %v3717 = vadd.f32 %v3252, %v3683
        %v3718 = vadd.f32 %v3572, %v3687
        %v3719 = vadd.f32 %v3574, %v3691
        %v3720 = vadd.f32 %v3256, %v3679
        %v3721 = vadd.f32 %v3258, %v3683
        %v3722 = vadd.f32 %v3578, %v3687
        %v3723 = vadd.f32 %v3580, %v3691
        %v3724 = vadd.f32 %v3260, %v3679
        %v3725 = vadd.f32 %v3262, %v3683
        %v3726 = vadd.f32 %v3582, %v3687
        %v3727 = vadd.f32 %v3584, %v3691
        %v3728 = vadd.f32 %v3266, %v3679
        %v3729 = vadd.f32 %v3268, %v3683
        %v3730 = vadd.f32 %v3588, %v3687
        %v3731 = vadd.f32 %v3590, %v3691
        %v3732 = vadd.f32 %v3270, %v3679
        %v3733 = vadd.f32 %v3272, %v3683
        %v3734 = vadd.f32 %v3592, %v3687
        %v3735 = vadd.f32 %v3594, %v3691
        %v3736 = vadd.f32 %v3276, %v3679
        %v3737 = vadd.f32 %v3278, %v3683
        %v3738 = vadd.f32 %v3598, %v3687
        %v3739 = vadd.f32 %v3600, %v3691
        %v3740 = vadd.f32 %v3280, %v3679
        %v3741 = vadd.f32 %v3282, %v3683
        %v3742 = vadd.f32 %v3602, %v3687
        %v3743 = vadd.f32 %v3604, %v3691
        %v3744 = vadd.f32 %v3286, %v3679
        %v3745 = vadd.f32 %v3288, %v3683
        %v3746 = vadd.f32 %v3608, %v3687
        %v3747 = vadd.f32 %v3610, %v3691
        %v3748 = vadd.f32 %v3290, %v3679
        %v3749 = vadd.f32 %v3292, %v3683
        %v3750 = vadd.f32 %v3612, %v3687
        %v3751 = vadd.f32 %v3614, %v3691
        %v3752 = vadd.f32 %v3296, %v3679
        %v3753 = vadd.f32 %v3298, %v3683
        %v3754 = vadd.f32 %v3618, %v3687
        %v3755 = vadd.f32 %v3620, %v3691
        %v3756 = vadd.f32 %v3300, %v3679
        %v3757 = vadd.f32 %v3302, %v3683
        %v3758 = vadd.f32 %v3622, %v3687
        %v3759 = vadd.f32 %v3624, %v3691
        %v3760 = vadd.f32 %v3306, %v3679
        %v3761 = vadd.f32 %v3308, %v3683
        %v3762 = vadd.f32 %v3628, %v3687
        %v3763 = vadd.f32 %v3630, %v3691
        %v3764 = vadd.f32 %v3310, %v3679
        %v3765 = vadd.f32 %v3312, %v3683
        %v3766 = vadd.f32 %v3632, %v3687
        %v3767 = vadd.f32 %v3634, %v3691
        %v3768 = vadd.f32 %v3316, %v3679
        %v3769 = vadd.f32 %v3318, %v3683
        %v3770 = vadd.f32 %v3638, %v3687
        %v3771 = vadd.f32 %v3640, %v3691
        %v3772 = vadd.f32 %v3320, %v3679
        %v3773 = vadd.f32 %v3322, %v3683
        %v3774 = vadd.f32 %v3642, %v3687
        %v3775 = vadd.f32 %v3644, %v3691
        %v3776 = vadd.f32 %v3326, %v3679
        %v3777 = vadd.f32 %v3328, %v3683
        %v3778 = vadd.f32 %v3648, %v3687
        %v3779 = vadd.f32 %v3650, %v3691
        %v3780 = vadd.f32 %v3330, %v3679
        %v3781 = vadd.f32 %v3332, %v3683
        %v3782 = vadd.f32 %v3652, %v3687
        %v3783 = vadd.f32 %v3654, %v3691
        %v3784 = vadd.f32 %v3336, %v3679
        %v3785 = vadd.f32 %v3338, %v3683
        %v3786 = vadd.f32 %v3658, %v3687
        %v3787 = vadd.f32 %v3660, %v3691
        %v3788 = vadd.f32 %v3340, %v3679
        %v3789 = vadd.f32 %v3342, %v3683
        %v3790 = vadd.f32 %v3662, %v3687
        %v3791 = vadd.f32 %v3664, %v3691
        %v3792 = vadd.f32 %v3346, %v3679
        %v3793 = vadd.f32 %v3348, %v3683
        %v3794 = vadd.f32 %v3668, %v3687
        %v3795 = vadd.f32 %v3670, %v3691
        %3796 = vst [vmem:[%s327] sm:$0xff] %v3696
        %3797 = vst [vmem:[%s327 + $0x8] sm:$0xff] %v3697
        %3798 = vst [vmem:[%s327 + $0x10] sm:$0xff] %v3698
        %3799 = vst [vmem:[%s327 + $0x18] sm:$0xff] %v3699
        %3800 = vst [vmem:[%s327 + $0x20] sm:$0xff] %v3700
        %3801 = vst [vmem:[%s327 + $0x28] sm:$0xff] %v3701
        %3802 = vst [vmem:[%s327 + $0x30] sm:$0xff] %v3702
        %3803 = vst [vmem:[%s327 + $0x38] sm:$0xff] %v3703
        %3804 = vst [vmem:[%s327 + $0x40] sm:$0xff] %v3704
        %3805 = vst [vmem:[%s327 + $0x48] sm:$0xff] %v3705
        %3806 = vst [vmem:[%s327 + $0x50] sm:$0xff] %v3706
        %3807 = vst [vmem:[%s327 + $0x58] sm:$0xff] %v3707
        %3808 = vst [vmem:[%s327 + $0x60] sm:$0xff] %v3708
        %3809 = vst [vmem:[%s327 + $0x68] sm:$0xff] %v3709
        %3810 = vst [vmem:[%s327 + $0x70] sm:$0xff] %v3710
        %3811 = vst [vmem:[%s327 + $0x78] sm:$0xff] %v3711
        %3812 = vst [vmem:[%s327 + $0x80] sm:$0xff] %v3712
        %3813 = vst [vmem:[%s327 + $0x88] sm:$0xff] %v3713
        %3814 = vst [vmem:[%s327 + $0x90] sm:$0xff] %v3714
        %3815 = vst [vmem:[%s327 + $0x98] sm:$0xff] %v3715
        %3816 = vst [vmem:[%s327 + $0xa0] sm:$0xff] %v3716
        %3817 = vst [vmem:[%s327 + $0xa8] sm:$0xff] %v3717
        %3818 = vst [vmem:[%s327 + $0xb0] sm:$0xff] %v3718
        %3819 = vst [vmem:[%s327 + $0xb8] sm:$0xff] %v3719
        %3820 = vst [vmem:[%s327 + $0xc0] sm:$0xff] %v3720
        %3821 = vst [vmem:[%s327 + $0xc8] sm:$0xff] %v3721
        %3822 = vst [vmem:[%s327 + $0xd0] sm:$0xff] %v3722
        %3823 = vst [vmem:[%s327 + $0xd8] sm:$0xff] %v3723
        %3824 = vst [vmem:[%s327 + $0xe0] sm:$0xff] %v3724
        %3825 = vst [vmem:[%s327 + $0xe8] sm:$0xff] %v3725
        %3826 = vst [vmem:[%s327 + $0xf0] sm:$0xff] %v3726
        %3827 = vst [vmem:[%s327 + $0xf8] sm:$0xff] %v3727
        %3828 = vst [vmem:[%s327 + $0x100] sm:$0xff] %v3728
        %3829 = vst [vmem:[%s327 + $0x108] sm:$0xff] %v3729
        %3830 = vst [vmem:[%s327 + $0x110] sm:$0xff] %v3730
        %3831 = vst [vmem:[%s327 + $0x118] sm:$0xff] %v3731
        %3832 = vst [vmem:[%s327 + $0x120] sm:$0xff] %v3732
        %3833 = vst [vmem:[%s327 + $0x128] sm:$0xff] %v3733
        %3834 = vst [vmem:[%s327 + $0x130] sm:$0xff] %v3734
        %3835 = vst [vmem:[%s327 + $0x138] sm:$0xff] %v3735
        %3836 = vst [vmem:[%s327 + $0x140] sm:$0xff] %v3736
        %3837 = vst [vmem:[%s327 + $0x148] sm:$0xff] %v3737
        %3838 = vst [vmem:[%s327 + $0x150] sm:$0xff] %v3738
        %3839 = vst [vmem:[%s327 + $0x158] sm:$0xff] %v3739
        %3840 = vst [vmem:[%s327 + $0x160] sm:$0xff] %v3740
        %3841 = vst [vmem:[%s327 + $0x168] sm:$0xff] %v3741
        %3842 = vst [vmem:[%s327 + $0x170] sm:$0xff] %v3742
        %3843 = vst [vmem:[%s327 + $0x178] sm:$0xff] %v3743
        %3844 = vst [vmem:[%s327 + $0x180] sm:$0xff] %v3744
        %3845 = vst [vmem:[%s327 + $0x188] sm:$0xff] %v3745
        %3846 = vst [vmem:[%s327 + $0x190] sm:$0xff] %v3746
        %3847 = vst [vmem:[%s327 + $0x198] sm:$0xff] %v3747
        %3848 = vst [vmem:[%s327 + $0x1a0] sm:$0xff] %v3748
        %3849 = vst [vmem:[%s327 + $0x1a8] sm:$0xff] %v3749
        %3850 = vst [vmem:[%s327 + $0x1b0] sm:$0xff] %v3750
        %3851 = vst [vmem:[%s327 + $0x1b8] sm:$0xff] %v3751
        %3852 = vst [vmem:[%s327 + $0x1c0] sm:$0xff] %v3752
        %3853 = vst [vmem:[%s327 + $0x1c8] sm:$0xff] %v3753
        %3854 = vst [vmem:[%s327 + $0x1d0] sm:$0xff] %v3754
        %3855 = vst [vmem:[%s327 + $0x1d8] sm:$0xff] %v3755
        %3856 = vst [vmem:[%s327 + $0x1e0] sm:$0xff] %v3756
        %3857 = vst [vmem:[%s327 + $0x1e8] sm:$0xff] %v3757
        %3858 = vst [vmem:[%s327 + $0x1f0] sm:$0xff] %v3758
        %3859 = vst [vmem:[%s327 + $0x1f8] sm:$0xff] %v3759
        %3860 = vst [vmem:[%s327 + $0x200] sm:$0xff] %v3760
        %3861 = vst [vmem:[%s327 + $0x208] sm:$0xff] %v3761
        %3862 = vst [vmem:[%s327 + $0x210] sm:$0xff] %v3762
        %3863 = vst [vmem:[%s327 + $0x218] sm:$0xff] %v3763
        %3864 = vst [vmem:[%s327 + $0x220] sm:$0xff] %v3764
        %3865 = vst [vmem:[%s327 + $0x228] sm:$0xff] %v3765
        %3866 = vst [vmem:[%s327 + $0x230] sm:$0xff] %v3766
        %3867 = vst [vmem:[%s327 + $0x238] sm:$0xff] %v3767
        %3868 = vst [vmem:[%s327 + $0x240] sm:$0xff] %v3768
        %3869 = vst [vmem:[%s327 + $0x248] sm:$0xff] %v3769
        %3870 = vst [vmem:[%s327 + $0x250] sm:$0xff] %v3770
        %3871 = vst [vmem:[%s327 + $0x258] sm:$0xff] %v3771
        %3872 = vst [vmem:[%s327 + $0x260] sm:$0xff] %v3772
        %3873 = vst [vmem:[%s327 + $0x268] sm:$0xff] %v3773
        %3874 = vst [vmem:[%s327 + $0x270] sm:$0xff] %v3774
        %3875 = vst [vmem:[%s327 + $0x278] sm:$0xff] %v3775
        %3876 = vst [vmem:[%s327 + $0x280] sm:$0xff] %v3776
        %3877 = vst [vmem:[%s327 + $0x288] sm:$0xff] %v3777
        %3878 = vst [vmem:[%s327 + $0x290] sm:$0xff] %v3778
        %3879 = vst [vmem:[%s327 + $0x298] sm:$0xff] %v3779
        %3880 = vst [vmem:[%s327 + $0x2a0] sm:$0xff] %v3780
        %3881 = vst [vmem:[%s327 + $0x2a8] sm:$0xff] %v3781
        %3882 = vst [vmem:[%s327 + $0x2b0] sm:$0xff] %v3782
        %3883 = vst [vmem:[%s327 + $0x2b8] sm:$0xff] %v3783
        %3884 = vst [vmem:[%s327 + $0x2c0] sm:$0xff] %v3784
        %3885 = vst [vmem:[%s327 + $0x2c8] sm:$0xff] %v3785
        %3886 = vst [vmem:[%s327 + $0x2d0] sm:$0xff] %v3786
        %3887 = vst [vmem:[%s327 + $0x2d8] sm:$0xff] %v3787
        %3888 = vst [vmem:[%s327 + $0x2e0] sm:$0xff] %v3788
        %3889 = vst [vmem:[%s327 + $0x2e8] sm:$0xff] %v3789
        %3890 = vst [vmem:[%s327 + $0x2f0] sm:$0xff] %v3790
        %3891 = vst [vmem:[%s327 + $0x2f8] sm:$0xff] %v3791
        %3892 = vst [vmem:[%s327 + $0x300] sm:$0xff] %v3792
        %3893 = vst [vmem:[%s327 + $0x308] sm:$0xff] %v3793
        %3894 = vst [vmem:[%s327 + $0x310] sm:$0xff] %v3794
        %3895 = vst [vmem:[%s327 + $0x318] sm:$0xff] %v3795
        %s3896 = sand.u32 %s149, 1
        %s3897 = scalar_lea.sflag [#allocation4], %s3896
        %s3898 = sand.u32 %s149, 1
        %s3899 = smul.addr %s3898, 800
        %s3900 = scalar_lea.vmem [#allocation10], %s3899
        // Predicated region
        $region57: #{gnet_forward.1} parent=39 // pred_check
          %p3901 = pneg %p159
        $region58: #{gnet_forward.1} parent=39 // pred_check_branch
          %3903 = sbr.rel (%p3901) target = $region60
        $region59: #{gnet_forward.1} parent=39 // pred_region
          %s3904 = smul.u32 25, %s26
          %s3905 = ssub.s32 49, %s3904
          %p3906 = scmp.lt.s32.totalorder %s3905, 25
          %s3907 = scalar_select %p3906, %s3905, 25
          %s3908 = smul.u32 128, %s3907
          %s3909 = smul.u32 %s3908, 4
          %s3911 = ssub.s32 12800, %s3909
          %3912 = vsyncadd %s3897, %s3911
          %p3913 = scmp.ne.s32.totalorder 0, %s3909
          %s3914 = smul.addr %s3904, 4
          %s3915 = smul.addr %s3914, 128
          %s3916 = scalar_lea.hbm %s5, %s3915
          %s3917 = smul.u32 32, %s3907
          %s3918 = sshll.u32 %s3900, 4
          %s3919 = int_to_ptr.vmem [resolvable:$true] %s3918
          %s3920 = sshll.u32 %s3917, 4
          %3924 = dma.vmem_to_hbm [thread:$0]  (%p3913), %s3919, %s3920, %s3916, %s3897, 512, 512, 32
        $region60: #{gnet_forward.1} parent=39 // pred_fallthru
          _
      $region40: #{gnet_forward.1} parent=5 // pred_fallthru
        _
      %p3925 = scmp.le.s32.totalorder 2, %s21
      // Predicated region
      $region61: #{gnet_forward.1} parent=5 // pred_check
        %p3926 = pneg %p3925
      $region62: #{gnet_forward.1} parent=5 // pred_check_branch
        %3928 = sbr.rel (%p3926) target = $region64
      $region63: #{gnet_forward.1} parent=5 // pred_region
        %s3929 = ssub.s32 %s21, 2
        // Predicated region
        $region65: #{gnet_forward.1} parent=63 // pred_check
          %p3930 = pneg %p165
        $region66: #{gnet_forward.1} parent=63 // pred_check_branch
          %3932 = sbr.rel (%p3930) target = $region68
        $region67: #{gnet_forward.1} parent=63 // pred_region
          %s3933 = sand.u32 %s150, 1
          %s3934 = scalar_lea.sflag [#allocation4], %s3933
          %s3935 = sand.u32 %s150, 1
          %s3936 = smul.addr %s3935, 800
          %s3937 = scalar_lea.vmem [#allocation10], %s3936
          %3938 = dma.done %s3934, 12800
        $region68: #{gnet_forward.1} parent=63 // pred_fallthru
          _
      $region64: #{gnet_forward.1} parent=5 // pred_fallthru
        _
    $region6: #{gnet_forward.1} parent=1 // loop_footer
      %s25 = sadd.s32 1, %s21
    $region7: #{gnet_forward.1} parent=1 // loop_footer_branch
      %20 = sbr.rel target = $region3
    $region8: #{gnet_forward.1} parent=1 // loop_exit
      _
    %3939 = vsyncpa [#allocation3], 1
    %s3940 = scalar_lea.sflag [#allocation3], 1
    %3941 = vsyncpa %s3940, 1
    %3942 = vsyncpa [#allocation6], 1
    %s3943 = scalar_lea.sflag [#allocation6], 1
    %3944 = vsyncpa %s3943, 1
    %3945 = vsyncpa [#allocation9], 1
    %3946 = vsyncpa [#allocation4], 1
    %s3947 = scalar_lea.sflag [#allocation4], 1
    %3948 = vsyncpa %s3947, 1

</llo_original>
